<compile_context>
chip_gen: v7x
topology: tpu7x:2x2x1
jax: 0.10.0
libtpu: 0.0.40
codegen_flags: <defaults>
</compile_context>

<pallas_src>
import math

import numpy as np
import jax
import jax.numpy as jnp
from jax.experimental import pallas as pl
from jax.experimental.pallas import tpu as pltpu

L_IN = 50            # sequence length (forced by Linear(768, ...): 256 ch * 3 pos = 768)
C_IN = 8             # input channels
N_CLASSES_OUT = 3
OUT_PAD = 128        # padded logits lane width (15 real logits)
K_PAD = 256          # im2col row width: 18 steps * 8 ch = 144, zero-padded to 256
MAX_B_BLK = 256      # samples per grid step (M = 256 fills the v6e/v7x 256-wide MXU)


def _round_up(n, m):
    return ((n + m - 1) // m) * m


# -----------------------------------------------------------------------------
# Fused features + MLP Pallas kernel (one grid step = b_blk samples x 3 windows)
# -----------------------------------------------------------------------------
def _fused_kernel(x_ref,                       # (3, 1, b_blk, 256) bf16 im2col windows
                  w1_ref, b1_ref,              # (256, 1024) bf16, (1, 1024) bf16
                  w2_ref, b2_ref,              # (128, 128)  bf16, (1, 128)  bf16
                  w3_ref, b3_ref,              # (256, 256)  bf16, (1, 256)  bf16
                  wfc1_ref, bfc1_ref,          # (3, 256, 512) bf16, (1, 512) f32
                  wfc2_ref, bfc2_ref,          # (512, 128) bf16, (1, 128) f32
                  o_ref):                      # (b_blk, 128) f32

    def mm(a, w):
        # bf16 x bf16 MXU matmul, f32 accumulation
        return jnp.dot(a, w, preferred_element_type=jnp.float32)

    def relu_bf16(acc_f32, bias_bf16):
        # bf16 epilogue: cast once, bias-add + ReLU in bf16 (halves VALU work on
        # v6e/v7x, also feeds the next matmul without an extra cast).
        return jnp.maximum(acc_f32.astype(jnp.bfloat16) + bias_bf16, 0)

    w1 = w1_ref[...]
    b1 = b1_ref[...]
    w2s = w2_ref[...]                          # shared (128,128) conv2 block
    b2s = b2_ref[...]
    w3a = w3_ref[0:128, :]                     # conv3 tap j=0  (128,256)
    w3b = w3_ref[128:256, :]                   # conv3 tap j=1  (128,256)
    b3s = b3_ref[...]

    acc = bfc1_ref[...]                        # (1, 512) f32, broadcasts over rows
    for v in range(3):                         # 3 overlapping input windows / sample
        xv = x_ref[v, 0]                       # (b_blk, 256) bf16

        # Conv1d(8 -> 64, k=3, s=1) + ReLU : banded (256 -> 1024) matmul,
        # 16 conv positions x 64 channels per row.
        h1 = relu_bf16(mm(xv, w1), b1)                              # (b_blk, 1024)

        # Conv1d(64 -> 128, k=2, s=2) + ReLU + MaxPool1d(2)
        # then Conv1d(128 -> 256, k=2, s=2) + ReLU + MaxPool1d(2),
        # using lane-slice matmuls against the single shared weight blocks.
        h3 = []
        for jp in range(2):                    # conv3 output positions
            p2 = []
            for jj in range(2):                # conv2 pooled positions feeding jp
                i = 2 * jp + jj                # pooled conv2 position (0..3)
                a0 = relu_bf16(mm(h1[:, (2 * i) * 128:(2 * i + 1) * 128], w2s), b2s)
                a1 = relu_bf16(mm(h1[:, (2 * i + 1) * 128:(2 * i + 2) * 128], w2s), b2s)
                p2.append(jnp.maximum(a0, a1))                      # (b_blk, 128)
            h3.append(relu_bf16(mm(p2[0], w3a) + mm(p2[1], w3b), b3s))  # (b_blk, 256)
        p3 = jnp.maximum(h3[0], h3[1])                              # (b_blk, 256) bf16

        # Linear(768 -> 512): accumulate the three K=256 window contributions in f32
        # (replaces the lane-concat relayout).
        acc = acc + mm(p3, wfc1_ref[v])                             # (b_blk, 512) f32

    z1 = jnp.maximum(acc, 0.0).astype(jnp.bfloat16)                 # (b_blk, 512)
    # Linear(512 -> 15), padded to 128 lane-dense output columns.
    o_ref[...] = mm(z1, wfc2_ref[...]) + bfc2_ref[...]              # (b_blk, 128) f32


def features_and_mlp(x_ncl, params, b_blk=None):
    """x_ncl: (B, 8, 50) PyTorch NCL layout.  Returns (B, 15) pre-quantum logits."""
    B = x_ncl.shape[0]
    if b_blk is None:
        # Aim for >= 2 grid steps (both v7x TensorCores) while capping M at 256.
        b_blk = min(MAX_B_BLK, max(8, _round_up((B + 1) // 2, 8)))
    b_pad = _round_up(B, b_blk)
    n_blk = b_pad // b_blk

    # ---- host-side im2col: 3 overlapping windows of 18 steps x 8 channels,
    # channel-last, flattened to 144 lanes and zero-padded to 256, emitted in bf16.
    # No row reorder / transpose: the window axis becomes a block dimension.
    x_t = jnp.transpose(x_ncl, (0, 2, 1)).astype(jnp.bfloat16)      # (B, 50, 8)
    if b_pad != B:
        x_t = jnp.pad(x_t, ((0, b_pad - B), (0, 0), (0, 0)))
    wins = jnp.stack(
        [x_t[:, 16 * v:16 * v + 18, :].reshape(b_pad, 18 * C_IN) for v in range(3)],
        axis=0)                                                     # (3, b_pad, 144)
    wins = jnp.pad(wins, ((0, 0), (0, 0), (0, K_PAD - 18 * C_IN)))  # (3, b_pad, 256)
    wins = wins.reshape(3, n_blk, b_blk, K_PAD)                     # (3, n_blk, b_blk, 256)

    weights = (params["w1"], params["b1"],
               params["w2"], params["b2"],
               params["w3"], params["b3"],
               params["wfc1"], params["bfc1"],
               params["wfc2"], params["bfc2"])

    def _const_spec(a):
        return pl.BlockSpec(a.shape, lambda i, n=a.ndim: (0,) * n)

    in_specs = [pl.BlockSpec((3, 1, b_blk, K_PAD), lambda i: (0, i, 0, 0))]
    in_specs += [_const_spec(a) for a in weights]
    out_specs = pl.BlockSpec((b_blk, OUT_PAD), lambda i: (i, 0))

    flops_per_sample = (
        3 * (2 * K_PAD * 1024          # conv1 (banded matmul)
             + 8 * 2 * 128 * 128       # conv2 (8 shared-block matmuls)
             + 2 * 2 * 256 * 256       # conv3 (2 positions x 2 summed taps)
             + 2 * 256 * 512)          # fc1 partial sums
        + 2 * 512 * OUT_PAD)           # fc2
    bytes_accessed = (wins.size * 2
                      + sum(int(w.size) * w.dtype.itemsize for w in weights)
                      + b_pad * OUT_PAD * 4)

    out = pl.pallas_call(
        _fused_kernel,
        out_shape=jax.ShapeDtypeStruct((b_pad, OUT_PAD), jnp.float32),
        grid_spec=pltpu.PrefetchScalarGridSpec(
            num_scalar_prefetch=0,
            grid=(n_blk,),
            in_specs=in_specs,
            out_specs=out_specs,
        ),
        compiler_params=pltpu.CompilerParams(
            dimension_semantics=("parallel",),
            vmem_limit_bytes=32 * 1024 * 1024,
        ),
        cost_estimate=pl.CostEstimate(
            flops=int(b_pad * flops_per_sample),
            transcendentals=0,
            bytes_accessed=int(bytes_accessed),
        ),
    )(wins, *weights)

    return out[:B, :15]


# -----------------------------------------------------------------------------
# 3-qubit quantum layer: batched statevector simulation in plain JAX.
# State is (B, 2, 2, 2) complex64; per-sample RX embedding is broadcasted
# elementwise, the (shared-weight) entangling block is one 8x8 unitary applied
# as a single batched complex matmul.
# -----------------------------------------------------------------------------
def _rz_mat(t):
    tc = t.astype(jnp.complex64)
    em, ep = jnp.exp(-0.5j * tc), jnp.exp(0.5j * tc)
    z = jnp.zeros_like(em)
    return jnp.stack([jnp.stack([em, z]), jnp.stack([z, ep])])


def _ry_mat(t):
    c = jnp.cos(t / 2).astype(jnp.complex64)
    s = jnp.sin(t / 2).astype(jnp.complex64)
    return jnp.stack([jnp.stack([c, -s]), jnp.stack([s, c])])


def _rot_mat(phi, theta, omega):
    # PennyLane qml.Rot(phi, theta, omega) = RZ(omega) RY(theta) RZ(phi)
    return _rz_mat(omega) @ _ry_mat(theta) @ _rz_mat(phi)


def _cnot_mat(ctrl, tgt):
    m = np.zeros((8, 8), np.complex64)
    for x in range(8):
        y = x ^ (1 << (2 - tgt)) if (x >> (2 - ctrl)) & 1 else x
        m[y, x] = 1.0
    return jnp.asarray(m)


def _entangling_unitary(qw):
    """StronglyEntanglingLayers(2 layers, 3 wires) as a single (8, 8) unitary."""
    u = jnp.eye(8, dtype=jnp.complex64)
    for l in range(2):
        rots = [_rot_mat(qw[l, w, 0], qw[l, w, 1], qw[l, w, 2]) for w in range(3)]
        layer = jnp.kron(jnp.kron(rots[0], rots[1]), rots[2])
        r = (l % 2) + 1                          # imprimitive range: l % (n_wires-1) + 1
        for w in range(3):
            layer = _cnot_mat(w, (w + r) % 3) @ layer
        u = layer @ u
    return u


_Z_SIGNS = np.array([[1.0 - 2.0 * ((x >> (2 - q)) & 1) for q in range(3)]
                     for x in range(8)], np.float32)        # (8, 3)


def quantum_layer(angles, qw):
    """angles: (B, 15) -> (B, 3) PauliZ expectations (batched, no vmap)."""
    B = angles.shape[0]
    psi = jnp.zeros((B, 2, 2, 2), jnp.complex64).at[:, 0, 0, 0].set(1.0 + 0.0j)
    half = 0.5 * angles.astype(jnp.float32)
    cos = jnp.cos(half).astype(jnp.complex64)                 # (B, 15)
    misin = (-1j) * jnp.sin(half).astype(jnp.complex64)       # (B, 15)
    # 5x AngleEmbedding (rotation='X') over inputs[0:3], [3:6], ..., [12:15]
    for k in range(0, 15, 3):
        for w in range(3):
            c = cos[:, k + w].reshape(B, 1, 1, 1)
            s = misin[:, k + w].reshape(B, 1, 1, 1)
            psi = c * psi + s * jnp.flip(psi, axis=w + 1)
    # StronglyEntanglingLayers (shared weights) as one batched 8x8 matmul
    psi = psi.reshape(B, 8) @ _entangling_unitary(qw).T
    probs = jnp.real(psi * jnp.conj(psi)).astype(jnp.float32)  # (B, 8)
    return probs @ jnp.asarray(_Z_SIGNS)                       # (B, 3)


# -----------------------------------------------------------------------------
# Parameters (packed into MXU-friendly shared-block matrices)
# -----------------------------------------------------------------------------
def init_params(key):
    ks = jax.random.split(key, 11)

    def u(k, shape, fan_in):
        bound = 1.0 / math.sqrt(fan_in)
        return np.asarray(jax.random.uniform(k, shape, jnp.float32, -bound, bound))

    conv1_w = u(ks[0], (64, 8, 3), 8 * 3)       # (out, in, k)
    conv1_b = u(ks[1], (64,), 8 * 3)
    conv2_w = u(ks[2], (128, 64, 2), 64 * 2)
    conv2_b = u(ks[3], (128,), 64 * 2)
    conv3_w = u(ks[4], (256, 128, 2), 128 * 2)
    conv3_b = u(ks[5], (256,), 128 * 2)
    fc1_w = u(ks[6], (512, 768), 768)
    fc1_b = u(ks[7], (512,), 768)
    fc2_w = u(ks[8], (15, 512), 512)
    fc2_b = u(ks[9], (15,), 512)
    # strong_ent_layers_uniform(n_layers=2, n_wires=3): uniform in [0, 2*pi)
    qw = jax.random.uniform(ks[10], (2, 3, 3), jnp.float32, 0.0, 2.0 * math.pi)

    # conv1 (k=3, s=1) as a banded (256 -> 1024) matrix: 16 outputs per 18-step window.
    # Window row layout: lane p*8 + c = x[t0 + p, c]; rows 144..255 stay zero (K pad).
    w1 = np.zeros((K_PAD, 16 * 64), np.float32)
    for i in range(16):
        for j in range(3):
            p = i + j
            w1[p * 8:(p + 1) * 8, i * 64:(i + 1) * 64] = conv1_w[:, :, j].T

    # conv2 (k=2, s=2): every output position uses the SAME (128 -> 128) block.
    w2 = np.concatenate([conv2_w[:, :, 0].T, conv2_w[:, :, 1].T], axis=0)   # (128, 128)

    # conv3 (k=2, s=2): every output position uses the SAME (256 -> 256) block
    # (rows 0..127 = tap j=0, rows 128..255 = tap j=1; kernel splits it in half).
    w3 = np.concatenate([conv3_w[:, :, 0].T, conv3_w[:, :, 1].T], axis=0)   # (256, 256)

    # fc1: PyTorch Flatten of (256 ch, 3 pos) is flat[c*3 + v]; split per window:
    # wfc1[v, c, o] = fc1_w[o, c*3 + v].
    wfc1 = fc1_w.reshape(512, 256, 3).transpose(2, 1, 0)                    # (3, 256, 512)

    # fc2 padded to 128 output lanes (15 real logits).
    wfc2 = np.zeros((512, OUT_PAD), np.float32)
    wfc2[:, :15] = fc2_w.T
    bfc2 = np.zeros((1, OUT_PAD), np.float32)
    bfc2[0, :15] = fc2_b

    return {
        "w1": jnp.asarray(w1, jnp.bfloat16),
        "b1": jnp.asarray(np.tile(conv1_b, 16).reshape(1, 1024), jnp.bfloat16),
        "w2": jnp.asarray(w2, jnp.bfloat16),
        "b2": jnp.asarray(conv2_b.reshape(1, 128), jnp.bfloat16),
        "w3": jnp.asarray(w3, jnp.bfloat16),
        "b3": jnp.asarray(conv3_b.reshape(1, 256), jnp.bfloat16),
        "wfc1": jnp.asarray(wfc1, jnp.bfloat16),
        "bfc1": jnp.asarray(fc1_b.reshape(1, 512), jnp.float32),
        "wfc2": jnp.asarray(wfc2, jnp.bfloat16),
        "bfc2": jnp.asarray(bfc2, jnp.float32),
        "qw": qw,
    }


# -----------------------------------------------------------------------------
# Full model
# -----------------------------------------------------------------------------
@jax.jit
def model_forward(params, x_ncl):
    """x_ncl: (B, 8, 50) PyTorch NCL layout.  Returns (B, 3) PauliZ expectations."""
    pre_q = features_and_mlp(x_ncl, params)          # (B, 15) via Pallas
    return quantum_layer(pre_q, params["qw"])        # (B, 3)  batched statevector sim


if __name__ == "__main__":
    key = jax.random.PRNGKey(0)
    k_x, k_p = jax.random.split(key)
    B = 2
    x = jax.random.normal(k_x, (B, C_IN, L_IN), jnp.float32)      # NCL like PyTorch
    params = init_params(k_p)

    out = model_forward(params, x)
    out = jax.block_until_ready(out)

    assert out.shape == (B, N_CLASSES_OUT), out.shape
    assert bool(jnp.all(jnp.isfinite(out)))
    assert bool(jnp.all(jnp.abs(out) <= 1.0 + 1e-5))              # PauliZ expvals in [-1, 1]
    print("KERNEL_OK")
</pallas_src>

<mosaic_0001>
module attributes {stable_mosaic.version = 11 : i64} {
  func.func @_fused_kernel(%arg0: i32, %arg1: memref<3x1x8x256xbf16, #tpu.memory_space<vmem>>, %arg2: memref<256x1024xbf16, #tpu.memory_space<vmem>>, %arg3: memref<1x1024xbf16, #tpu.memory_space<vmem>>, %arg4: memref<128x128xbf16, #tpu.memory_space<vmem>>, %arg5: memref<1x128xbf16, #tpu.memory_space<vmem>>, %arg6: memref<256x256xbf16, #tpu.memory_space<vmem>>, %arg7: memref<1x256xbf16, #tpu.memory_space<vmem>>, %arg8: memref<3x256x512xbf16, #tpu.memory_space<vmem>>, %arg9: memref<1x512xf32, #tpu.memory_space<vmem>>, %arg10: memref<512x128xbf16, #tpu.memory_space<vmem>>, %arg11: memref<1x128xf32, #tpu.memory_space<vmem>>, %arg12: memref<8x128xf32, #tpu.memory_space<vmem>>) attributes {dimension_semantics = [#tpu.dimension_semantics<parallel>], iteration_bounds = array<i64: 1>, scalar_prefetch = 0 : i64, scratch_operands = 0 : i64, tpu.core_type = #tpu.core_type<tc>, window_params = [{transform_indices = @transform_0, window_bounds = array<i64: 3, 1, 8, 256>}, {pipeline_mode = #tpu.pipeline_mode<synchronous>, transform_indices = @transform_1, window_bounds = array<i64: 256, 1024>}, {pipeline_mode = #tpu.pipeline_mode<synchronous>, transform_indices = @transform_2, window_bounds = array<i64: 1, 1024>}, {pipeline_mode = #tpu.pipeline_mode<synchronous>, transform_indices = @transform_3, window_bounds = array<i64: 128, 128>}, {pipeline_mode = #tpu.pipeline_mode<synchronous>, transform_indices = @transform_4, window_bounds = array<i64: 1, 128>}, {pipeline_mode = #tpu.pipeline_mode<synchronous>, transform_indices = @transform_5, window_bounds = array<i64: 256, 256>}, {pipeline_mode = #tpu.pipeline_mode<synchronous>, transform_indices = @transform_6, window_bounds = array<i64: 1, 256>}, {pipeline_mode = #tpu.pipeline_mode<synchronous>, transform_indices = @transform_7, window_bounds = array<i64: 3, 256, 512>}, {pipeline_mode = #tpu.pipeline_mode<synchronous>, transform_indices = @transform_8, window_bounds = array<i64: 1, 512>}, {pipeline_mode = #tpu.pipeline_mode<synchronous>, transform_indices = @transform_9, window_bounds = array<i64: 512, 128>}, {pipeline_mode = #tpu.pipeline_mode<synchronous>, transform_indices = @transform_10, window_bounds = array<i64: 1, 128>}, {transform_indices = @transform_11, window_bounds = array<i64: 8, 128>}]} {
    %c0 = arith.constant 0 : index
    %c0_0 = arith.constant 0 : index
    %0 = vector.load %arg2[%c0, %c0_0] : memref<256x1024xbf16, #tpu.memory_space<vmem>>, vector<256x1024xbf16>
    %c0_1 = arith.constant 0 : index
    %c0_2 = arith.constant 0 : index
    %1 = vector.load %arg3[%c0_1, %c0_2] : memref<1x1024xbf16, #tpu.memory_space<vmem>>, vector<1x1024xbf16>
    %c0_3 = arith.constant 0 : index
    %c0_4 = arith.constant 0 : index
    %2 = vector.load %arg4[%c0_3, %c0_4] : memref<128x128xbf16, #tpu.memory_space<vmem>>, vector<128x128xbf16>
    %c0_5 = arith.constant 0 : index
    %c0_6 = arith.constant 0 : index
    %3 = vector.load %arg5[%c0_5, %c0_6] : memref<1x128xbf16, #tpu.memory_space<vmem>>, vector<1x128xbf16>
    %c0_7 = arith.constant 0 : index
    %c0_8 = arith.constant 0 : index
    %4 = vector.load %arg6[%c0_7, %c0_8] : memref<256x256xbf16, #tpu.memory_space<vmem>>, vector<128x256xbf16>
    %c128 = arith.constant 128 : index
    %c0_9 = arith.constant 0 : index
    %5 = vector.load %arg6[%c128, %c0_9] : memref<256x256xbf16, #tpu.memory_space<vmem>>, vector<128x256xbf16>
    %c0_10 = arith.constant 0 : index
    %c0_11 = arith.constant 0 : index
    %6 = vector.load %arg7[%c0_10, %c0_11] : memref<1x256xbf16, #tpu.memory_space<vmem>>, vector<1x256xbf16>
    %c0_12 = arith.constant 0 : index
    %c0_13 = arith.constant 0 : index
    %7 = vector.load %arg9[%c0_12, %c0_13] : memref<1x512xf32, #tpu.memory_space<vmem>>, vector<1x512xf32>
    %c0_14 = arith.constant 0 : index
    %c0_15 = arith.constant 0 : index
    %c0_16 = arith.constant 0 : index
    %c0_17 = arith.constant 0 : index
    %8 = vector.load %arg1[%c0_14, %c0_15, %c0_16, %c0_17] : memref<3x1x8x256xbf16, #tpu.memory_space<vmem>>, vector<1x1x8x256xbf16>
    %9 = vector.shape_cast %8 : vector<1x1x8x256xbf16> to vector<8x256xbf16>
    %cst = arith.constant dense<0.000000e+00> : vector<8x1024xf32>
    %10 = tpu.matmul %9, %0, %cst {dimension_numbers = #tpu.dot_dimension_numbers<[1], [0], [0], [1], [0, 0, 1, 1], [], []>} : vector<8x256xbf16>, vector<256x1024xbf16>, vector<8x1024xf32> -> vector<8x1024xf32>
    %11 = arith.truncf %10 : vector<8x1024xf32> to vector<8x1024xbf16>
    %12 = vector.broadcast %1 : vector<1x1024xbf16> to vector<8x1024xbf16>
    %13 = arith.addf %11, %12 : vector<8x1024xbf16>
    %cst_18 = arith.constant 0.000000e+00 : bf16
    %14 = vector.broadcast %cst_18 : bf16 to vector<8x1024xbf16>
    %15 = arith.maximumf %13, %14 : vector<8x1024xbf16>
    %16 = vector.extract_strided_slice %15 {offsets = [0, 0], sizes = [8, 128], strides = [1, 1]} : vector<8x1024xbf16> to vector<8x128xbf16>
    %cst_19 = arith.constant dense<0.000000e+00> : vector<8x128xf32>
    %17 = tpu.matmul %16, %2, %cst_19 {dimension_numbers = #tpu.dot_dimension_numbers<[1], [0], [0], [1], [0, 0, 1, 1], [], []>} : vector<8x128xbf16>, vector<128x128xbf16>, vector<8x128xf32> -> vector<8x128xf32>
    %18 = arith.truncf %17 : vector<8x128xf32> to vector<8x128xbf16>
    %19 = vector.broadcast %3 : vector<1x128xbf16> to vector<8x128xbf16>
    %20 = arith.addf %18, %19 : vector<8x128xbf16>
    %cst_20 = arith.constant 0.000000e+00 : bf16
    %21 = vector.broadcast %cst_20 : bf16 to vector<8x128xbf16>
    %22 = arith.maximumf %20, %21 : vector<8x128xbf16>
    %23 = vector.extract_strided_slice %15 {offsets = [0, 128], sizes = [8, 128], strides = [1, 1]} : vector<8x1024xbf16> to vector<8x128xbf16>
    %cst_21 = arith.constant dense<0.000000e+00> : vector<8x128xf32>
    %24 = tpu.matmul %23, %2, %cst_21 {dimension_numbers = #tpu.dot_dimension_numbers<[1], [0], [0], [1], [0, 0, 1, 1], [], []>} : vector<8x128xbf16>, vector<128x128xbf16>, vector<8x128xf32> -> vector<8x128xf32>
    %25 = arith.truncf %24 : vector<8x128xf32> to vector<8x128xbf16>
    %26 = vector.broadcast %3 : vector<1x128xbf16> to vector<8x128xbf16>
    %27 = arith.addf %25, %26 : vector<8x128xbf16>
    %cst_22 = arith.constant 0.000000e+00 : bf16
    %28 = vector.broadcast %cst_22 : bf16 to vector<8x128xbf16>
    %29 = arith.maximumf %27, %28 : vector<8x128xbf16>
    %30 = arith.maximumf %22, %29 : vector<8x128xbf16>
    %31 = vector.extract_strided_slice %15 {offsets = [0, 256], sizes = [8, 128], strides = [1, 1]} : vector<8x1024xbf16> to vector<8x128xbf16>
    %cst_23 = arith.constant dense<0.000000e+00> : vector<8x128xf32>
    %32 = tpu.matmul %31, %2, %cst_23 {dimension_numbers = #tpu.dot_dimension_numbers<[1], [0], [0], [1], [0, 0, 1, 1], [], []>} : vector<8x128xbf16>, vector<128x128xbf16>, vector<8x128xf32> -> vector<8x128xf32>
    %33 = arith.truncf %32 : vector<8x128xf32> to vector<8x128xbf16>
    %34 = vector.broadcast %3 : vector<1x128xbf16> to vector<8x128xbf16>
    %35 = arith.addf %33, %34 : vector<8x128xbf16>
    %cst_24 = arith.constant 0.000000e+00 : bf16
    %36 = vector.broadcast %cst_24 : bf16 to vector<8x128xbf16>
    %37 = arith.maximumf %35, %36 : vector<8x128xbf16>
    %38 = vector.extract_strided_slice %15 {offsets = [0, 384], sizes = [8, 128], strides = [1, 1]} : vector<8x1024xbf16> to vector<8x128xbf16>
    %cst_25 = arith.constant dense<0.000000e+00> : vector<8x128xf32>
    %39 = tpu.matmul %38, %2, %cst_25 {dimension_numbers = #tpu.dot_dimension_numbers<[1], [0], [0], [1], [0, 0, 1, 1], [], []>} : vector<8x128xbf16>, vector<128x128xbf16>, vector<8x128xf32> -> vector<8x128xf32>
    %40 = arith.truncf %39 : vector<8x128xf32> to vector<8x128xbf16>
    %41 = vector.broadcast %3 : vector<1x128xbf16> to vector<8x128xbf16>
    %42 = arith.addf %40, %41 : vector<8x128xbf16>
    %cst_26 = arith.constant 0.000000e+00 : bf16
    %43 = vector.broadcast %cst_26 : bf16 to vector<8x128xbf16>
    %44 = arith.maximumf %42, %43 : vector<8x128xbf16>
    %45 = arith.maximumf %37, %44 : vector<8x128xbf16>
    %cst_27 = arith.constant dense<0.000000e+00> : vector<8x256xf32>
    %46 = tpu.matmul %30, %4, %cst_27 {dimension_numbers = #tpu.dot_dimension_numbers<[1], [0], [0], [1], [0, 0, 1, 1], [], []>} : vector<8x128xbf16>, vector<128x256xbf16>, vector<8x256xf32> -> vector<8x256xf32>
    %cst_28 = arith.constant dense<0.000000e+00> : vector<8x256xf32>
    %47 = tpu.matmul %45, %5, %cst_28 {dimension_numbers = #tpu.dot_dimension_numbers<[1], [0], [0], [1], [0, 0, 1, 1], [], []>} : vector<8x128xbf16>, vector<128x256xbf16>, vector<8x256xf32> -> vector<8x256xf32>
    %48 = arith.addf %46, %47 : vector<8x256xf32>
    %49 = arith.truncf %48 : vector<8x256xf32> to vector<8x256xbf16>
    %50 = vector.broadcast %6 : vector<1x256xbf16> to vector<8x256xbf16>
    %51 = arith.addf %49, %50 : vector<8x256xbf16>
    %cst_29 = arith.constant 0.000000e+00 : bf16
    %52 = vector.broadcast %cst_29 : bf16 to vector<8x256xbf16>
    %53 = arith.maximumf %51, %52 : vector<8x256xbf16>
    %54 = vector.extract_strided_slice %15 {offsets = [0, 512], sizes = [8, 128], strides = [1, 1]} : vector<8x1024xbf16> to vector<8x128xbf16>
    %cst_30 = arith.constant dense<0.000000e+00> : vector<8x128xf32>
    %55 = tpu.matmul %54, %2, %cst_30 {dimension_numbers = #tpu.dot_dimension_numbers<[1], [0], [0], [1], [0, 0, 1, 1], [], []>} : vector<8x128xbf16>, vector<128x128xbf16>, vector<8x128xf32> -> vector<8x128xf32>
    %56 = arith.truncf %55 : vector<8x128xf32> to vector<8x128xbf16>
    %57 = vector.broadcast %3 : vector<1x128xbf16> to vector<8x128xbf16>
    %58 = arith.addf %56, %57 : vector<8x128xbf16>
    %cst_31 = arith.constant 0.000000e+00 : bf16
    %59 = vector.broadcast %cst_31 : bf16 to vector<8x128xbf16>
    %60 = arith.maximumf %58, %59 : vector<8x128xbf16>
    %61 = vector.extract_strided_slice %15 {offsets = [0, 640], sizes = [8, 128], strides = [1, 1]} : vector<8x1024xbf16> to vector<8x128xbf16>
    %cst_32 = arith.constant dense<0.000000e+00> : vector<8x128xf32>
    %62 = tpu.matmul %61, %2, %cst_32 {dimension_numbers = #tpu.dot_dimension_numbers<[1], [0], [0], [1], [0, 0, 1, 1], [], []>} : vector<8x128xbf16>, vector<128x128xbf16>, vector<8x128xf32> -> vector<8x128xf32>
    %63 = arith.truncf %62 : vector<8x128xf32> to vector<8x128xbf16>
    %64 = vector.broadcast %3 : vector<1x128xbf16> to vector<8x128xbf16>
    %65 = arith.addf %63, %64 : vector<8x128xbf16>
    %cst_33 = arith.constant 0.000000e+00 : bf16
    %66 = vector.broadcast %cst_33 : bf16 to vector<8x128xbf16>
    %67 = arith.maximumf %65, %66 : vector<8x128xbf16>
    %68 = arith.maximumf %60, %67 : vector<8x128xbf16>
    %69 = vector.extract_strided_slice %15 {offsets = [0, 768], sizes = [8, 128], strides = [1, 1]} : vector<8x1024xbf16> to vector<8x128xbf16>
    %cst_34 = arith.constant dense<0.000000e+00> : vector<8x128xf32>
    %70 = tpu.matmul %69, %2, %cst_34 {dimension_numbers = #tpu.dot_dimension_numbers<[1], [0], [0], [1], [0, 0, 1, 1], [], []>} : vector<8x128xbf16>, vector<128x128xbf16>, vector<8x128xf32> -> vector<8x128xf32>
    %71 = arith.truncf %70 : vector<8x128xf32> to vector<8x128xbf16>
    %72 = vector.broadcast %3 : vector<1x128xbf16> to vector<8x128xbf16>
    %73 = arith.addf %71, %72 : vector<8x128xbf16>
    %cst_35 = arith.constant 0.000000e+00 : bf16
    %74 = vector.broadcast %cst_35 : bf16 to vector<8x128xbf16>
    %75 = arith.maximumf %73, %74 : vector<8x128xbf16>
    %76 = vector.extract_strided_slice %15 {offsets = [0, 896], sizes = [8, 128], strides = [1, 1]} : vector<8x1024xbf16> to vector<8x128xbf16>
    %cst_36 = arith.constant dense<0.000000e+00> : vector<8x128xf32>
    %77 = tpu.matmul %76, %2, %cst_36 {dimension_numbers = #tpu.dot_dimension_numbers<[1], [0], [0], [1], [0, 0, 1, 1], [], []>} : vector<8x128xbf16>, vector<128x128xbf16>, vector<8x128xf32> -> vector<8x128xf32>
    %78 = arith.truncf %77 : vector<8x128xf32> to vector<8x128xbf16>
    %79 = vector.broadcast %3 : vector<1x128xbf16> to vector<8x128xbf16>
    %80 = arith.addf %78, %79 : vector<8x128xbf16>
    %cst_37 = arith.constant 0.000000e+00 : bf16
    %81 = vector.broadcast %cst_37 : bf16 to vector<8x128xbf16>
    %82 = arith.maximumf %80, %81 : vector<8x128xbf16>
    %83 = arith.maximumf %75, %82 : vector<8x128xbf16>
    %cst_38 = arith.constant dense<0.000000e+00> : vector<8x256xf32>
    %84 = tpu.matmul %68, %4, %cst_38 {dimension_numbers = #tpu.dot_dimension_numbers<[1], [0], [0], [1], [0, 0, 1, 1], [], []>} : vector<8x128xbf16>, vector<128x256xbf16>, vector<8x256xf32> -> vector<8x256xf32>
    %cst_39 = arith.constant dense<0.000000e+00> : vector<8x256xf32>
    %85 = tpu.matmul %83, %5, %cst_39 {dimension_numbers = #tpu.dot_dimension_numbers<[1], [0], [0], [1], [0, 0, 1, 1], [], []>} : vector<8x128xbf16>, vector<128x256xbf16>, vector<8x256xf32> -> vector<8x256xf32>
    %86 = arith.addf %84, %85 : vector<8x256xf32>
    %87 = arith.truncf %86 : vector<8x256xf32> to vector<8x256xbf16>
    %88 = vector.broadcast %6 : vector<1x256xbf16> to vector<8x256xbf16>
    %89 = arith.addf %87, %88 : vector<8x256xbf16>
    %cst_40 = arith.constant 0.000000e+00 : bf16
    %90 = vector.broadcast %cst_40 : bf16 to vector<8x256xbf16>
    %91 = arith.maximumf %89, %90 : vector<8x256xbf16>
    %92 = arith.maximumf %53, %91 : vector<8x256xbf16>
    %c0_41 = arith.constant 0 : index
    %c0_42 = arith.constant 0 : index
    %c0_43 = arith.constant 0 : index
    %93 = vector.load %arg8[%c0_41, %c0_42, %c0_43] : memref<3x256x512xbf16, #tpu.memory_space<vmem>>, vector<1x256x512xbf16>
    %94 = vector.shape_cast %93 : vector<1x256x512xbf16> to vector<256x512xbf16>
    %cst_44 = arith.constant dense<0.000000e+00> : vector<8x512xf32>
    %95 = tpu.matmul %92, %94, %cst_44 {dimension_numbers = #tpu.dot_dimension_numbers<[1], [0], [0], [1], [0, 0, 1, 1], [], []>} : vector<8x256xbf16>, vector<256x512xbf16>, vector<8x512xf32> -> vector<8x512xf32>
    %96 = vector.broadcast %7 : vector<1x512xf32> to vector<8x512xf32>
    %97 = arith.addf %96, %95 : vector<8x512xf32>
    %c1 = arith.constant 1 : index
    %c0_45 = arith.constant 0 : index
    %c0_46 = arith.constant 0 : index
    %c0_47 = arith.constant 0 : index
    %98 = vector.load %arg1[%c1, %c0_45, %c0_46, %c0_47] : memref<3x1x8x256xbf16, #tpu.memory_space<vmem>>, vector<1x1x8x256xbf16>
    %99 = vector.shape_cast %98 : vector<1x1x8x256xbf16> to vector<8x256xbf16>
    %cst_48 = arith.constant dense<0.000000e+00> : vector<8x1024xf32>
    %100 = tpu.matmul %99, %0, %cst_48 {dimension_numbers = #tpu.dot_dimension_numbers<[1], [0], [0], [1], [0, 0, 1, 1], [], []>} : vector<8x256xbf16>, vector<256x1024xbf16>, vector<8x1024xf32> -> vector<8x1024xf32>
    %101 = arith.truncf %100 : vector<8x1024xf32> to vector<8x1024xbf16>
    %102 = vector.broadcast %1 : vector<1x1024xbf16> to vector<8x1024xbf16>
    %103 = arith.addf %101, %102 : vector<8x1024xbf16>
    %cst_49 = arith.constant 0.000000e+00 : bf16
    %104 = vector.broadcast %cst_49 : bf16 to vector<8x1024xbf16>
    %105 = arith.maximumf %103, %104 : vector<8x1024xbf16>
    %106 = vector.extract_strided_slice %105 {offsets = [0, 0], sizes = [8, 128], strides = [1, 1]} : vector<8x1024xbf16> to vector<8x128xbf16>
    %cst_50 = arith.constant dense<0.000000e+00> : vector<8x128xf32>
    %107 = tpu.matmul %106, %2, %cst_50 {dimension_numbers = #tpu.dot_dimension_numbers<[1], [0], [0], [1], [0, 0, 1, 1], [], []>} : vector<8x128xbf16>, vector<128x128xbf16>, vector<8x128xf32> -> vector<8x128xf32>
    %108 = arith.truncf %107 : vector<8x128xf32> to vector<8x128xbf16>
    %109 = vector.broadcast %3 : vector<1x128xbf16> to vector<8x128xbf16>
    %110 = arith.addf %108, %109 : vector<8x128xbf16>
    %cst_51 = arith.constant 0.000000e+00 : bf16
    %111 = vector.broadcast %cst_51 : bf16 to vector<8x128xbf16>
    %112 = arith.maximumf %110, %111 : vector<8x128xbf16>
    %113 = vector.extract_strided_slice %105 {offsets = [0, 128], sizes = [8, 128], strides = [1, 1]} : vector<8x1024xbf16> to vector<8x128xbf16>
    %cst_52 = arith.constant dense<0.000000e+00> : vector<8x128xf32>
    %114 = tpu.matmul %113, %2, %cst_52 {dimension_numbers = #tpu.dot_dimension_numbers<[1], [0], [0], [1], [0, 0, 1, 1], [], []>} : vector<8x128xbf16>, vector<128x128xbf16>, vector<8x128xf32> -> vector<8x128xf32>
    %115 = arith.truncf %114 : vector<8x128xf32> to vector<8x128xbf16>
    %116 = vector.broadcast %3 : vector<1x128xbf16> to vector<8x128xbf16>
    %117 = arith.addf %115, %116 : vector<8x128xbf16>
    %cst_53 = arith.constant 0.000000e+00 : bf16
    %118 = vector.broadcast %cst_53 : bf16 to vector<8x128xbf16>
    %119 = arith.maximumf %117, %118 : vector<8x128xbf16>
    %120 = arith.maximumf %112, %119 : vector<8x128xbf16>
    %121 = vector.extract_strided_slice %105 {offsets = [0, 256], sizes = [8, 128], strides = [1, 1]} : vector<8x1024xbf16> to vector<8x128xbf16>
    %cst_54 = arith.constant dense<0.000000e+00> : vector<8x128xf32>
    %122 = tpu.matmul %121, %2, %cst_54 {dimension_numbers = #tpu.dot_dimension_numbers<[1], [0], [0], [1], [0, 0, 1, 1], [], []>} : vector<8x128xbf16>, vector<128x128xbf16>, vector<8x128xf32> -> vector<8x128xf32>
    %123 = arith.truncf %122 : vector<8x128xf32> to vector<8x128xbf16>
    %124 = vector.broadcast %3 : vector<1x128xbf16> to vector<8x128xbf16>
    %125 = arith.addf %123, %124 : vector<8x128xbf16>
    %cst_55 = arith.constant 0.000000e+00 : bf16
    %126 = vector.broadcast %cst_55 : bf16 to vector<8x128xbf16>
    %127 = arith.maximumf %125, %126 : vector<8x128xbf16>
    %128 = vector.extract_strided_slice %105 {offsets = [0, 384], sizes = [8, 128], strides = [1, 1]} : vector<8x1024xbf16> to vector<8x128xbf16>
    %cst_56 = arith.constant dense<0.000000e+00> : vector<8x128xf32>
    %129 = tpu.matmul %128, %2, %cst_56 {dimension_numbers = #tpu.dot_dimension_numbers<[1], [0], [0], [1], [0, 0, 1, 1], [], []>} : vector<8x128xbf16>, vector<128x128xbf16>, vector<8x128xf32> -> vector<8x128xf32>
    %130 = arith.truncf %129 : vector<8x128xf32> to vector<8x128xbf16>
    %131 = vector.broadcast %3 : vector<1x128xbf16> to vector<8x128xbf16>
    %132 = arith.addf %130, %131 : vector<8x128xbf16>
    %cst_57 = arith.constant 0.000000e+00 : bf16
    %133 = vector.broadcast %cst_57 : bf16 to vector<8x128xbf16>
    %134 = arith.maximumf %132, %133 : vector<8x128xbf16>
    %135 = arith.maximumf %127, %134 : vector<8x128xbf16>
    %cst_58 = arith.constant dense<0.000000e+00> : vector<8x256xf32>
    %136 = tpu.matmul %120, %4, %cst_58 {dimension_numbers = #tpu.dot_dimension_numbers<[1], [0], [0], [1], [0, 0, 1, 1], [], []>} : vector<8x128xbf16>, vector<128x256xbf16>, vector<8x256xf32> -> vector<8x256xf32>
    %cst_59 = arith.constant dense<0.000000e+00> : vector<8x256xf32>
    %137 = tpu.matmul %135, %5, %cst_59 {dimension_numbers = #tpu.dot_dimension_numbers<[1], [0], [0], [1], [0, 0, 1, 1], [], []>} : vector<8x128xbf16>, vector<128x256xbf16>, vector<8x256xf32> -> vector<8x256xf32>
    %138 = arith.addf %136, %137 : vector<8x256xf32>
    %139 = arith.truncf %138 : vector<8x256xf32> to vector<8x256xbf16>
    %140 = vector.broadcast %6 : vector<1x256xbf16> to vector<8x256xbf16>
    %141 = arith.addf %139, %140 : vector<8x256xbf16>
    %cst_60 = arith.constant 0.000000e+00 : bf16
    %142 = vector.broadcast %cst_60 : bf16 to vector<8x256xbf16>
    %143 = arith.maximumf %141, %142 : vector<8x256xbf16>
    %144 = vector.extract_strided_slice %105 {offsets = [0, 512], sizes = [8, 128], strides = [1, 1]} : vector<8x1024xbf16> to vector<8x128xbf16>
    %cst_61 = arith.constant dense<0.000000e+00> : vector<8x128xf32>
    %145 = tpu.matmul %144, %2, %cst_61 {dimension_numbers = #tpu.dot_dimension_numbers<[1], [0], [0], [1], [0, 0, 1, 1], [], []>} : vector<8x128xbf16>, vector<128x128xbf16>, vector<8x128xf32> -> vector<8x128xf32>
    %146 = arith.truncf %145 : vector<8x128xf32> to vector<8x128xbf16>
    %147 = vector.broadcast %3 : vector<1x128xbf16> to vector<8x128xbf16>
    %148 = arith.addf %146, %147 : vector<8x128xbf16>
    %cst_62 = arith.constant 0.000000e+00 : bf16
    %149 = vector.broadcast %cst_62 : bf16 to vector<8x128xbf16>
    %150 = arith.maximumf %148, %149 : vector<8x128xbf16>
    %151 = vector.extract_strided_slice %105 {offsets = [0, 640], sizes = [8, 128], strides = [1, 1]} : vector<8x1024xbf16> to vector<8x128xbf16>
    %cst_63 = arith.constant dense<0.000000e+00> : vector<8x128xf32>
    %152 = tpu.matmul %151, %2, %cst_63 {dimension_numbers = #tpu.dot_dimension_numbers<[1], [0], [0], [1], [0, 0, 1, 1], [], []>} : vector<8x128xbf16>, vector<128x128xbf16>, vector<8x128xf32> -> vector<8x128xf32>
    %153 = arith.truncf %152 : vector<8x128xf32> to vector<8x128xbf16>
    %154 = vector.broadcast %3 : vector<1x128xbf16> to vector<8x128xbf16>
    %155 = arith.addf %153, %154 : vector<8x128xbf16>
    %cst_64 = arith.constant 0.000000e+00 : bf16
    %156 = vector.broadcast %cst_64 : bf16 to vector<8x128xbf16>
    %157 = arith.maximumf %155, %156 : vector<8x128xbf16>
    %158 = arith.maximumf %150, %157 : vector<8x128xbf16>
    %159 = vector.extract_strided_slice %105 {offsets = [0, 768], sizes = [8, 128], strides = [1, 1]} : vector<8x1024xbf16> to vector<8x128xbf16>
    %cst_65 = arith.constant dense<0.000000e+00> : vector<8x128xf32>
    %160 = tpu.matmul %159, %2, %cst_65 {dimension_numbers = #tpu.dot_dimension_numbers<[1], [0], [0], [1], [0, 0, 1, 1], [], []>} : vector<8x128xbf16>, vector<128x128xbf16>, vector<8x128xf32> -> vector<8x128xf32>
    %161 = arith.truncf %160 : vector<8x128xf32> to vector<8x128xbf16>
    %162 = vector.broadcast %3 : vector<1x128xbf16> to vector<8x128xbf16>
    %163 = arith.addf %161, %162 : vector<8x128xbf16>
    %cst_66 = arith.constant 0.000000e+00 : bf16
    %164 = vector.broadcast %cst_66 : bf16 to vector<8x128xbf16>
    %165 = arith.maximumf %163, %164 : vector<8x128xbf16>
    %166 = vector.extract_strided_slice %105 {offsets = [0, 896], sizes = [8, 128], strides = [1, 1]} : vector<8x1024xbf16> to vector<8x128xbf16>
    %cst_67 = arith.constant dense<0.000000e+00> : vector<8x128xf32>
    %167 = tpu.matmul %166, %2, %cst_67 {dimension_numbers = #tpu.dot_dimension_numbers<[1], [0], [0], [1], [0, 0, 1, 1], [], []>} : vector<8x128xbf16>, vector<128x128xbf16>, vector<8x128xf32> -> vector<8x128xf32>
    %168 = arith.truncf %167 : vector<8x128xf32> to vector<8x128xbf16>
    %169 = vector.broadcast %3 : vector<1x128xbf16> to vector<8x128xbf16>
    %170 = arith.addf %168, %169 : vector<8x128xbf16>
    %cst_68 = arith.constant 0.000000e+00 : bf16
    %171 = vector.broadcast %cst_68 : bf16 to vector<8x128xbf16>
    %172 = arith.maximumf %170, %171 : vector<8x128xbf16>
    %173 = arith.maximumf %165, %172 : vector<8x128xbf16>
    %cst_69 = arith.constant dense<0.000000e+00> : vector<8x256xf32>
    %174 = tpu.matmul %158, %4, %cst_69 {dimension_numbers = #tpu.dot_dimension_numbers<[1], [0], [0], [1], [0, 0, 1, 1], [], []>} : vector<8x128xbf16>, vector<128x256xbf16>, vector<8x256xf32> -> vector<8x256xf32>
    %cst_70 = arith.constant dense<0.000000e+00> : vector<8x256xf32>
    %175 = tpu.matmul %173, %5, %cst_70 {dimension_numbers = #tpu.dot_dimension_numbers<[1], [0], [0], [1], [0, 0, 1, 1], [], []>} : vector<8x128xbf16>, vector<128x256xbf16>, vector<8x256xf32> -> vector<8x256xf32>
    %176 = arith.addf %174, %175 : vector<8x256xf32>
    %177 = arith.truncf %176 : vector<8x256xf32> to vector<8x256xbf16>
    %178 = vector.broadcast %6 : vector<1x256xbf16> to vector<8x256xbf16>
    %179 = arith.addf %177, %178 : vector<8x256xbf16>
    %cst_71 = arith.constant 0.000000e+00 : bf16
    %180 = vector.broadcast %cst_71 : bf16 to vector<8x256xbf16>
    %181 = arith.maximumf %179, %180 : vector<8x256xbf16>
    %182 = arith.maximumf %143, %181 : vector<8x256xbf16>
    %c1_72 = arith.constant 1 : index
    %c0_73 = arith.constant 0 : index
    %c0_74 = arith.constant 0 : index
    %183 = vector.load %arg8[%c1_72, %c0_73, %c0_74] : memref<3x256x512xbf16, #tpu.memory_space<vmem>>, vector<1x256x512xbf16>
    %184 = vector.shape_cast %183 : vector<1x256x512xbf16> to vector<256x512xbf16>
    %cst_75 = arith.constant dense<0.000000e+00> : vector<8x512xf32>
    %185 = tpu.matmul %182, %184, %cst_75 {dimension_numbers = #tpu.dot_dimension_numbers<[1], [0], [0], [1], [0, 0, 1, 1], [], []>} : vector<8x256xbf16>, vector<256x512xbf16>, vector<8x512xf32> -> vector<8x512xf32>
    %186 = arith.addf %97, %185 : vector<8x512xf32>
    %c2 = arith.constant 2 : index
    %c0_76 = arith.constant 0 : index
    %c0_77 = arith.constant 0 : index
    %c0_78 = arith.constant 0 : index
    %187 = vector.load %arg1[%c2, %c0_76, %c0_77, %c0_78] : memref<3x1x8x256xbf16, #tpu.memory_space<vmem>>, vector<1x1x8x256xbf16>
    %188 = vector.shape_cast %187 : vector<1x1x8x256xbf16> to vector<8x256xbf16>
    %cst_79 = arith.constant dense<0.000000e+00> : vector<8x1024xf32>
    %189 = tpu.matmul %188, %0, %cst_79 {dimension_numbers = #tpu.dot_dimension_numbers<[1], [0], [0], [1], [0, 0, 1, 1], [], []>} : vector<8x256xbf16>, vector<256x1024xbf16>, vector<8x1024xf32> -> vector<8x1024xf32>
    %190 = arith.truncf %189 : vector<8x1024xf32> to vector<8x1024xbf16>
    %191 = vector.broadcast %1 : vector<1x1024xbf16> to vector<8x1024xbf16>
    %192 = arith.addf %190, %191 : vector<8x1024xbf16>
    %cst_80 = arith.constant 0.000000e+00 : bf16
    %193 = vector.broadcast %cst_80 : bf16 to vector<8x1024xbf16>
    %194 = arith.maximumf %192, %193 : vector<8x1024xbf16>
    %195 = vector.extract_strided_slice %194 {offsets = [0, 0], sizes = [8, 128], strides = [1, 1]} : vector<8x1024xbf16> to vector<8x128xbf16>
    %cst_81 = arith.constant dense<0.000000e+00> : vector<8x128xf32>
    %196 = tpu.matmul %195, %2, %cst_81 {dimension_numbers = #tpu.dot_dimension_numbers<[1], [0], [0], [1], [0, 0, 1, 1], [], []>} : vector<8x128xbf16>, vector<128x128xbf16>, vector<8x128xf32> -> vector<8x128xf32>
    %197 = arith.truncf %196 : vector<8x128xf32> to vector<8x128xbf16>
    %198 = vector.broadcast %3 : vector<1x128xbf16> to vector<8x128xbf16>
    %199 = arith.addf %197, %198 : vector<8x128xbf16>
    %cst_82 = arith.constant 0.000000e+00 : bf16
    %200 = vector.broadcast %cst_82 : bf16 to vector<8x128xbf16>
    %201 = arith.maximumf %199, %200 : vector<8x128xbf16>
    %202 = vector.extract_strided_slice %194 {offsets = [0, 128], sizes = [8, 128], strides = [1, 1]} : vector<8x1024xbf16> to vector<8x128xbf16>
    %cst_83 = arith.constant dense<0.000000e+00> : vector<8x128xf32>
    %203 = tpu.matmul %202, %2, %cst_83 {dimension_numbers = #tpu.dot_dimension_numbers<[1], [0], [0], [1], [0, 0, 1, 1], [], []>} : vector<8x128xbf16>, vector<128x128xbf16>, vector<8x128xf32> -> vector<8x128xf32>
    %204 = arith.truncf %203 : vector<8x128xf32> to vector<8x128xbf16>
    %205 = vector.broadcast %3 : vector<1x128xbf16> to vector<8x128xbf16>
    %206 = arith.addf %204, %205 : vector<8x128xbf16>
    %cst_84 = arith.constant 0.000000e+00 : bf16
    %207 = vector.broadcast %cst_84 : bf16 to vector<8x128xbf16>
    %208 = arith.maximumf %206, %207 : vector<8x128xbf16>
    %209 = arith.maximumf %201, %208 : vector<8x128xbf16>
    %210 = vector.extract_strided_slice %194 {offsets = [0, 256], sizes = [8, 128], strides = [1, 1]} : vector<8x1024xbf16> to vector<8x128xbf16>
    %cst_85 = arith.constant dense<0.000000e+00> : vector<8x128xf32>
    %211 = tpu.matmul %210, %2, %cst_85 {dimension_numbers = #tpu.dot_dimension_numbers<[1], [0], [0], [1], [0, 0, 1, 1], [], []>} : vector<8x128xbf16>, vector<128x128xbf16>, vector<8x128xf32> -> vector<8x128xf32>
    %212 = arith.truncf %211 : vector<8x128xf32> to vector<8x128xbf16>
    %213 = vector.broadcast %3 : vector<1x128xbf16> to vector<8x128xbf16>
    %214 = arith.addf %212, %213 : vector<8x128xbf16>
    %cst_86 = arith.constant 0.000000e+00 : bf16
    %215 = vector.broadcast %cst_86 : bf16 to vector<8x128xbf16>
    %216 = arith.maximumf %214, %215 : vector<8x128xbf16>
    %217 = vector.extract_strided_slice %194 {offsets = [0, 384], sizes = [8, 128], strides = [1, 1]} : vector<8x1024xbf16> to vector<8x128xbf16>
    %cst_87 = arith.constant dense<0.000000e+00> : vector<8x128xf32>
    %218 = tpu.matmul %217, %2, %cst_87 {dimension_numbers = #tpu.dot_dimension_numbers<[1], [0], [0], [1], [0, 0, 1, 1], [], []>} : vector<8x128xbf16>, vector<128x128xbf16>, vector<8x128xf32> -> vector<8x128xf32>
    %219 = arith.truncf %218 : vector<8x128xf32> to vector<8x128xbf16>
    %220 = vector.broadcast %3 : vector<1x128xbf16> to vector<8x128xbf16>
    %221 = arith.addf %219, %220 : vector<8x128xbf16>
    %cst_88 = arith.constant 0.000000e+00 : bf16
    %222 = vector.broadcast %cst_88 : bf16 to vector<8x128xbf16>
    %223 = arith.maximumf %221, %222 : vector<8x128xbf16>
    %224 = arith.maximumf %216, %223 : vector<8x128xbf16>
    %cst_89 = arith.constant dense<0.000000e+00> : vector<8x256xf32>
    %225 = tpu.matmul %209, %4, %cst_89 {dimension_numbers = #tpu.dot_dimension_numbers<[1], [0], [0], [1], [0, 0, 1, 1], [], []>} : vector<8x128xbf16>, vector<128x256xbf16>, vector<8x256xf32> -> vector<8x256xf32>
    %cst_90 = arith.constant dense<0.000000e+00> : vector<8x256xf32>
    %226 = tpu.matmul %224, %5, %cst_90 {dimension_numbers = #tpu.dot_dimension_numbers<[1], [0], [0], [1], [0, 0, 1, 1], [], []>} : vector<8x128xbf16>, vector<128x256xbf16>, vector<8x256xf32> -> vector<8x256xf32>
    %227 = arith.addf %225, %226 : vector<8x256xf32>
    %228 = arith.truncf %227 : vector<8x256xf32> to vector<8x256xbf16>
    %229 = vector.broadcast %6 : vector<1x256xbf16> to vector<8x256xbf16>
    %230 = arith.addf %228, %229 : vector<8x256xbf16>
    %cst_91 = arith.constant 0.000000e+00 : bf16
    %231 = vector.broadcast %cst_91 : bf16 to vector<8x256xbf16>
    %232 = arith.maximumf %230, %231 : vector<8x256xbf16>
    %233 = vector.extract_strided_slice %194 {offsets = [0, 512], sizes = [8, 128], strides = [1, 1]} : vector<8x1024xbf16> to vector<8x128xbf16>
    %cst_92 = arith.constant dense<0.000000e+00> : vector<8x128xf32>
    %234 = tpu.matmul %233, %2, %cst_92 {dimension_numbers = #tpu.dot_dimension_numbers<[1], [0], [0], [1], [0, 0, 1, 1], [], []>} : vector<8x128xbf16>, vector<128x128xbf16>, vector<8x128xf32> -> vector<8x128xf32>
    %235 = arith.truncf %234 : vector<8x128xf32> to vector<8x128xbf16>
    %236 = vector.broadcast %3 : vector<1x128xbf16> to vector<8x128xbf16>
    %237 = arith.addf %235, %236 : vector<8x128xbf16>
    %cst_93 = arith.constant 0.000000e+00 : bf16
    %238 = vector.broadcast %cst_93 : bf16 to vector<8x128xbf16>
    %239 = arith.maximumf %237, %238 : vector<8x128xbf16>
    %240 = vector.extract_strided_slice %194 {offsets = [0, 640], sizes = [8, 128], strides = [1, 1]} : vector<8x1024xbf16> to vector<8x128xbf16>
    %cst_94 = arith.constant dense<0.000000e+00> : vector<8x128xf32>
    %241 = tpu.matmul %240, %2, %cst_94 {dimension_numbers = #tpu.dot_dimension_numbers<[1], [0], [0], [1], [0, 0, 1, 1], [], []>} : vector<8x128xbf16>, vector<128x128xbf16>, vector<8x128xf32> -> vector<8x128xf32>
    %242 = arith.truncf %241 : vector<8x128xf32> to vector<8x128xbf16>
    %243 = vector.broadcast %3 : vector<1x128xbf16> to vector<8x128xbf16>
    %244 = arith.addf %242, %243 : vector<8x128xbf16>
    %cst_95 = arith.constant 0.000000e+00 : bf16
    %245 = vector.broadcast %cst_95 : bf16 to vector<8x128xbf16>
    %246 = arith.maximumf %244, %245 : vector<8x128xbf16>
    %247 = arith.maximumf %239, %246 : vector<8x128xbf16>
    %248 = vector.extract_strided_slice %194 {offsets = [0, 768], sizes = [8, 128], strides = [1, 1]} : vector<8x1024xbf16> to vector<8x128xbf16>
    %cst_96 = arith.constant dense<0.000000e+00> : vector<8x128xf32>
    %249 = tpu.matmul %248, %2, %cst_96 {dimension_numbers = #tpu.dot_dimension_numbers<[1], [0], [0], [1], [0, 0, 1, 1], [], []>} : vector<8x128xbf16>, vector<128x128xbf16>, vector<8x128xf32> -> vector<8x128xf32>
    %250 = arith.truncf %249 : vector<8x128xf32> to vector<8x128xbf16>
    %251 = vector.broadcast %3 : vector<1x128xbf16> to vector<8x128xbf16>
    %252 = arith.addf %250, %251 : vector<8x128xbf16>
    %cst_97 = arith.constant 0.000000e+00 : bf16
    %253 = vector.broadcast %cst_97 : bf16 to vector<8x128xbf16>
    %254 = arith.maximumf %252, %253 : vector<8x128xbf16>
    %255 = vector.extract_strided_slice %194 {offsets = [0, 896], sizes = [8, 128], strides = [1, 1]} : vector<8x1024xbf16> to vector<8x128xbf16>
    %cst_98 = arith.constant dense<0.000000e+00> : vector<8x128xf32>
    %256 = tpu.matmul %255, %2, %cst_98 {dimension_numbers = #tpu.dot_dimension_numbers<[1], [0], [0], [1], [0, 0, 1, 1], [], []>} : vector<8x128xbf16>, vector<128x128xbf16>, vector<8x128xf32> -> vector<8x128xf32>
    %257 = arith.truncf %256 : vector<8x128xf32> to vector<8x128xbf16>
    %258 = vector.broadcast %3 : vector<1x128xbf16> to vector<8x128xbf16>
    %259 = arith.addf %257, %258 : vector<8x128xbf16>
    %cst_99 = arith.constant 0.000000e+00 : bf16
    %260 = vector.broadcast %cst_99 : bf16 to vector<8x128xbf16>
    %261 = arith.maximumf %259, %260 : vector<8x128xbf16>
    %262 = arith.maximumf %254, %261 : vector<8x128xbf16>
    %cst_100 = arith.constant dense<0.000000e+00> : vector<8x256xf32>
    %263 = tpu.matmul %247, %4, %cst_100 {dimension_numbers = #tpu.dot_dimension_numbers<[1], [0], [0], [1], [0, 0, 1, 1], [], []>} : vector<8x128xbf16>, vector<128x256xbf16>, vector<8x256xf32> -> vector<8x256xf32>
    %cst_101 = arith.constant dense<0.000000e+00> : vector<8x256xf32>
    %264 = tpu.matmul %262, %5, %cst_101 {dimension_numbers = #tpu.dot_dimension_numbers<[1], [0], [0], [1], [0, 0, 1, 1], [], []>} : vector<8x128xbf16>, vector<128x256xbf16>, vector<8x256xf32> -> vector<8x256xf32>
    %265 = arith.addf %263, %264 : vector<8x256xf32>
    %266 = arith.truncf %265 : vector<8x256xf32> to vector<8x256xbf16>
    %267 = vector.broadcast %6 : vector<1x256xbf16> to vector<8x256xbf16>
    %268 = arith.addf %266, %267 : vector<8x256xbf16>
    %cst_102 = arith.constant 0.000000e+00 : bf16
    %269 = vector.broadcast %cst_102 : bf16 to vector<8x256xbf16>
    %270 = arith.maximumf %268, %269 : vector<8x256xbf16>
    %271 = arith.maximumf %232, %270 : vector<8x256xbf16>
    %c2_103 = arith.constant 2 : index
    %c0_104 = arith.constant 0 : index
    %c0_105 = arith.constant 0 : index
    %272 = vector.load %arg8[%c2_103, %c0_104, %c0_105] : memref<3x256x512xbf16, #tpu.memory_space<vmem>>, vector<1x256x512xbf16>
    %273 = vector.shape_cast %272 : vector<1x256x512xbf16> to vector<256x512xbf16>
    %cst_106 = arith.constant dense<0.000000e+00> : vector<8x512xf32>
    %274 = tpu.matmul %271, %273, %cst_106 {dimension_numbers = #tpu.dot_dimension_numbers<[1], [0], [0], [1], [0, 0, 1, 1], [], []>} : vector<8x256xbf16>, vector<256x512xbf16>, vector<8x512xf32> -> vector<8x512xf32>
    %275 = arith.addf %186, %274 : vector<8x512xf32>
    %cst_107 = arith.constant 0.000000e+00 : f32
    %276 = vector.broadcast %cst_107 : f32 to vector<8x512xf32>
    %277 = arith.maximumf %275, %276 : vector<8x512xf32>
    %278 = arith.truncf %277 : vector<8x512xf32> to vector<8x512xbf16>
    %c0_108 = arith.constant 0 : index
    %c0_109 = arith.constant 0 : index
    %279 = vector.load %arg10[%c0_108, %c0_109] : memref<512x128xbf16, #tpu.memory_space<vmem>>, vector<512x128xbf16>
    %cst_110 = arith.constant dense<0.000000e+00> : vector<8x128xf32>
    %280 = tpu.matmul %278, %279, %cst_110 {dimension_numbers = #tpu.dot_dimension_numbers<[1], [0], [0], [1], [0, 0, 1, 1], [], []>} : vector<8x512xbf16>, vector<512x128xbf16>, vector<8x128xf32> -> vector<8x128xf32>
    %c0_111 = arith.constant 0 : index
    %c0_112 = arith.constant 0 : index
    %281 = vector.load %arg11[%c0_111, %c0_112] : memref<1x128xf32, #tpu.memory_space<vmem>>, vector<1x128xf32>
    %282 = vector.broadcast %281 : vector<1x128xf32> to vector<8x128xf32>
    %283 = arith.addf %280, %282 : vector<8x128xf32>
    %c0_113 = arith.constant 0 : index
    %c0_114 = arith.constant 0 : index
    %284 = vector.load %arg12[%c0_113, %c0_114] : memref<8x128xf32, #tpu.memory_space<vmem>>, vector<8x128xf32>
    tpu.vector_store %arg12[%c0_113, %c0_114], %283 {strides = array<i32>} : memref<8x128xf32, #tpu.memory_space<vmem>>, vector<8x128xf32>,
    return
  }
  func.func @transform_0(%arg0: i32) -> (i32, i32, i32, i32) {
    %c0_i32 = arith.constant 0 : i32
    %c0_i32_0 = arith.constant 0 : i32
    %c0_i32_1 = arith.constant 0 : i32
    %c0_i32_2 = arith.constant 0 : i32
    return %c0_i32, %arg0, %c0_i32_0, %c0_i32_1 : i32, i32, i32, i32
  }
  func.func @transform_1(%arg0: i32) -> (i32, i32) {
    %c0_i32 = arith.constant 0 : i32
    %c0_i32_0 = arith.constant 0 : i32
    %c0_i32_1 = arith.constant 0 : i32
    return %c0_i32, %c0_i32_0 : i32, i32
  }
  func.func @transform_2(%arg0: i32) -> (i32, i32) {
    %c0_i32 = arith.constant 0 : i32
    %c0_i32_0 = arith.constant 0 : i32
    %c0_i32_1 = arith.constant 0 : i32
    return %c0_i32, %c0_i32_0 : i32, i32
  }
  func.func @transform_3(%arg0: i32) -> (i32, i32) {
    %c0_i32 = arith.constant 0 : i32
    %c0_i32_0 = arith.constant 0 : i32
    %c0_i32_1 = arith.constant 0 : i32
    return %c0_i32, %c0_i32_0 : i32, i32
  }
  func.func @transform_4(%arg0: i32) -> (i32, i32) {
    %c0_i32 = arith.constant 0 : i32
    %c0_i32_0 = arith.constant 0 : i32
    %c0_i32_1 = arith.constant 0 : i32
    return %c0_i32, %c0_i32_0 : i32, i32
  }
  func.func @transform_5(%arg0: i32) -> (i32, i32) {
    %c0_i32 = arith.constant 0 : i32
    %c0_i32_0 = arith.constant 0 : i32
    %c0_i32_1 = arith.constant 0 : i32
    return %c0_i32, %c0_i32_0 : i32, i32
  }
  func.func @transform_6(%arg0: i32) -> (i32, i32) {
    %c0_i32 = arith.constant 0 : i32
    %c0_i32_0 = arith.constant 0 : i32
    %c0_i32_1 = arith.constant 0 : i32
    return %c0_i32, %c0_i32_0 : i32, i32
  }
  func.func @transform_7(%arg0: i32) -> (i32, i32, i32) {
    %c0_i32 = arith.constant 0 : i32
    %c0_i32_0 = arith.constant 0 : i32
    %c0_i32_1 = arith.constant 0 : i32
    %c0_i32_2 = arith.constant 0 : i32
    return %c0_i32, %c0_i32_0, %c0_i32_1 : i32, i32, i32
  }
  func.func @transform_8(%arg0: i32) -> (i32, i32) {
    %c0_i32 = arith.constant 0 : i32
    %c0_i32_0 = arith.constant 0 : i32
    %c0_i32_1 = arith.constant 0 : i32
    return %c0_i32, %c0_i32_0 : i32, i32
  }
  func.func @transform_9(%arg0: i32) -> (i32, i32) {
    %c0_i32 = arith.constant 0 : i32
    %c0_i32_0 = arith.constant 0 : i32
    %c0_i32_1 = arith.constant 0 : i32
    return %c0_i32, %c0_i32_0 : i32, i32
  }
  func.func @transform_10(%arg0: i32) -> (i32, i32) {
    %c0_i32 = arith.constant 0 : i32
    %c0_i32_0 = arith.constant 0 : i32
    %c0_i32_1 = arith.constant 0 : i32
    return %c0_i32, %c0_i32_0 : i32, i32
  }
  func.func @transform_11(%arg0: i32) -> (i32, i32) {
    %c0_i32 = arith.constant 0 : i32
    %c0_i32_0 = arith.constant 0 : i32
    return %arg0, %c0_i32 : i32, i32
  }
}

</mosaic_0001>

<llo_original>
// kernel: model_forward.1
$region0: #{model_forward.1}
  #allocation0 [shape = 'u32[]', space=smem, size = 0x4, offset = 0x4, fixed_abs, tag = 'smem constant byte address 0x4 - core index']
  #allocation1 [shape = 'u32[144,128]{1,0:T(1,128)}', space=vmem, size = 0x12000, scoped, tag = 'internal scratch']
  %s0 = inlined_call_operand.vmem [shape: bf16[3,1,8,256], index: 0, kind: input, shape index: {}]
  %s1 = inlined_call_operand.vmem [shape: bf16[256,1024], index: 1, kind: input, shape index: {}]
  %s2 = inlined_call_operand.vmem [shape: bf16[1,1024], index: 2, kind: input, shape index: {}]
  %s3 = inlined_call_operand.vmem [shape: bf16[128,128], index: 3, kind: input, shape index: {}]
  %s4 = inlined_call_operand.vmem [shape: bf16[1,128], index: 4, kind: input, shape index: {}]
  %s5 = inlined_call_operand.vmem [shape: bf16[256,256], index: 5, kind: input, shape index: {}]
  %s6 = inlined_call_operand.vmem [shape: bf16[1,256], index: 6, kind: input, shape index: {}]
  %s7 = inlined_call_operand.vmem [shape: bf16[3,256,512], index: 7, kind: input, shape index: {}]
  %s8 = inlined_call_operand.vmem [shape: f32[1,512], index: 8, kind: input, shape index: {}]
  %s9 = inlined_call_operand.vmem [shape: bf16[512,128], index: 9, kind: input, shape index: {}]
  %s10 = inlined_call_operand.vmem [shape: f32[1,128], index: 10, kind: input, shape index: {}]
  %s11 = inlined_call_operand.vmem [shape: f32[8,128], index: 11, kind: output, shape index: {}]
  %s12 = sld [smem:[#allocation0]]
  $region54: #{model_forward.1} parent=0
    _
  %s14 = ssub.s32 1, %s12
  %s15 = scalar_select 0, %s14, %s12
  // Predicated region
  $region2: #{model_forward.1} parent=0 // pred_check
    _
  $region3: #{model_forward.1} parent=0 // pred_check_branch
    %17 = sbr.rel (0) target = $region5
  $region4: #{model_forward.1} parent=0 // pred_region
    _
  $region5: #{model_forward.1} parent=0 // pred_fallthru
    _
  // Predicated region
  $region6: #{model_forward.1} parent=0 // pred_check
    _
  $region7: #{model_forward.1} parent=0 // pred_check_branch
    %19 = sbr.rel (0) target = $region9
  $region8: #{model_forward.1} parent=0 // pred_region
    _
  $region9: #{model_forward.1} parent=0 // pred_fallthru
    _
  // Predicated region
  $region10: #{model_forward.1} parent=0 // pred_check
    _
  $region11: #{model_forward.1} parent=0 // pred_check_branch
    %21 = sbr.rel (0) target = $region13
  $region12: #{model_forward.1} parent=0 // pred_region
    _
  $region13: #{model_forward.1} parent=0 // pred_fallthru
    _
  // Predicated region
  $region14: #{model_forward.1} parent=0 // pred_check
    _
  $region15: #{model_forward.1} parent=0 // pred_check_branch
    %23 = sbr.rel (0) target = $region17
  $region16: #{model_forward.1} parent=0 // pred_region
    _
  $region17: #{model_forward.1} parent=0 // pred_fallthru
    _
  // Predicated region
  $region18: #{model_forward.1} parent=0 // pred_check
    _
  $region19: #{model_forward.1} parent=0 // pred_check_branch
    %25 = sbr.rel (0) target = $region21
  $region20: #{model_forward.1} parent=0 // pred_region
    _
  $region21: #{model_forward.1} parent=0 // pred_fallthru
    _
  // Predicated region
  $region22: #{model_forward.1} parent=0 // pred_check
    _
  $region23: #{model_forward.1} parent=0 // pred_check_branch
    %27 = sbr.rel (0) target = $region25
  $region24: #{model_forward.1} parent=0 // pred_region
    _
  $region25: #{model_forward.1} parent=0 // pred_fallthru
    _
  // Predicated region
  $region26: #{model_forward.1} parent=0 // pred_check
    _
  $region27: #{model_forward.1} parent=0 // pred_check_branch
    %29 = sbr.rel (0) target = $region29
  $region28: #{model_forward.1} parent=0 // pred_region
    _
  $region29: #{model_forward.1} parent=0 // pred_fallthru
    _
  // Predicated region
  $region30: #{model_forward.1} parent=0 // pred_check
    _
  $region31: #{model_forward.1} parent=0 // pred_check_branch
    %31 = sbr.rel (0) target = $region33
  $region32: #{model_forward.1} parent=0 // pred_region
    _
  $region33: #{model_forward.1} parent=0 // pred_fallthru
    _
  // Predicated region
  $region34: #{model_forward.1} parent=0 // pred_check
    _
  $region35: #{model_forward.1} parent=0 // pred_check_branch
    %33 = sbr.rel (0) target = $region37
  $region36: #{model_forward.1} parent=0 // pred_region
    _
  $region37: #{model_forward.1} parent=0 // pred_fallthru
    _
  // Predicated region
  $region38: #{model_forward.1} parent=0 // pred_check
    _
  $region39: #{model_forward.1} parent=0 // pred_check_branch
    %35 = sbr.rel (0) target = $region41
  $region40: #{model_forward.1} parent=0 // pred_region
    _
  $region41: #{model_forward.1} parent=0 // pred_fallthru
    _
  // Predicated region
  $region42: #{model_forward.1} parent=0 // pred_check
    _
  $region43: #{model_forward.1} parent=0 // pred_check_branch
    %37 = sbr.rel (0) target = $region45
  $region44: #{model_forward.1} parent=0 // pred_region
    _
  $region45: #{model_forward.1} parent=0 // pred_fallthru
    _
  %v39 = vld [vmem:[%s1] sm:$0xff]
  %v40 = vld [vmem:[%s1 + $0x8] sm:$0xff]
  %v41 = vld [vmem:[%s1 + $0x10] sm:$0xff]
  %v42 = vld [vmem:[%s1 + $0x18] sm:$0xff]
  %v43 = vld [vmem:[%s1 + $0x20] sm:$0xff]
  %v44 = vld [vmem:[%s1 + $0x28] sm:$0xff]
  %v45 = vld [vmem:[%s1 + $0x30] sm:$0xff]
  %v46 = vld [vmem:[%s1 + $0x38] sm:$0xff]
  %v47 = vld [vmem:[%s1 + $0x40] sm:$0xff]
  %v48 = vld [vmem:[%s1 + $0x48] sm:$0xff]
  %v49 = vld [vmem:[%s1 + $0x50] sm:$0xff]
  %v50 = vld [vmem:[%s1 + $0x58] sm:$0xff]
  %v51 = vld [vmem:[%s1 + $0x60] sm:$0xff]
  %v52 = vld [vmem:[%s1 + $0x68] sm:$0xff]
  %v53 = vld [vmem:[%s1 + $0x70] sm:$0xff]
  %v54 = vld [vmem:[%s1 + $0x78] sm:$0xff]
  %v55 = vld [vmem:[%s1 + $0x80] sm:$0xff]
  %v56 = vld [vmem:[%s1 + $0x88] sm:$0xff]
  %v57 = vld [vmem:[%s1 + $0x90] sm:$0xff]
  %v58 = vld [vmem:[%s1 + $0x98] sm:$0xff]
  %v59 = vld [vmem:[%s1 + $0xa0] sm:$0xff]
  %v60 = vld [vmem:[%s1 + $0xa8] sm:$0xff]
  %v61 = vld [vmem:[%s1 + $0xb0] sm:$0xff]
  %v62 = vld [vmem:[%s1 + $0xb8] sm:$0xff]
  %v63 = vld [vmem:[%s1 + $0xc0] sm:$0xff]
  %v64 = vld [vmem:[%s1 + $0xc8] sm:$0xff]
  %v65 = vld [vmem:[%s1 + $0xd0] sm:$0xff]
  %v66 = vld [vmem:[%s1 + $0xd8] sm:$0xff]
  %v67 = vld [vmem:[%s1 + $0xe0] sm:$0xff]
  %v68 = vld [vmem:[%s1 + $0xe8] sm:$0xff]
  %v69 = vld [vmem:[%s1 + $0xf0] sm:$0xff]
  %v70 = vld [vmem:[%s1 + $0xf8] sm:$0xff]
  %v71 = vld [vmem:[%s1 + $0x100] sm:$0xff]
  %v72 = vld [vmem:[%s1 + $0x108] sm:$0xff]
  %v73 = vld [vmem:[%s1 + $0x110] sm:$0xff]
  %v74 = vld [vmem:[%s1 + $0x118] sm:$0xff]
  %v75 = vld [vmem:[%s1 + $0x120] sm:$0xff]
  %v76 = vld [vmem:[%s1 + $0x128] sm:$0xff]
  %v77 = vld [vmem:[%s1 + $0x130] sm:$0xff]
  %v78 = vld [vmem:[%s1 + $0x138] sm:$0xff]
  %v79 = vld [vmem:[%s1 + $0x140] sm:$0xff]
  %v80 = vld [vmem:[%s1 + $0x148] sm:$0xff]
  %v81 = vld [vmem:[%s1 + $0x150] sm:$0xff]
  %v82 = vld [vmem:[%s1 + $0x158] sm:$0xff]
  %v83 = vld [vmem:[%s1 + $0x160] sm:$0xff]
  %v84 = vld [vmem:[%s1 + $0x168] sm:$0xff]
  %v85 = vld [vmem:[%s1 + $0x170] sm:$0xff]
  %v86 = vld [vmem:[%s1 + $0x178] sm:$0xff]
  %v87 = vld [vmem:[%s1 + $0x180] sm:$0xff]
  %v88 = vld [vmem:[%s1 + $0x188] sm:$0xff]
  %v89 = vld [vmem:[%s1 + $0x190] sm:$0xff]
  %v90 = vld [vmem:[%s1 + $0x198] sm:$0xff]
  %v91 = vld [vmem:[%s1 + $0x1a0] sm:$0xff]
  %v92 = vld [vmem:[%s1 + $0x1a8] sm:$0xff]
  %v93 = vld [vmem:[%s1 + $0x1b0] sm:$0xff]
  %v94 = vld [vmem:[%s1 + $0x1b8] sm:$0xff]
  %v95 = vld [vmem:[%s1 + $0x1c0] sm:$0xff]
  %v96 = vld [vmem:[%s1 + $0x1c8] sm:$0xff]
  %v97 = vld [vmem:[%s1 + $0x1d0] sm:$0xff]
  %v98 = vld [vmem:[%s1 + $0x1d8] sm:$0xff]
  %v99 = vld [vmem:[%s1 + $0x1e0] sm:$0xff]
  %v100 = vld [vmem:[%s1 + $0x1e8] sm:$0xff]
  %v101 = vld [vmem:[%s1 + $0x1f0] sm:$0xff]
  %v102 = vld [vmem:[%s1 + $0x1f8] sm:$0xff]
  %v103 = vld [vmem:[%s1 + $0x200] sm:$0xff]
  %v104 = vld [vmem:[%s1 + $0x208] sm:$0xff]
  %v105 = vld [vmem:[%s1 + $0x210] sm:$0xff]
  %v106 = vld [vmem:[%s1 + $0x218] sm:$0xff]
  %v107 = vld [vmem:[%s1 + $0x220] sm:$0xff]
  %v108 = vld [vmem:[%s1 + $0x228] sm:$0xff]
  %v109 = vld [vmem:[%s1 + $0x230] sm:$0xff]
  %v110 = vld [vmem:[%s1 + $0x238] sm:$0xff]
  %v111 = vld [vmem:[%s1 + $0x240] sm:$0xff]
  %v112 = vld [vmem:[%s1 + $0x248] sm:$0xff]
  %v113 = vld [vmem:[%s1 + $0x250] sm:$0xff]
  %v114 = vld [vmem:[%s1 + $0x258] sm:$0xff]
  %v115 = vld [vmem:[%s1 + $0x260] sm:$0xff]
  %v116 = vld [vmem:[%s1 + $0x268] sm:$0xff]
  %v117 = vld [vmem:[%s1 + $0x270] sm:$0xff]
  %v118 = vld [vmem:[%s1 + $0x278] sm:$0xff]
  %v119 = vld [vmem:[%s1 + $0x280] sm:$0xff]
  %v120 = vld [vmem:[%s1 + $0x288] sm:$0xff]
  %v121 = vld [vmem:[%s1 + $0x290] sm:$0xff]
  %v122 = vld [vmem:[%s1 + $0x298] sm:$0xff]
  %v123 = vld [vmem:[%s1 + $0x2a0] sm:$0xff]
  %v124 = vld [vmem:[%s1 + $0x2a8] sm:$0xff]
  %v125 = vld [vmem:[%s1 + $0x2b0] sm:$0xff]
  %v126 = vld [vmem:[%s1 + $0x2b8] sm:$0xff]
  %v127 = vld [vmem:[%s1 + $0x2c0] sm:$0xff]
  %v128 = vld [vmem:[%s1 + $0x2c8] sm:$0xff]
  %v129 = vld [vmem:[%s1 + $0x2d0] sm:$0xff]
  %v130 = vld [vmem:[%s1 + $0x2d8] sm:$0xff]
  %v131 = vld [vmem:[%s1 + $0x2e0] sm:$0xff]
  %v132 = vld [vmem:[%s1 + $0x2e8] sm:$0xff]
  %v133 = vld [vmem:[%s1 + $0x2f0] sm:$0xff]
  %v134 = vld [vmem:[%s1 + $0x2f8] sm:$0xff]
  %v135 = vld [vmem:[%s1 + $0x300] sm:$0xff]
  %v136 = vld [vmem:[%s1 + $0x308] sm:$0xff]
  %v137 = vld [vmem:[%s1 + $0x310] sm:$0xff]
  %v138 = vld [vmem:[%s1 + $0x318] sm:$0xff]
  %v139 = vld [vmem:[%s1 + $0x320] sm:$0xff]
  %v140 = vld [vmem:[%s1 + $0x328] sm:$0xff]
  %v141 = vld [vmem:[%s1 + $0x330] sm:$0xff]
  %v142 = vld [vmem:[%s1 + $0x338] sm:$0xff]
  %v143 = vld [vmem:[%s1 + $0x340] sm:$0xff]
  %v144 = vld [vmem:[%s1 + $0x348] sm:$0xff]
  %v145 = vld [vmem:[%s1 + $0x350] sm:$0xff]
  %v146 = vld [vmem:[%s1 + $0x358] sm:$0xff]
  %v147 = vld [vmem:[%s1 + $0x360] sm:$0xff]
  %v148 = vld [vmem:[%s1 + $0x368] sm:$0xff]
  %v149 = vld [vmem:[%s1 + $0x370] sm:$0xff]
  %v150 = vld [vmem:[%s1 + $0x378] sm:$0xff]
  %v151 = vld [vmem:[%s1 + $0x380] sm:$0xff]
  %v152 = vld [vmem:[%s1 + $0x388] sm:$0xff]
  %v153 = vld [vmem:[%s1 + $0x390] sm:$0xff]
  %v154 = vld [vmem:[%s1 + $0x398] sm:$0xff]
  %v155 = vld [vmem:[%s1 + $0x3a0] sm:$0xff]
  %v156 = vld [vmem:[%s1 + $0x3a8] sm:$0xff]
  %v157 = vld [vmem:[%s1 + $0x3b0] sm:$0xff]
  %v158 = vld [vmem:[%s1 + $0x3b8] sm:$0xff]
  %v159 = vld [vmem:[%s1 + $0x3c0] sm:$0xff]
  %v160 = vld [vmem:[%s1 + $0x3c8] sm:$0xff]
  %v161 = vld [vmem:[%s1 + $0x3d0] sm:$0xff]
  %v162 = vld [vmem:[%s1 + $0x3d8] sm:$0xff]
  %v163 = vld [vmem:[%s1 + $0x3e0] sm:$0xff]
  %v164 = vld [vmem:[%s1 + $0x3e8] sm:$0xff]
  %v165 = vld [vmem:[%s1 + $0x3f0] sm:$0xff]
  %v166 = vld [vmem:[%s1 + $0x3f8] sm:$0xff]
  %v167 = vld [vmem:[%s2] sm:$0xff]
  %v168 = vld [vmem:[%s3] sm:$0xf]
  %v169 = vld [vmem:[%s3 + $0x4] sm:$0xf]
  %v170 = vld [vmem:[%s3 + $0x8] sm:$0xf]
  %v171 = vld [vmem:[%s3 + $0xc] sm:$0xf]
  %v172 = vld [vmem:[%s3 + $0x10] sm:$0xf]
  %v173 = vld [vmem:[%s3 + $0x14] sm:$0xf]
  %v174 = vld [vmem:[%s3 + $0x18] sm:$0xf]
  %v175 = vld [vmem:[%s3 + $0x1c] sm:$0xf]
  %v176 = vld [vmem:[%s3 + $0x20] sm:$0xf]
  %v177 = vld [vmem:[%s3 + $0x24] sm:$0xf]
  %v178 = vld [vmem:[%s3 + $0x28] sm:$0xf]
  %v179 = vld [vmem:[%s3 + $0x2c] sm:$0xf]
  %v180 = vld [vmem:[%s3 + $0x30] sm:$0xf]
  %v181 = vld [vmem:[%s3 + $0x34] sm:$0xf]
  %v182 = vld [vmem:[%s3 + $0x38] sm:$0xf]
  %v183 = vld [vmem:[%s3 + $0x3c] sm:$0xf]
  %v184 = vld [vmem:[%s4] sm:$0x1]
  %v185 = vld [vmem:[%s5] sm:$0xff]
  %v186 = vld [vmem:[%s5 + $0x8] sm:$0xff]
  %v187 = vld [vmem:[%s5 + $0x10] sm:$0xff]
  %v188 = vld [vmem:[%s5 + $0x18] sm:$0xff]
  %v189 = vld [vmem:[%s5 + $0x20] sm:$0xff]
  %v190 = vld [vmem:[%s5 + $0x28] sm:$0xff]
  %v191 = vld [vmem:[%s5 + $0x30] sm:$0xff]
  %v192 = vld [vmem:[%s5 + $0x38] sm:$0xff]
  %v193 = vld [vmem:[%s5 + $0x40] sm:$0xff]
  %v194 = vld [vmem:[%s5 + $0x48] sm:$0xff]
  %v195 = vld [vmem:[%s5 + $0x50] sm:$0xff]
  %v196 = vld [vmem:[%s5 + $0x58] sm:$0xff]
  %v197 = vld [vmem:[%s5 + $0x60] sm:$0xff]
  %v198 = vld [vmem:[%s5 + $0x68] sm:$0xff]
  %v199 = vld [vmem:[%s5 + $0x70] sm:$0xff]
  %v200 = vld [vmem:[%s5 + $0x78] sm:$0xff]
  %v201 = vld [vmem:[%s5 + $0x80] sm:$0xff]
  %v202 = vld [vmem:[%s5 + $0x88] sm:$0xff]
  %v203 = vld [vmem:[%s5 + $0x90] sm:$0xff]
  %v204 = vld [vmem:[%s5 + $0x98] sm:$0xff]
  %v205 = vld [vmem:[%s5 + $0xa0] sm:$0xff]
  %v206 = vld [vmem:[%s5 + $0xa8] sm:$0xff]
  %v207 = vld [vmem:[%s5 + $0xb0] sm:$0xff]
  %v208 = vld [vmem:[%s5 + $0xb8] sm:$0xff]
  %v209 = vld [vmem:[%s5 + $0xc0] sm:$0xff]
  %v210 = vld [vmem:[%s5 + $0xc8] sm:$0xff]
  %v211 = vld [vmem:[%s5 + $0xd0] sm:$0xff]
  %v212 = vld [vmem:[%s5 + $0xd8] sm:$0xff]
  %v213 = vld [vmem:[%s5 + $0xe0] sm:$0xff]
  %v214 = vld [vmem:[%s5 + $0xe8] sm:$0xff]
  %v215 = vld [vmem:[%s5 + $0xf0] sm:$0xff]
  %v216 = vld [vmem:[%s5 + $0xf8] sm:$0xff]
  %v217 = vld [vmem:[%s6] sm:$0x3]
  %v218 = vld [vmem:[%s8] sm:$0xf]
  %v219 = vld [vmem:[%s0] sm:$0xff]
  %v221 = vunpack.c.l.b16 %v219
  %v222 = vunpack.c.h.b16 %v219
  %v223 = vpack.c.b16 %v221, %v221
  %v224 = vpack.c.b16 %v222, %v222
  %v355 = vunpack.c.l.b16 %v39
  %v356 = vunpack.c.h.b16 %v39
  %v357 = vunpack.c.l.b16 %v40
  %v358 = vunpack.c.h.b16 %v40
  %v359 = vunpack.c.l.b16 %v41
  %v360 = vunpack.c.h.b16 %v41
  %v361 = vunpack.c.l.b16 %v42
  %v362 = vunpack.c.h.b16 %v42
  %v363 = vunpack.c.l.b16 %v43
  %v364 = vunpack.c.h.b16 %v43
  %v365 = vunpack.c.l.b16 %v44
  %v366 = vunpack.c.h.b16 %v44
  %v367 = vunpack.c.l.b16 %v45
  %v368 = vunpack.c.h.b16 %v45
  %v369 = vunpack.c.l.b16 %v46
  %v370 = vunpack.c.h.b16 %v46
  %v371 = vunpack.c.l.b16 %v47
  %v372 = vunpack.c.h.b16 %v47
  %v373 = vunpack.c.l.b16 %v48
  %v374 = vunpack.c.h.b16 %v48
  %v375 = vunpack.c.l.b16 %v49
  %v376 = vunpack.c.h.b16 %v49
  %v377 = vunpack.c.l.b16 %v50
  %v378 = vunpack.c.h.b16 %v50
  %v379 = vunpack.c.l.b16 %v51
  %v380 = vunpack.c.h.b16 %v51
  %v381 = vunpack.c.l.b16 %v52
  %v382 = vunpack.c.h.b16 %v52
  %v383 = vunpack.c.l.b16 %v53
  %v384 = vunpack.c.h.b16 %v53
  %v385 = vunpack.c.l.b16 %v54
  %v386 = vunpack.c.h.b16 %v54
  %v387 = vunpack.c.l.b16 %v55
  %v388 = vunpack.c.h.b16 %v55
  %v389 = vunpack.c.l.b16 %v56
  %v390 = vunpack.c.h.b16 %v56
  %v391 = vunpack.c.l.b16 %v57
  %v392 = vunpack.c.h.b16 %v57
  %v393 = vunpack.c.l.b16 %v58
  %v394 = vunpack.c.h.b16 %v58
  %v395 = vunpack.c.l.b16 %v59
  %v396 = vunpack.c.h.b16 %v59
  %v397 = vunpack.c.l.b16 %v60
  %v398 = vunpack.c.h.b16 %v60
  %v399 = vunpack.c.l.b16 %v61
  %v400 = vunpack.c.h.b16 %v61
  %v401 = vunpack.c.l.b16 %v62
  %v402 = vunpack.c.h.b16 %v62
  %v403 = vunpack.c.l.b16 %v63
  %v404 = vunpack.c.h.b16 %v63
  %v405 = vunpack.c.l.b16 %v64
  %v406 = vunpack.c.h.b16 %v64
  %v407 = vunpack.c.l.b16 %v65
  %v408 = vunpack.c.h.b16 %v65
  %v409 = vunpack.c.l.b16 %v66
  %v410 = vunpack.c.h.b16 %v66
  %v411 = vunpack.c.l.b16 %v67
  %v412 = vunpack.c.h.b16 %v67
  %v413 = vunpack.c.l.b16 %v68
  %v414 = vunpack.c.h.b16 %v68
  %v415 = vunpack.c.l.b16 %v69
  %v416 = vunpack.c.h.b16 %v69
  %v417 = vunpack.c.l.b16 %v70
  %v418 = vunpack.c.h.b16 %v70
  %v419 = vunpack.c.l.b16 %v71
  %v420 = vunpack.c.h.b16 %v71
  %v421 = vunpack.c.l.b16 %v72
  %v422 = vunpack.c.h.b16 %v72
  %v423 = vunpack.c.l.b16 %v73
  %v424 = vunpack.c.h.b16 %v73
  %v425 = vunpack.c.l.b16 %v74
  %v426 = vunpack.c.h.b16 %v74
  %v427 = vunpack.c.l.b16 %v75
  %v428 = vunpack.c.h.b16 %v75
  %v429 = vunpack.c.l.b16 %v76
  %v430 = vunpack.c.h.b16 %v76
  %v431 = vunpack.c.l.b16 %v77
  %v432 = vunpack.c.h.b16 %v77
  %v433 = vunpack.c.l.b16 %v78
  %v434 = vunpack.c.h.b16 %v78
  %v435 = vunpack.c.l.b16 %v79
  %v436 = vunpack.c.h.b16 %v79
  %v437 = vunpack.c.l.b16 %v80
  %v438 = vunpack.c.h.b16 %v80
  %v439 = vunpack.c.l.b16 %v81
  %v440 = vunpack.c.h.b16 %v81
  %v441 = vunpack.c.l.b16 %v82
  %v442 = vunpack.c.h.b16 %v82
  %v443 = vunpack.c.l.b16 %v83
  %v444 = vunpack.c.h.b16 %v83
  %v445 = vunpack.c.l.b16 %v84
  %v446 = vunpack.c.h.b16 %v84
  %v447 = vunpack.c.l.b16 %v85
  %v448 = vunpack.c.h.b16 %v85
  %v449 = vunpack.c.l.b16 %v86
  %v450 = vunpack.c.h.b16 %v86
  %v451 = vunpack.c.l.b16 %v87
  %v452 = vunpack.c.h.b16 %v87
  %v453 = vunpack.c.l.b16 %v88
  %v454 = vunpack.c.h.b16 %v88
  %v455 = vunpack.c.l.b16 %v89
  %v456 = vunpack.c.h.b16 %v89
  %v457 = vunpack.c.l.b16 %v90
  %v458 = vunpack.c.h.b16 %v90
  %v459 = vunpack.c.l.b16 %v91
  %v460 = vunpack.c.h.b16 %v91
  %v461 = vunpack.c.l.b16 %v92
  %v462 = vunpack.c.h.b16 %v92
  %v463 = vunpack.c.l.b16 %v93
  %v464 = vunpack.c.h.b16 %v93
  %v465 = vunpack.c.l.b16 %v94
  %v466 = vunpack.c.h.b16 %v94
  %v467 = vunpack.c.l.b16 %v95
  %v468 = vunpack.c.h.b16 %v95
  %v469 = vunpack.c.l.b16 %v96
  %v470 = vunpack.c.h.b16 %v96
  %v471 = vunpack.c.l.b16 %v97
  %v472 = vunpack.c.h.b16 %v97
  %v473 = vunpack.c.l.b16 %v98
  %v474 = vunpack.c.h.b16 %v98
  %v475 = vunpack.c.l.b16 %v99
  %v476 = vunpack.c.h.b16 %v99
  %v477 = vunpack.c.l.b16 %v100
  %v478 = vunpack.c.h.b16 %v100
  %v479 = vunpack.c.l.b16 %v101
  %v480 = vunpack.c.h.b16 %v101
  %v481 = vunpack.c.l.b16 %v102
  %v482 = vunpack.c.h.b16 %v102
  %v483 = vunpack.c.l.b16 %v103
  %v484 = vunpack.c.h.b16 %v103
  %v485 = vunpack.c.l.b16 %v104
  %v486 = vunpack.c.h.b16 %v104
  %v487 = vunpack.c.l.b16 %v105
  %v488 = vunpack.c.h.b16 %v105
  %v489 = vunpack.c.l.b16 %v106
  %v490 = vunpack.c.h.b16 %v106
  %v491 = vunpack.c.l.b16 %v107
  %v492 = vunpack.c.h.b16 %v107
  %v493 = vunpack.c.l.b16 %v108
  %v494 = vunpack.c.h.b16 %v108
  %v495 = vunpack.c.l.b16 %v109
  %v496 = vunpack.c.h.b16 %v109
  %v497 = vunpack.c.l.b16 %v110
  %v498 = vunpack.c.h.b16 %v110
  %v499 = vunpack.c.l.b16 %v111
  %v500 = vunpack.c.h.b16 %v111
  %v501 = vunpack.c.l.b16 %v112
  %v502 = vunpack.c.h.b16 %v112
  %v503 = vunpack.c.l.b16 %v113
  %v504 = vunpack.c.h.b16 %v113
  %v505 = vunpack.c.l.b16 %v114
  %v506 = vunpack.c.h.b16 %v114
  %v507 = vunpack.c.l.b16 %v115
  %v508 = vunpack.c.h.b16 %v115
  %v509 = vunpack.c.l.b16 %v116
  %v510 = vunpack.c.h.b16 %v116
  %v511 = vunpack.c.l.b16 %v117
  %v512 = vunpack.c.h.b16 %v117
  %v513 = vunpack.c.l.b16 %v118
  %v514 = vunpack.c.h.b16 %v118
  %v515 = vunpack.c.l.b16 %v119
  %v516 = vunpack.c.h.b16 %v119
  %v517 = vunpack.c.l.b16 %v120
  %v518 = vunpack.c.h.b16 %v120
  %v519 = vunpack.c.l.b16 %v121
  %v520 = vunpack.c.h.b16 %v121
  %v521 = vunpack.c.l.b16 %v122
  %v522 = vunpack.c.h.b16 %v122
  %v523 = vunpack.c.l.b16 %v123
  %v524 = vunpack.c.h.b16 %v123
  %v525 = vunpack.c.l.b16 %v124
  %v526 = vunpack.c.h.b16 %v124
  %v527 = vunpack.c.l.b16 %v125
  %v528 = vunpack.c.h.b16 %v125
  %v529 = vunpack.c.l.b16 %v126
  %v530 = vunpack.c.h.b16 %v126
  %v531 = vunpack.c.l.b16 %v127
  %v532 = vunpack.c.h.b16 %v127
  %v533 = vunpack.c.l.b16 %v128
  %v534 = vunpack.c.h.b16 %v128
  %v535 = vunpack.c.l.b16 %v129
  %v536 = vunpack.c.h.b16 %v129
  %v537 = vunpack.c.l.b16 %v130
  %v538 = vunpack.c.h.b16 %v130
  %v539 = vunpack.c.l.b16 %v131
  %v540 = vunpack.c.h.b16 %v131
  %v541 = vunpack.c.l.b16 %v132
  %v542 = vunpack.c.h.b16 %v132
  %v543 = vunpack.c.l.b16 %v133
  %v544 = vunpack.c.h.b16 %v133
  %v545 = vunpack.c.l.b16 %v134
  %v546 = vunpack.c.h.b16 %v134
  %v547 = vunpack.c.l.b16 %v135
  %v548 = vunpack.c.h.b16 %v135
  %v549 = vunpack.c.l.b16 %v136
  %v550 = vunpack.c.h.b16 %v136
  %v551 = vunpack.c.l.b16 %v137
  %v552 = vunpack.c.h.b16 %v137
  %v553 = vunpack.c.l.b16 %v138
  %v554 = vunpack.c.h.b16 %v138
  %v555 = vunpack.c.l.b16 %v139
  %v556 = vunpack.c.h.b16 %v139
  %v557 = vunpack.c.l.b16 %v140
  %v558 = vunpack.c.h.b16 %v140
  %v559 = vunpack.c.l.b16 %v141
  %v560 = vunpack.c.h.b16 %v141
  %v561 = vunpack.c.l.b16 %v142
  %v562 = vunpack.c.h.b16 %v142
  %v563 = vunpack.c.l.b16 %v143
  %v564 = vunpack.c.h.b16 %v143
  %v565 = vunpack.c.l.b16 %v144
  %v566 = vunpack.c.h.b16 %v144
  %v567 = vunpack.c.l.b16 %v145
  %v568 = vunpack.c.h.b16 %v145
  %v569 = vunpack.c.l.b16 %v146
  %v570 = vunpack.c.h.b16 %v146
  %v571 = vunpack.c.l.b16 %v147
  %v572 = vunpack.c.h.b16 %v147
  %v573 = vunpack.c.l.b16 %v148
  %v574 = vunpack.c.h.b16 %v148
  %v575 = vunpack.c.l.b16 %v149
  %v576 = vunpack.c.h.b16 %v149
  %v577 = vunpack.c.l.b16 %v150
  %v578 = vunpack.c.h.b16 %v150
  %v579 = vunpack.c.l.b16 %v151
  %v580 = vunpack.c.h.b16 %v151
  %v581 = vunpack.c.l.b16 %v152
  %v582 = vunpack.c.h.b16 %v152
  %v583 = vunpack.c.l.b16 %v153
  %v584 = vunpack.c.h.b16 %v153
  %v585 = vunpack.c.l.b16 %v154
  %v586 = vunpack.c.h.b16 %v154
  %v587 = vunpack.c.l.b16 %v155
  %v588 = vunpack.c.h.b16 %v155
  %v589 = vunpack.c.l.b16 %v156
  %v590 = vunpack.c.h.b16 %v156
  %v591 = vunpack.c.l.b16 %v157
  %v592 = vunpack.c.h.b16 %v157
  %v593 = vunpack.c.l.b16 %v158
  %v594 = vunpack.c.h.b16 %v158
  %v595 = vunpack.c.l.b16 %v159
  %v596 = vunpack.c.h.b16 %v159
  %v597 = vunpack.c.l.b16 %v160
  %v598 = vunpack.c.h.b16 %v160
  %v599 = vunpack.c.l.b16 %v161
  %v600 = vunpack.c.h.b16 %v161
  %v601 = vunpack.c.l.b16 %v162
  %v602 = vunpack.c.h.b16 %v162
  %v603 = vunpack.c.l.b16 %v163
  %v604 = vunpack.c.h.b16 %v163
  %v605 = vunpack.c.l.b16 %v164
  %v606 = vunpack.c.h.b16 %v164
  %v607 = vunpack.c.l.b16 %v165
  %v608 = vunpack.c.h.b16 %v165
  %v609 = vunpack.c.l.b16 %v166
  %v610 = vunpack.c.h.b16 %v166
  %v611 = vpack.c.b16 %v363, %v355
  %v612 = vpack.c.b16 %v364, %v356
  %v613 = vpack.c.b16 %v365, %v357
  %v614 = vpack.c.b16 %v366, %v358
  %v615 = vpack.c.b16 %v367, %v359
  %v616 = vpack.c.b16 %v368, %v360
  %v617 = vpack.c.b16 %v369, %v361
  %v618 = vpack.c.b16 %v370, %v362
  %v619 = vpack.c.b16 %v379, %v371
  %v620 = vpack.c.b16 %v380, %v372
  %v621 = vpack.c.b16 %v381, %v373
  %v622 = vpack.c.b16 %v382, %v374
  %v623 = vpack.c.b16 %v383, %v375
  %v624 = vpack.c.b16 %v384, %v376
  %v625 = vpack.c.b16 %v385, %v377
  %v626 = vpack.c.b16 %v386, %v378
  %v627 = vpack.c.b16 %v395, %v387
  %v628 = vpack.c.b16 %v396, %v388
  %v629 = vpack.c.b16 %v397, %v389
  %v630 = vpack.c.b16 %v398, %v390
  %v631 = vpack.c.b16 %v399, %v391
  %v632 = vpack.c.b16 %v400, %v392
  %v633 = vpack.c.b16 %v401, %v393
  %v634 = vpack.c.b16 %v402, %v394
  %v635 = vpack.c.b16 %v411, %v403
  %v636 = vpack.c.b16 %v412, %v404
  %v637 = vpack.c.b16 %v413, %v405
  %v638 = vpack.c.b16 %v414, %v406
  %v639 = vpack.c.b16 %v415, %v407
  %v640 = vpack.c.b16 %v416, %v408
  %v641 = vpack.c.b16 %v417, %v409
  %v642 = vpack.c.b16 %v418, %v410
  %v643 = vpack.c.b16 %v427, %v419
  %v644 = vpack.c.b16 %v428, %v420
  %v645 = vpack.c.b16 %v429, %v421
  %v646 = vpack.c.b16 %v430, %v422
  %v647 = vpack.c.b16 %v431, %v423
  %v648 = vpack.c.b16 %v432, %v424
  %v649 = vpack.c.b16 %v433, %v425
  %v650 = vpack.c.b16 %v434, %v426
  %v651 = vpack.c.b16 %v443, %v435
  %v652 = vpack.c.b16 %v444, %v436
  %v653 = vpack.c.b16 %v445, %v437
  %v654 = vpack.c.b16 %v446, %v438
  %v655 = vpack.c.b16 %v447, %v439
  %v656 = vpack.c.b16 %v448, %v440
  %v657 = vpack.c.b16 %v449, %v441
  %v658 = vpack.c.b16 %v450, %v442
  %v659 = vpack.c.b16 %v459, %v451
  %v660 = vpack.c.b16 %v460, %v452
  %v661 = vpack.c.b16 %v461, %v453
  %v662 = vpack.c.b16 %v462, %v454
  %v663 = vpack.c.b16 %v463, %v455
  %v664 = vpack.c.b16 %v464, %v456
  %v665 = vpack.c.b16 %v465, %v457
  %v666 = vpack.c.b16 %v466, %v458
  %v667 = vpack.c.b16 %v475, %v467
  %v668 = vpack.c.b16 %v476, %v468
  %v669 = vpack.c.b16 %v477, %v469
  %v670 = vpack.c.b16 %v478, %v470
  %v671 = vpack.c.b16 %v479, %v471
  %v672 = vpack.c.b16 %v480, %v472
  %v673 = vpack.c.b16 %v481, %v473
  %v674 = vpack.c.b16 %v482, %v474
  %v675 = vpack.c.b16 %v491, %v483
  %v676 = vpack.c.b16 %v492, %v484
  %v677 = vpack.c.b16 %v493, %v485
  %v678 = vpack.c.b16 %v494, %v486
  %v679 = vpack.c.b16 %v495, %v487
  %v680 = vpack.c.b16 %v496, %v488
  %v681 = vpack.c.b16 %v497, %v489
  %v682 = vpack.c.b16 %v498, %v490
  %v683 = vpack.c.b16 %v507, %v499
  %v684 = vpack.c.b16 %v508, %v500
  %v685 = vpack.c.b16 %v509, %v501
  %v686 = vpack.c.b16 %v510, %v502
  %v687 = vpack.c.b16 %v511, %v503
  %v688 = vpack.c.b16 %v512, %v504
  %v689 = vpack.c.b16 %v513, %v505
  %v690 = vpack.c.b16 %v514, %v506
  %v691 = vpack.c.b16 %v523, %v515
  %v692 = vpack.c.b16 %v524, %v516
  %v693 = vpack.c.b16 %v525, %v517
  %v694 = vpack.c.b16 %v526, %v518
  %v695 = vpack.c.b16 %v527, %v519
  %v696 = vpack.c.b16 %v528, %v520
  %v697 = vpack.c.b16 %v529, %v521
  %v698 = vpack.c.b16 %v530, %v522
  %v699 = vpack.c.b16 %v539, %v531
  %v700 = vpack.c.b16 %v540, %v532
  %v701 = vpack.c.b16 %v541, %v533
  %v702 = vpack.c.b16 %v542, %v534
  %v703 = vpack.c.b16 %v543, %v535
  %v704 = vpack.c.b16 %v544, %v536
  %v705 = vpack.c.b16 %v545, %v537
  %v706 = vpack.c.b16 %v546, %v538
  %v707 = vpack.c.b16 %v555, %v547
  %v708 = vpack.c.b16 %v556, %v548
  %v709 = vpack.c.b16 %v557, %v549
  %v710 = vpack.c.b16 %v558, %v550
  %v711 = vpack.c.b16 %v559, %v551
  %v712 = vpack.c.b16 %v560, %v552
  %v713 = vpack.c.b16 %v561, %v553
  %v714 = vpack.c.b16 %v562, %v554
  %v715 = vpack.c.b16 %v571, %v563
  %v716 = vpack.c.b16 %v572, %v564
  %v717 = vpack.c.b16 %v573, %v565
  %v718 = vpack.c.b16 %v574, %v566
  %v719 = vpack.c.b16 %v575, %v567
  %v720 = vpack.c.b16 %v576, %v568
  %v721 = vpack.c.b16 %v577, %v569
  %v722 = vpack.c.b16 %v578, %v570
  %v723 = vpack.c.b16 %v587, %v579
  %v724 = vpack.c.b16 %v588, %v580
  %v725 = vpack.c.b16 %v589, %v581
  %v726 = vpack.c.b16 %v590, %v582
  %v727 = vpack.c.b16 %v591, %v583
  %v728 = vpack.c.b16 %v592, %v584
  %v729 = vpack.c.b16 %v593, %v585
  %v730 = vpack.c.b16 %v594, %v586
  %v731 = vpack.c.b16 %v603, %v595
  %v732 = vpack.c.b16 %v604, %v596
  %v733 = vpack.c.b16 %v605, %v597
  %v734 = vpack.c.b16 %v606, %v598
  %v735 = vpack.c.b16 %v607, %v599
  %v736 = vpack.c.b16 %v608, %v600
  %v737 = vpack.c.b16 %v609, %v601
  %v738 = vpack.c.b16 %v610, %v602
  %867 = vmatprep.subr.bf16.mxu0 %v612
  %868 = vmatpush1.bf16.msra.mxu0 %v611
  %869 = vmatprep.subr.bf16.mxu0 %v620
  %870 = vmatpush1.bf16.msra.mxu0 %v619
  %871 = vmatprep.subr.bf16.mxu0 %v628
  %872 = vmatpush1.bf16.msra.mxu0 %v627
  %873 = vmatprep.subr.bf16.mxu0 %v636
  %874 = vmatpush1.bf16.msra.mxu0 %v635
  %875 = vmatprep.subr.bf16.mxu0 %v644
  %876 = vmatpush1.bf16.msra.mxu0 %v643
  %877 = vmatprep.subr.bf16.mxu0 %v652
  %878 = vmatpush1.bf16.msra.mxu0 %v651
  %879 = vmatprep.subr.bf16.mxu0 %v660
  %880 = vmatpush1.bf16.msra.mxu0 %v659
  %881 = vmatprep.subr.bf16.mxu0 %v668
  %882 = vmatpush1.bf16.msra.mxu0 %v667
  %883 = vmatprep.subr.bf16.mxu0 %v676
  %884 = vmatpush1.bf16.msra.mxu0 %v675
  %885 = vmatprep.subr.bf16.mxu0 %v684
  %886 = vmatpush1.bf16.msra.mxu0 %v683
  %887 = vmatprep.subr.bf16.mxu0 %v692
  %888 = vmatpush1.bf16.msra.mxu0 %v691
  %889 = vmatprep.subr.bf16.mxu0 %v700
  %890 = vmatpush1.bf16.msra.mxu0 %v699
  %891 = vmatprep.subr.bf16.mxu0 %v708
  %892 = vmatpush1.bf16.msra.mxu0 %v707
  %893 = vmatprep.subr.bf16.mxu0 %v716
  %894 = vmatpush1.bf16.msra.mxu0 %v715
  %895 = vmatprep.subr.bf16.mxu0 %v724
  %896 = vmatpush1.bf16.msra.mxu0 %v723
  %897 = vmatprep.subr.bf16.mxu0 %v732
  %898 = vmatpush1.bf16.msra.mxu0 %v731
  %899 = vmatprep.mubr.bf16.mxu0 %v224
  %900 = vmatmul.mubr.bf16.gmra.mrb[0].mxu0 %v223
  %v901 = vpop.f32.mrb[0].mxu0
  %v902 = vadd.f32 0.0, %v901
  %v903 = vpop.f32.mrb[0].mxu0
  %v904 = vadd.f32 0.0, %v903
  %v905 = vpop.f32.mrb[0].mxu0
  %v906 = vpop.f32.mrb[0].mxu0
  %907 = vdwg.mxu0
  %908 = vmatprep.subr.bf16.mxu0 %v614
  %909 = vmatpush1.bf16.msra.mxu0 %v613
  %910 = vmatprep.subr.bf16.mxu0 %v622
  %911 = vmatpush1.bf16.msra.mxu0 %v621
  %912 = vmatprep.subr.bf16.mxu0 %v630
  %913 = vmatpush1.bf16.msra.mxu0 %v629
  %914 = vmatprep.subr.bf16.mxu0 %v638
  %915 = vmatpush1.bf16.msra.mxu0 %v637
  %916 = vmatprep.subr.bf16.mxu0 %v646
  %917 = vmatpush1.bf16.msra.mxu0 %v645
  %918 = vmatprep.subr.bf16.mxu0 %v654
  %919 = vmatpush1.bf16.msra.mxu0 %v653
  %920 = vmatprep.subr.bf16.mxu0 %v662
  %921 = vmatpush1.bf16.msra.mxu0 %v661
  %922 = vmatprep.subr.bf16.mxu0 %v670
  %923 = vmatpush1.bf16.msra.mxu0 %v669
  %924 = vmatprep.subr.bf16.mxu0 %v678
  %925 = vmatpush1.bf16.msra.mxu0 %v677
  %926 = vmatprep.subr.bf16.mxu0 %v686
  %927 = vmatpush1.bf16.msra.mxu0 %v685
  %928 = vmatprep.subr.bf16.mxu0 %v694
  %929 = vmatpush1.bf16.msra.mxu0 %v693
  %930 = vmatprep.subr.bf16.mxu0 %v702
  %931 = vmatpush1.bf16.msra.mxu0 %v701
  %932 = vmatprep.subr.bf16.mxu0 %v710
  %933 = vmatpush1.bf16.msra.mxu0 %v709
  %934 = vmatprep.subr.bf16.mxu0 %v718
  %935 = vmatpush1.bf16.msra.mxu0 %v717
  %936 = vmatprep.subr.bf16.mxu0 %v726
  %937 = vmatpush1.bf16.msra.mxu0 %v725
  %938 = vmatprep.subr.bf16.mxu0 %v734
  %939 = vmatpush1.bf16.msra.mxu0 %v733
  %940 = vmatprep.mubr.bf16.mxu0 %v224
  %941 = vmatmul.mubr.bf16.gmra.mrb[0].mxu0 %v223
  %v942 = vpop.f32.mrb[0].mxu0
  %v943 = vadd.f32 0.0, %v942
  %v944 = vpop.f32.mrb[0].mxu0
  %v945 = vadd.f32 0.0, %v944
  %v946 = vpop.f32.mrb[0].mxu0
  %v947 = vpop.f32.mrb[0].mxu0
  %948 = vdwg.mxu0
  %949 = vmatprep.subr.bf16.mxu0 %v616
  %950 = vmatpush1.bf16.msra.mxu0 %v615
  %951 = vmatprep.subr.bf16.mxu0 %v624
  %952 = vmatpush1.bf16.msra.mxu0 %v623
  %953 = vmatprep.subr.bf16.mxu0 %v632
  %954 = vmatpush1.bf16.msra.mxu0 %v631
  %955 = vmatprep.subr.bf16.mxu0 %v640
  %956 = vmatpush1.bf16.msra.mxu0 %v639
  %957 = vmatprep.subr.bf16.mxu0 %v648
  %958 = vmatpush1.bf16.msra.mxu0 %v647
  %959 = vmatprep.subr.bf16.mxu0 %v656
  %960 = vmatpush1.bf16.msra.mxu0 %v655
  %961 = vmatprep.subr.bf16.mxu0 %v664
  %962 = vmatpush1.bf16.msra.mxu0 %v663
  %963 = vmatprep.subr.bf16.mxu0 %v672
  %964 = vmatpush1.bf16.msra.mxu0 %v671
  %965 = vmatprep.subr.bf16.mxu0 %v680
  %966 = vmatpush1.bf16.msra.mxu0 %v679
  %967 = vmatprep.subr.bf16.mxu0 %v688
  %968 = vmatpush1.bf16.msra.mxu0 %v687
  %969 = vmatprep.subr.bf16.mxu0 %v696
  %970 = vmatpush1.bf16.msra.mxu0 %v695
  %971 = vmatprep.subr.bf16.mxu0 %v704
  %972 = vmatpush1.bf16.msra.mxu0 %v703
  %973 = vmatprep.subr.bf16.mxu0 %v712
  %974 = vmatpush1.bf16.msra.mxu0 %v711
  %975 = vmatprep.subr.bf16.mxu0 %v720
  %976 = vmatpush1.bf16.msra.mxu0 %v719
  %977 = vmatprep.subr.bf16.mxu0 %v728
  %978 = vmatpush1.bf16.msra.mxu0 %v727
  %979 = vmatprep.subr.bf16.mxu0 %v736
  %980 = vmatpush1.bf16.msra.mxu0 %v735
  %981 = vmatprep.mubr.bf16.mxu0 %v224
  %982 = vmatmul.mubr.bf16.gmra.mrb[0].mxu0 %v223
  %v983 = vpop.f32.mrb[0].mxu0
  %v984 = vadd.f32 0.0, %v983
  %v985 = vpop.f32.mrb[0].mxu0
  %v986 = vadd.f32 0.0, %v985
  %v987 = vpop.f32.mrb[0].mxu0
  %v988 = vpop.f32.mrb[0].mxu0
  %989 = vdwg.mxu0
  %990 = vmatprep.subr.bf16.mxu0 %v618
  %991 = vmatpush1.bf16.msra.mxu0 %v617
  %992 = vmatprep.subr.bf16.mxu0 %v626
  %993 = vmatpush1.bf16.msra.mxu0 %v625
  %994 = vmatprep.subr.bf16.mxu0 %v634
  %995 = vmatpush1.bf16.msra.mxu0 %v633
  %996 = vmatprep.subr.bf16.mxu0 %v642
  %997 = vmatpush1.bf16.msra.mxu0 %v641
  %998 = vmatprep.subr.bf16.mxu0 %v650
  %999 = vmatpush1.bf16.msra.mxu0 %v649
  %1000 = vmatprep.subr.bf16.mxu0 %v658
  %1001 = vmatpush1.bf16.msra.mxu0 %v657
  %1002 = vmatprep.subr.bf16.mxu0 %v666
  %1003 = vmatpush1.bf16.msra.mxu0 %v665
  %1004 = vmatprep.subr.bf16.mxu0 %v674
  %1005 = vmatpush1.bf16.msra.mxu0 %v673
  %1006 = vmatprep.subr.bf16.mxu0 %v682
  %1007 = vmatpush1.bf16.msra.mxu0 %v681
  %1008 = vmatprep.subr.bf16.mxu0 %v690
  %1009 = vmatpush1.bf16.msra.mxu0 %v689
  %1010 = vmatprep.subr.bf16.mxu0 %v698
  %1011 = vmatpush1.bf16.msra.mxu0 %v697
  %1012 = vmatprep.subr.bf16.mxu0 %v706
  %1013 = vmatpush1.bf16.msra.mxu0 %v705
  %1014 = vmatprep.subr.bf16.mxu0 %v714
  %1015 = vmatpush1.bf16.msra.mxu0 %v713
  %1016 = vmatprep.subr.bf16.mxu0 %v722
  %1017 = vmatpush1.bf16.msra.mxu0 %v721
  %1018 = vmatprep.subr.bf16.mxu0 %v730
  %1019 = vmatpush1.bf16.msra.mxu0 %v729
  %1020 = vmatprep.subr.bf16.mxu0 %v738
  %1021 = vmatpush1.bf16.msra.mxu0 %v737
  %1022 = vmatprep.mubr.bf16.mxu0 %v224
  %1023 = vmatmul.mubr.bf16.gmra.mrb[0].mxu0 %v223
  %v1024 = vpop.f32.mrb[0].mxu0
  %v1025 = vadd.f32 0.0, %v1024
  %v1026 = vpop.f32.mrb[0].mxu0
  %v1027 = vadd.f32 0.0, %v1026
  %v1028 = vpop.f32.mrb[0].mxu0
  %v1029 = vpop.f32.mrb[0].mxu0
  %1030 = vdwg.mxu0
  %v1031 = vpack.c.bf16 %v902, %v902
  %v1032 = vpack.c.bf16 %v904, %v904
  %v1033 = vpack.c.bf16 %v943, %v943
  %v1034 = vpack.c.bf16 %v945, %v945
  %v1035 = vpack.c.bf16 %v984, %v984
  %v1036 = vpack.c.bf16 %v986, %v986
  %v1037 = vpack.c.bf16 %v1025, %v1025
  %v1038 = vpack.c.bf16 %v1027, %v1027
  %v1040 = vcombine.high %v167, %v167
  %v1042 = vunpack.c.l.s4 1966171168
  %v1043 = vunpack.c.0.s8 %v1042
  %v1044 = vlaneseq
  %v1045 = vshrl.u32 %v1044, 7
  %v1046 = vsub.s32 %v1043, %v1045
  %v1047 = vrot.slane %v167, %v1046
  %v1049 = vunpack.c.l.s4 1966171168
  %v1050 = vunpack.c.0.s8 %v1049
  %v1051 = vlaneseq
  %v1052 = vshrl.u32 %v1051, 7
  %v1053 = vsub.s32 %v1050, %v1052
  %v1054 = vrot.slane %v1040, %v1053
  %v1055 = vcombine.high %v1047, %v1047
  %v1056 = vcombine.high %v1054, %v1054
  %v1058 = vunpack.c.l.s4 1966171168
  %v1059 = vunpack.c.0.s8 %v1058
  %v1060 = vlaneseq
  %v1061 = vshrl.u32 %v1060, 7
  %v1062 = vsub.s32 %v1059, %v1061
  %v1063 = vrot.slane %v1047, %v1062
  %v1065 = vunpack.c.l.s4 1966171168
  %v1066 = vunpack.c.0.s8 %v1065
  %v1067 = vlaneseq
  %v1068 = vshrl.u32 %v1067, 7
  %v1069 = vsub.s32 %v1066, %v1068
  %v1070 = vrot.slane %v1054, %v1069
  %v1072 = vunpack.c.l.s4 1966171168
  %v1073 = vunpack.c.0.s8 %v1072
  %v1074 = vlaneseq
  %v1075 = vshrl.u32 %v1074, 7
  %v1076 = vsub.s32 %v1073, %v1075
  %v1077 = vrot.slane %v1055, %v1076
  %v1079 = vunpack.c.l.s4 1966171168
  %v1080 = vunpack.c.0.s8 %v1079
  %v1081 = vlaneseq
  %v1082 = vshrl.u32 %v1081, 7
  %v1083 = vsub.s32 %v1080, %v1082
  %v1084 = vrot.slane %v1056, %v1083
  %v1085 = vcombine.high %v1063, %v1063
  %v1086 = vcombine.high %v1070, %v1070
  %v1087 = vcombine.high %v1077, %v1077
  %v1088 = vcombine.high %v1084, %v1084
  %v1090 = vpack.i.b16 %v1063, %v1063
  %v1092 = vlaneseq
  %v1093 = vshrl.u32 %v1092, 7
  %v1094 = vsub.s32 0, %v1093
  %v1095 = vrot.slane %v1090, %v1094
  %v1097 = vpack.i.b16 %v1077, %v1077
  %v1099 = vlaneseq
  %v1100 = vshrl.u32 %v1099, 7
  %v1101 = vsub.s32 0, %v1100
  %v1102 = vrot.slane %v1097, %v1101
  %v1104 = vpack.i.b16 %v1085, %v1085
  %v1106 = vlaneseq
  %v1107 = vshrl.u32 %v1106, 7
  %v1108 = vsub.s32 0, %v1107
  %v1109 = vrot.slane %v1104, %v1108
  %v1111 = vpack.i.b16 %v1087, %v1087
  %v1113 = vlaneseq
  %v1114 = vshrl.u32 %v1113, 7
  %v1115 = vsub.s32 0, %v1114
  %v1116 = vrot.slane %v1111, %v1115
  %v1118 = vpack.i.b16 %v1070, %v1070
  %v1120 = vlaneseq
  %v1121 = vshrl.u32 %v1120, 7
  %v1122 = vsub.s32 0, %v1121
  %v1123 = vrot.slane %v1118, %v1122
  %v1125 = vpack.i.b16 %v1084, %v1084
  %v1127 = vlaneseq
  %v1128 = vshrl.u32 %v1127, 7
  %v1129 = vsub.s32 0, %v1128
  %v1130 = vrot.slane %v1125, %v1129
  %v1132 = vpack.i.b16 %v1086, %v1086
  %v1134 = vlaneseq
  %v1135 = vshrl.u32 %v1134, 7
  %v1136 = vsub.s32 0, %v1135
  %v1137 = vrot.slane %v1132, %v1136
  %v1139 = vpack.i.b16 %v1088, %v1088
  %v1141 = vlaneseq
  %v1142 = vshrl.u32 %v1141, 7
  %v1143 = vsub.s32 0, %v1142
  %v1144 = vrot.slane %v1139, %v1143
  %v1145 = vadd.bf16 %v1031, %v1095
  %v1146 = vadd.bf16 %v1032, %v1102
  %v1147 = vadd.bf16 %v1033, %v1109
  %v1148 = vadd.bf16 %v1034, %v1116
  %v1149 = vadd.bf16 %v1035, %v1123
  %v1150 = vadd.bf16 %v1036, %v1130
  %v1151 = vadd.bf16 %v1037, %v1137
  %v1152 = vadd.bf16 %v1038, %v1144
  %v1153 = vmax.bf16 %v1145, 0
  %v1154 = vmax.bf16 %v1146, 0
  %v1155 = vmax.bf16 %v1147, 0
  %v1156 = vmax.bf16 %v1148, 0
  %v1157 = vmax.bf16 %v1149, 0
  %v1158 = vmax.bf16 %v1150, 0
  %v1159 = vmax.bf16 %v1151, 0
  %v1160 = vmax.bf16 %v1152, 0
  %v1177 = vunpack.c.l.b16 %v168
  %v1178 = vunpack.c.l.b16 %v169
  %v1179 = vunpack.c.l.b16 %v170
  %v1180 = vunpack.c.l.b16 %v171
  %v1181 = vunpack.c.l.b16 %v172
  %v1182 = vunpack.c.l.b16 %v173
  %v1183 = vunpack.c.l.b16 %v174
  %v1184 = vunpack.c.l.b16 %v175
  %v1185 = vunpack.c.l.b16 %v176
  %v1186 = vunpack.c.l.b16 %v177
  %v1187 = vunpack.c.l.b16 %v178
  %v1188 = vunpack.c.l.b16 %v179
  %v1189 = vunpack.c.l.b16 %v180
  %v1190 = vunpack.c.l.b16 %v181
  %v1191 = vunpack.c.l.b16 %v182
  %v1192 = vunpack.c.l.b16 %v183
  %v1193 = vpack.c.b16 %v1178, %v1177
  %v1194 = vpack.c.b16 %v1180, %v1179
  %v1195 = vpack.c.b16 %v1182, %v1181
  %v1196 = vpack.c.b16 %v1184, %v1183
  %v1197 = vpack.c.b16 %v1186, %v1185
  %v1198 = vpack.c.b16 %v1188, %v1187
  %v1199 = vpack.c.b16 %v1190, %v1189
  %v1200 = vpack.c.b16 %v1192, %v1191
  %1209 = vmatprep.subr.bf16.mxu0 0
  %1210 = vmatpush1.bf16.msra.mxu0 %v1193
  %1211 = vmatprep.subr.bf16.mxu0 0
  %1212 = vmatpush1.bf16.msra.mxu0 %v1194
  %1213 = vmatprep.subr.bf16.mxu0 0
  %1214 = vmatpush1.bf16.msra.mxu0 %v1195
  %1215 = vmatprep.subr.bf16.mxu0 0
  %1216 = vmatpush1.bf16.msra.mxu0 %v1196
  %1217 = vmatprep.subr.bf16.mxu0 0
  %1218 = vmatpush1.bf16.msra.mxu0 %v1197
  %1219 = vmatprep.subr.bf16.mxu0 0
  %1220 = vmatpush1.bf16.msra.mxu0 %v1198
  %1221 = vmatprep.subr.bf16.mxu0 0
  %1222 = vmatpush1.bf16.msra.mxu0 %v1199
  %1223 = vmatprep.subr.bf16.mxu0 0
  %1224 = vmatpush1.bf16.msra.mxu0 %v1200
  %1225 = vmatprep.subr.bf16.mxu0 0
  %1226 = vmatpush1.bf16.msra.mxu0 0
  %1227 = vmatprep.subr.bf16.mxu0 0
  %1228 = vmatpush1.bf16.msra.mxu0 0
  %1229 = vmatprep.subr.bf16.mxu0 0
  %1230 = vmatpush1.bf16.msra.mxu0 0
  %1231 = vmatprep.subr.bf16.mxu0 0
  %1232 = vmatpush1.bf16.msra.mxu0 0
  %1233 = vmatprep.subr.bf16.mxu0 0
  %1234 = vmatpush1.bf16.msra.mxu0 0
  %1235 = vmatprep.subr.bf16.mxu0 0
  %1236 = vmatpush1.bf16.msra.mxu0 0
  %1237 = vmatprep.subr.bf16.mxu0 0
  %1238 = vmatpush1.bf16.msra.mxu0 0
  %1239 = vmatprep.subr.bf16.mxu0 0
  %1240 = vmatpush1.bf16.msra.mxu0 0
  %1241 = vmatprep.mubr.bf16.mxu0 0
  %1242 = vmatmul.mubr.bf16.gmra.mrb[0].mxu0 %v1153
  %v1243 = vpop.f32.mrb[0].mxu0
  %v1244 = vadd.f32 0.0, %v1243
  %v1245 = vpop.f32.mrb[0].mxu0
  %v1246 = vpop.f32.mrb[0].mxu0
  %v1247 = vpop.f32.mrb[0].mxu0
  %1248 = vdwg.mxu0
  %v1249 = vpack.c.bf16 %v1244, %v1244
  %v1251 = vpack.i.b16 %v184, %v184
  %v1253 = vlaneseq
  %v1254 = vshrl.u32 %v1253, 7
  %v1255 = vsub.s32 0, %v1254
  %v1256 = vrot.slane %v1251, %v1255
  %v1257 = vadd.bf16 %v1249, %v1256
  %v1258 = vmax.bf16 %v1257, 0
  %1259 = vmatprep.subr.bf16.mxu0 0
  %1260 = vmatpush1.bf16.msra.mxu0 %v1193
  %1261 = vmatprep.subr.bf16.mxu0 0
  %1262 = vmatpush1.bf16.msra.mxu0 %v1194
  %1263 = vmatprep.subr.bf16.mxu0 0
  %1264 = vmatpush1.bf16.msra.mxu0 %v1195
  %1265 = vmatprep.subr.bf16.mxu0 0
  %1266 = vmatpush1.bf16.msra.mxu0 %v1196
  %1267 = vmatprep.subr.bf16.mxu0 0
  %1268 = vmatpush1.bf16.msra.mxu0 %v1197
  %1269 = vmatprep.subr.bf16.mxu0 0
  %1270 = vmatpush1.bf16.msra.mxu0 %v1198
  %1271 = vmatprep.subr.bf16.mxu0 0
  %1272 = vmatpush1.bf16.msra.mxu0 %v1199
  %1273 = vmatprep.subr.bf16.mxu0 0
  %1274 = vmatpush1.bf16.msra.mxu0 %v1200
  %1275 = vmatprep.subr.bf16.mxu0 0
  %1276 = vmatpush1.bf16.msra.mxu0 0
  %1277 = vmatprep.subr.bf16.mxu0 0
  %1278 = vmatpush1.bf16.msra.mxu0 0
  %1279 = vmatprep.subr.bf16.mxu0 0
  %1280 = vmatpush1.bf16.msra.mxu0 0
  %1281 = vmatprep.subr.bf16.mxu0 0
  %1282 = vmatpush1.bf16.msra.mxu0 0
  %1283 = vmatprep.subr.bf16.mxu0 0
  %1284 = vmatpush1.bf16.msra.mxu0 0
  %1285 = vmatprep.subr.bf16.mxu0 0
  %1286 = vmatpush1.bf16.msra.mxu0 0
  %1287 = vmatprep.subr.bf16.mxu0 0
  %1288 = vmatpush1.bf16.msra.mxu0 0
  %1289 = vmatprep.subr.bf16.mxu0 0
  %1290 = vmatpush1.bf16.msra.mxu0 0
  %1291 = vmatprep.mubr.bf16.mxu0 0
  %1292 = vmatmul.mubr.bf16.gmra.mrb[0].mxu0 %v1154
  %v1293 = vpop.f32.mrb[0].mxu0
  %v1294 = vadd.f32 0.0, %v1293
  %v1295 = vpop.f32.mrb[0].mxu0
  %v1296 = vpop.f32.mrb[0].mxu0
  %v1297 = vpop.f32.mrb[0].mxu0
  %1298 = vdwg.mxu0
  %v1299 = vpack.c.bf16 %v1294, %v1294
  %v1300 = vadd.bf16 %v1299, %v1256
  %v1301 = vmax.bf16 %v1300, 0
  %v1302 = vmax.bf16 %v1258, %v1301
  %1303 = vmatprep.subr.bf16.mxu0 0
  %1304 = vmatpush1.bf16.msra.mxu0 %v1193
  %1305 = vmatprep.subr.bf16.mxu0 0
  %1306 = vmatpush1.bf16.msra.mxu0 %v1194
  %1307 = vmatprep.subr.bf16.mxu0 0
  %1308 = vmatpush1.bf16.msra.mxu0 %v1195
  %1309 = vmatprep.subr.bf16.mxu0 0
  %1310 = vmatpush1.bf16.msra.mxu0 %v1196
  %1311 = vmatprep.subr.bf16.mxu0 0
  %1312 = vmatpush1.bf16.msra.mxu0 %v1197
  %1313 = vmatprep.subr.bf16.mxu0 0
  %1314 = vmatpush1.bf16.msra.mxu0 %v1198
  %1315 = vmatprep.subr.bf16.mxu0 0
  %1316 = vmatpush1.bf16.msra.mxu0 %v1199
  %1317 = vmatprep.subr.bf16.mxu0 0
  %1318 = vmatpush1.bf16.msra.mxu0 %v1200
  %1319 = vmatprep.subr.bf16.mxu0 0
  %1320 = vmatpush1.bf16.msra.mxu0 0
  %1321 = vmatprep.subr.bf16.mxu0 0
  %1322 = vmatpush1.bf16.msra.mxu0 0
  %1323 = vmatprep.subr.bf16.mxu0 0
  %1324 = vmatpush1.bf16.msra.mxu0 0
  %1325 = vmatprep.subr.bf16.mxu0 0
  %1326 = vmatpush1.bf16.msra.mxu0 0
  %1327 = vmatprep.subr.bf16.mxu0 0
  %1328 = vmatpush1.bf16.msra.mxu0 0
  %1329 = vmatprep.subr.bf16.mxu0 0
  %1330 = vmatpush1.bf16.msra.mxu0 0
  %1331 = vmatprep.subr.bf16.mxu0 0
  %1332 = vmatpush1.bf16.msra.mxu0 0
  %1333 = vmatprep.subr.bf16.mxu0 0
  %1334 = vmatpush1.bf16.msra.mxu0 0
  %1335 = vmatprep.mubr.bf16.mxu0 0
  %1336 = vmatmul.mubr.bf16.gmra.mrb[0].mxu0 %v1155
  %v1337 = vpop.f32.mrb[0].mxu0
  %v1338 = vadd.f32 0.0, %v1337
  %v1339 = vpop.f32.mrb[0].mxu0
  %v1340 = vpop.f32.mrb[0].mxu0
  %v1341 = vpop.f32.mrb[0].mxu0
  %1342 = vdwg.mxu0
  %v1343 = vpack.c.bf16 %v1338, %v1338
  %v1344 = vadd.bf16 %v1343, %v1256
  %v1345 = vmax.bf16 %v1344, 0
  %1346 = vmatprep.subr.bf16.mxu0 0
  %1347 = vmatpush1.bf16.msra.mxu0 %v1193
  %1348 = vmatprep.subr.bf16.mxu0 0
  %1349 = vmatpush1.bf16.msra.mxu0 %v1194
  %1350 = vmatprep.subr.bf16.mxu0 0
  %1351 = vmatpush1.bf16.msra.mxu0 %v1195
  %1352 = vmatprep.subr.bf16.mxu0 0
  %1353 = vmatpush1.bf16.msra.mxu0 %v1196
  %1354 = vmatprep.subr.bf16.mxu0 0
  %1355 = vmatpush1.bf16.msra.mxu0 %v1197
  %1356 = vmatprep.subr.bf16.mxu0 0
  %1357 = vmatpush1.bf16.msra.mxu0 %v1198
  %1358 = vmatprep.subr.bf16.mxu0 0
  %1359 = vmatpush1.bf16.msra.mxu0 %v1199
  %1360 = vmatprep.subr.bf16.mxu0 0
  %1361 = vmatpush1.bf16.msra.mxu0 %v1200
  %1362 = vmatprep.subr.bf16.mxu0 0
  %1363 = vmatpush1.bf16.msra.mxu0 0
  %1364 = vmatprep.subr.bf16.mxu0 0
  %1365 = vmatpush1.bf16.msra.mxu0 0
  %1366 = vmatprep.subr.bf16.mxu0 0
  %1367 = vmatpush1.bf16.msra.mxu0 0
  %1368 = vmatprep.subr.bf16.mxu0 0
  %1369 = vmatpush1.bf16.msra.mxu0 0
  %1370 = vmatprep.subr.bf16.mxu0 0
  %1371 = vmatpush1.bf16.msra.mxu0 0
  %1372 = vmatprep.subr.bf16.mxu0 0
  %1373 = vmatpush1.bf16.msra.mxu0 0
  %1374 = vmatprep.subr.bf16.mxu0 0
  %1375 = vmatpush1.bf16.msra.mxu0 0
  %1376 = vmatprep.subr.bf16.mxu0 0
  %1377 = vmatpush1.bf16.msra.mxu0 0
  %1378 = vmatprep.mubr.bf16.mxu0 0
  %1379 = vmatmul.mubr.bf16.gmra.mrb[0].mxu0 %v1156
  %v1380 = vpop.f32.mrb[0].mxu0
  %v1381 = vadd.f32 0.0, %v1380
  %v1382 = vpop.f32.mrb[0].mxu0
  %v1383 = vpop.f32.mrb[0].mxu0
  %v1384 = vpop.f32.mrb[0].mxu0
  %1385 = vdwg.mxu0
  %v1386 = vpack.c.bf16 %v1381, %v1381
  %v1387 = vadd.bf16 %v1386, %v1256
  %v1388 = vmax.bf16 %v1387, 0
  %v1389 = vmax.bf16 %v1345, %v1388
  %v1406 = vunpack.c.l.b16 %v201
  %v1407 = vunpack.c.h.b16 %v201
  %v1408 = vunpack.c.l.b16 %v202
  %v1409 = vunpack.c.h.b16 %v202
  %v1410 = vunpack.c.l.b16 %v203
  %v1411 = vunpack.c.h.b16 %v203
  %v1412 = vunpack.c.l.b16 %v204
  %v1413 = vunpack.c.h.b16 %v204
  %v1414 = vunpack.c.l.b16 %v205
  %v1415 = vunpack.c.h.b16 %v205
  %v1416 = vunpack.c.l.b16 %v206
  %v1417 = vunpack.c.h.b16 %v206
  %v1418 = vunpack.c.l.b16 %v207
  %v1419 = vunpack.c.h.b16 %v207
  %v1420 = vunpack.c.l.b16 %v208
  %v1421 = vunpack.c.h.b16 %v208
  %v1422 = vunpack.c.l.b16 %v209
  %v1423 = vunpack.c.h.b16 %v209
  %v1424 = vunpack.c.l.b16 %v210
  %v1425 = vunpack.c.h.b16 %v210
  %v1426 = vunpack.c.l.b16 %v211
  %v1427 = vunpack.c.h.b16 %v211
  %v1428 = vunpack.c.l.b16 %v212
  %v1429 = vunpack.c.h.b16 %v212
  %v1430 = vunpack.c.l.b16 %v213
  %v1431 = vunpack.c.h.b16 %v213
  %v1432 = vunpack.c.l.b16 %v214
  %v1433 = vunpack.c.h.b16 %v214
  %v1434 = vunpack.c.l.b16 %v215
  %v1435 = vunpack.c.h.b16 %v215
  %v1436 = vunpack.c.l.b16 %v216
  %v1437 = vunpack.c.h.b16 %v216
  %v1438 = vpack.c.b16 %v1408, %v1406
  %v1439 = vpack.c.b16 %v1409, %v1407
  %v1440 = vpack.c.b16 %v1412, %v1410
  %v1441 = vpack.c.b16 %v1413, %v1411
  %v1442 = vpack.c.b16 %v1416, %v1414
  %v1443 = vpack.c.b16 %v1417, %v1415
  %v1444 = vpack.c.b16 %v1420, %v1418
  %v1445 = vpack.c.b16 %v1421, %v1419
  %v1446 = vpack.c.b16 %v1424, %v1422
  %v1447 = vpack.c.b16 %v1425, %v1423
  %v1448 = vpack.c.b16 %v1428, %v1426
  %v1449 = vpack.c.b16 %v1429, %v1427
  %v1450 = vpack.c.b16 %v1432, %v1430
  %v1451 = vpack.c.b16 %v1433, %v1431
  %v1452 = vpack.c.b16 %v1436, %v1434
  %v1453 = vpack.c.b16 %v1437, %v1435
  %1470 = vmatprep.subr.bf16.mxu0 %v1439
  %1471 = vmatpush1.bf16.msra.mxu0 %v1438
  %1472 = vmatprep.subr.bf16.mxu0 %v1441
  %1473 = vmatpush1.bf16.msra.mxu0 %v1440
  %1474 = vmatprep.subr.bf16.mxu0 %v1443
  %1475 = vmatpush1.bf16.msra.mxu0 %v1442
  %1476 = vmatprep.subr.bf16.mxu0 %v1445
  %1477 = vmatpush1.bf16.msra.mxu0 %v1444
  %1478 = vmatprep.subr.bf16.mxu0 %v1447
  %1479 = vmatpush1.bf16.msra.mxu0 %v1446
  %1480 = vmatprep.subr.bf16.mxu0 %v1449
  %1481 = vmatpush1.bf16.msra.mxu0 %v1448
  %1482 = vmatprep.subr.bf16.mxu0 %v1451
  %1483 = vmatpush1.bf16.msra.mxu0 %v1450
  %1484 = vmatprep.subr.bf16.mxu0 %v1453
  %1485 = vmatpush1.bf16.msra.mxu0 %v1452
  %1486 = vmatprep.subr.bf16.mxu0 0
  %1487 = vmatpush1.bf16.msra.mxu0 0
  %1488 = vmatprep.subr.bf16.mxu0 0
  %1489 = vmatpush1.bf16.msra.mxu0 0
  %1490 = vmatprep.subr.bf16.mxu0 0
  %1491 = vmatpush1.bf16.msra.mxu0 0
  %1492 = vmatprep.subr.bf16.mxu0 0
  %1493 = vmatpush1.bf16.msra.mxu0 0
  %1494 = vmatprep.subr.bf16.mxu0 0
  %1495 = vmatpush1.bf16.msra.mxu0 0
  %1496 = vmatprep.subr.bf16.mxu0 0
  %1497 = vmatpush1.bf16.msra.mxu0 0
  %1498 = vmatprep.subr.bf16.mxu0 0
  %1499 = vmatpush1.bf16.msra.mxu0 0
  %1500 = vmatprep.subr.bf16.mxu0 0
  %1501 = vmatpush1.bf16.msra.mxu0 0
  %1502 = vmatprep.mubr.bf16.mxu0 0
  %1503 = vmatmul.mubr.bf16.gmra.mrb[0].mxu0 %v1389
  %v1504 = vpop.f32.mrb[0].mxu0
  %v1505 = vadd.f32 0.0, %v1504
  %v1506 = vpop.f32.mrb[0].mxu0
  %v1507 = vadd.f32 0.0, %v1506
  %v1508 = vpop.f32.mrb[0].mxu0
  %v1509 = vpop.f32.mrb[0].mxu0
  %1510 = vdwg.mxu0
  %v1527 = vunpack.c.l.b16 %v185
  %v1528 = vunpack.c.h.b16 %v185
  %v1529 = vunpack.c.l.b16 %v186
  %v1530 = vunpack.c.h.b16 %v186
  %v1531 = vunpack.c.l.b16 %v187
  %v1532 = vunpack.c.h.b16 %v187
  %v1533 = vunpack.c.l.b16 %v188
  %v1534 = vunpack.c.h.b16 %v188
  %v1535 = vunpack.c.l.b16 %v189
  %v1536 = vunpack.c.h.b16 %v189
  %v1537 = vunpack.c.l.b16 %v190
  %v1538 = vunpack.c.h.b16 %v190
  %v1539 = vunpack.c.l.b16 %v191
  %v1540 = vunpack.c.h.b16 %v191
  %v1541 = vunpack.c.l.b16 %v192
  %v1542 = vunpack.c.h.b16 %v192
  %v1543 = vunpack.c.l.b16 %v193
  %v1544 = vunpack.c.h.b16 %v193
  %v1545 = vunpack.c.l.b16 %v194
  %v1546 = vunpack.c.h.b16 %v194
  %v1547 = vunpack.c.l.b16 %v195
  %v1548 = vunpack.c.h.b16 %v195
  %v1549 = vunpack.c.l.b16 %v196
  %v1550 = vunpack.c.h.b16 %v196
  %v1551 = vunpack.c.l.b16 %v197
  %v1552 = vunpack.c.h.b16 %v197
  %v1553 = vunpack.c.l.b16 %v198
  %v1554 = vunpack.c.h.b16 %v198
  %v1555 = vunpack.c.l.b16 %v199
  %v1556 = vunpack.c.h.b16 %v199
  %v1557 = vunpack.c.l.b16 %v200
  %v1558 = vunpack.c.h.b16 %v200
  %v1559 = vpack.c.b16 %v1529, %v1527
  %v1560 = vpack.c.b16 %v1530, %v1528
  %v1561 = vpack.c.b16 %v1533, %v1531
  %v1562 = vpack.c.b16 %v1534, %v1532
  %v1563 = vpack.c.b16 %v1537, %v1535
  %v1564 = vpack.c.b16 %v1538, %v1536
  %v1565 = vpack.c.b16 %v1541, %v1539
  %v1566 = vpack.c.b16 %v1542, %v1540
  %v1567 = vpack.c.b16 %v1545, %v1543
  %v1568 = vpack.c.b16 %v1546, %v1544
  %v1569 = vpack.c.b16 %v1549, %v1547
  %v1570 = vpack.c.b16 %v1550, %v1548
  %v1571 = vpack.c.b16 %v1553, %v1551
  %v1572 = vpack.c.b16 %v1554, %v1552
  %v1573 = vpack.c.b16 %v1557, %v1555
  %v1574 = vpack.c.b16 %v1558, %v1556
  %1591 = vmatprep.subr.bf16.mxu0 %v1560
  %1592 = vmatpush1.bf16.msra.mxu0 %v1559
  %1593 = vmatprep.subr.bf16.mxu0 %v1562
  %1594 = vmatpush1.bf16.msra.mxu0 %v1561
  %1595 = vmatprep.subr.bf16.mxu0 %v1564
  %1596 = vmatpush1.bf16.msra.mxu0 %v1563
  %1597 = vmatprep.subr.bf16.mxu0 %v1566
  %1598 = vmatpush1.bf16.msra.mxu0 %v1565
  %1599 = vmatprep.subr.bf16.mxu0 %v1568
  %1600 = vmatpush1.bf16.msra.mxu0 %v1567
  %1601 = vmatprep.subr.bf16.mxu0 %v1570
  %1602 = vmatpush1.bf16.msra.mxu0 %v1569
  %1603 = vmatprep.subr.bf16.mxu0 %v1572
  %1604 = vmatpush1.bf16.msra.mxu0 %v1571
  %1605 = vmatprep.subr.bf16.mxu0 %v1574
  %1606 = vmatpush1.bf16.msra.mxu0 %v1573
  %1607 = vmatprep.subr.bf16.mxu0 0
  %1608 = vmatpush1.bf16.msra.mxu0 0
  %1609 = vmatprep.subr.bf16.mxu0 0
  %1610 = vmatpush1.bf16.msra.mxu0 0
  %1611 = vmatprep.subr.bf16.mxu0 0
  %1612 = vmatpush1.bf16.msra.mxu0 0
  %1613 = vmatprep.subr.bf16.mxu0 0
  %1614 = vmatpush1.bf16.msra.mxu0 0
  %1615 = vmatprep.subr.bf16.mxu0 0
  %1616 = vmatpush1.bf16.msra.mxu0 0
  %1617 = vmatprep.subr.bf16.mxu0 0
  %1618 = vmatpush1.bf16.msra.mxu0 0
  %1619 = vmatprep.subr.bf16.mxu0 0
  %1620 = vmatpush1.bf16.msra.mxu0 0
  %1621 = vmatprep.subr.bf16.mxu0 0
  %1622 = vmatpush1.bf16.msra.mxu0 0
  %1623 = vmatprep.mubr.bf16.mxu0 0
  %1624 = vmatmul.mubr.bf16.gmra.mrb[0].mxu0 %v1302
  %v1625 = vpop.f32.mrb[0].mxu0
  %v1626 = vadd.f32 %v1505, %v1625
  %v1627 = vpop.f32.mrb[0].mxu0
  %v1628 = vadd.f32 %v1507, %v1627
  %v1629 = vpop.f32.mrb[0].mxu0
  %v1630 = vpop.f32.mrb[0].mxu0
  %1631 = vdwg.mxu0
  %v1632 = vpack.c.bf16 %v1626, %v1626
  %v1633 = vpack.c.bf16 %v1628, %v1628
  %v1636 = vunpack.c.l.s4 1966171168
  %v1637 = vunpack.c.0.s8 %v1636
  %v1638 = vlaneseq
  %v1639 = vshrl.u32 %v1638, 7
  %v1640 = vsub.s32 %v1637, %v1639
  %v1641 = vrot.slane %v217, %v1640
  %v1642 = vcombine.high %v1641, %v1641
  %v1644 = vunpack.c.l.s4 1966171168
  %v1645 = vunpack.c.0.s8 %v1644
  %v1646 = vlaneseq
  %v1647 = vshrl.u32 %v1646, 7
  %v1648 = vsub.s32 %v1645, %v1647
  %v1649 = vrot.slane %v1641, %v1648
  %v1651 = vunpack.c.l.s4 1966171168
  %v1652 = vunpack.c.0.s8 %v1651
  %v1653 = vlaneseq
  %v1654 = vshrl.u32 %v1653, 7
  %v1655 = vsub.s32 %v1652, %v1654
  %v1656 = vrot.slane %v1642, %v1655
  %v1658 = vpack.i.b16 %v1649, %v1649
  %v1660 = vlaneseq
  %v1661 = vshrl.u32 %v1660, 7
  %v1662 = vsub.s32 0, %v1661
  %v1663 = vrot.slane %v1658, %v1662
  %v1665 = vpack.i.b16 %v1656, %v1656
  %v1667 = vlaneseq
  %v1668 = vshrl.u32 %v1667, 7
  %v1669 = vsub.s32 0, %v1668
  %v1670 = vrot.slane %v1665, %v1669
  %v1671 = vadd.bf16 %v1632, %v1663
  %v1672 = vadd.bf16 %v1633, %v1670
  %v1673 = vmax.bf16 %v1671, 0
  %v1674 = vmax.bf16 %v1672, 0
  %1675 = vmatprep.subr.bf16.mxu0 0
  %1676 = vmatpush1.bf16.msra.mxu0 %v1193
  %1677 = vmatprep.subr.bf16.mxu0 0
  %1678 = vmatpush1.bf16.msra.mxu0 %v1194
  %1679 = vmatprep.subr.bf16.mxu0 0
  %1680 = vmatpush1.bf16.msra.mxu0 %v1195
  %1681 = vmatprep.subr.bf16.mxu0 0
  %1682 = vmatpush1.bf16.msra.mxu0 %v1196
  %1683 = vmatprep.subr.bf16.mxu0 0
  %1684 = vmatpush1.bf16.msra.mxu0 %v1197
  %1685 = vmatprep.subr.bf16.mxu0 0
  %1686 = vmatpush1.bf16.msra.mxu0 %v1198
  %1687 = vmatprep.subr.bf16.mxu0 0
  %1688 = vmatpush1.bf16.msra.mxu0 %v1199
  %1689 = vmatprep.subr.bf16.mxu0 0
  %1690 = vmatpush1.bf16.msra.mxu0 %v1200
  %1691 = vmatprep.subr.bf16.mxu0 0
  %1692 = vmatpush1.bf16.msra.mxu0 0
  %1693 = vmatprep.subr.bf16.mxu0 0
  %1694 = vmatpush1.bf16.msra.mxu0 0
  %1695 = vmatprep.subr.bf16.mxu0 0
  %1696 = vmatpush1.bf16.msra.mxu0 0
  %1697 = vmatprep.subr.bf16.mxu0 0
  %1698 = vmatpush1.bf16.msra.mxu0 0
  %1699 = vmatprep.subr.bf16.mxu0 0
  %1700 = vmatpush1.bf16.msra.mxu0 0
  %1701 = vmatprep.subr.bf16.mxu0 0
  %1702 = vmatpush1.bf16.msra.mxu0 0
  %1703 = vmatprep.subr.bf16.mxu0 0
  %1704 = vmatpush1.bf16.msra.mxu0 0
  %1705 = vmatprep.subr.bf16.mxu0 0
  %1706 = vmatpush1.bf16.msra.mxu0 0
  %1707 = vmatprep.mubr.bf16.mxu0 0
  %1708 = vmatmul.mubr.bf16.gmra.mrb[0].mxu0 %v1157
  %v1709 = vpop.f32.mrb[0].mxu0
  %v1710 = vadd.f32 0.0, %v1709
  %v1711 = vpop.f32.mrb[0].mxu0
  %v1712 = vpop.f32.mrb[0].mxu0
  %v1713 = vpop.f32.mrb[0].mxu0
  %1714 = vdwg.mxu0
  %v1715 = vpack.c.bf16 %v1710, %v1710
  %v1716 = vadd.bf16 %v1715, %v1256
  %v1717 = vmax.bf16 %v1716, 0
  %1718 = vmatprep.subr.bf16.mxu0 0
  %1719 = vmatpush1.bf16.msra.mxu0 %v1193
  %1720 = vmatprep.subr.bf16.mxu0 0
  %1721 = vmatpush1.bf16.msra.mxu0 %v1194
  %1722 = vmatprep.subr.bf16.mxu0 0
  %1723 = vmatpush1.bf16.msra.mxu0 %v1195
  %1724 = vmatprep.subr.bf16.mxu0 0
  %1725 = vmatpush1.bf16.msra.mxu0 %v1196
  %1726 = vmatprep.subr.bf16.mxu0 0
  %1727 = vmatpush1.bf16.msra.mxu0 %v1197
  %1728 = vmatprep.subr.bf16.mxu0 0
  %1729 = vmatpush1.bf16.msra.mxu0 %v1198
  %1730 = vmatprep.subr.bf16.mxu0 0
  %1731 = vmatpush1.bf16.msra.mxu0 %v1199
  %1732 = vmatprep.subr.bf16.mxu0 0
  %1733 = vmatpush1.bf16.msra.mxu0 %v1200
  %1734 = vmatprep.subr.bf16.mxu0 0
  %1735 = vmatpush1.bf16.msra.mxu0 0
  %1736 = vmatprep.subr.bf16.mxu0 0
  %1737 = vmatpush1.bf16.msra.mxu0 0
  %1738 = vmatprep.subr.bf16.mxu0 0
  %1739 = vmatpush1.bf16.msra.mxu0 0
  %1740 = vmatprep.subr.bf16.mxu0 0
  %1741 = vmatpush1.bf16.msra.mxu0 0
  %1742 = vmatprep.subr.bf16.mxu0 0
  %1743 = vmatpush1.bf16.msra.mxu0 0
  %1744 = vmatprep.subr.bf16.mxu0 0
  %1745 = vmatpush1.bf16.msra.mxu0 0
  %1746 = vmatprep.subr.bf16.mxu0 0
  %1747 = vmatpush1.bf16.msra.mxu0 0
  %1748 = vmatprep.subr.bf16.mxu0 0
  %1749 = vmatpush1.bf16.msra.mxu0 0
  %1750 = vmatprep.mubr.bf16.mxu0 0
  %1751 = vmatmul.mubr.bf16.gmra.mrb[0].mxu0 %v1158
  %v1752 = vpop.f32.mrb[0].mxu0
  %v1753 = vadd.f32 0.0, %v1752
  %v1754 = vpop.f32.mrb[0].mxu0
  %v1755 = vpop.f32.mrb[0].mxu0
  %v1756 = vpop.f32.mrb[0].mxu0
  %1757 = vdwg.mxu0
  %v1758 = vpack.c.bf16 %v1753, %v1753
  %v1759 = vadd.bf16 %v1758, %v1256
  %v1760 = vmax.bf16 %v1759, 0
  %v1761 = vmax.bf16 %v1717, %v1760
  %1762 = vmatprep.subr.bf16.mxu0 0
  %1763 = vmatpush1.bf16.msra.mxu0 %v1193
  %1764 = vmatprep.subr.bf16.mxu0 0
  %1765 = vmatpush1.bf16.msra.mxu0 %v1194
  %1766 = vmatprep.subr.bf16.mxu0 0
  %1767 = vmatpush1.bf16.msra.mxu0 %v1195
  %1768 = vmatprep.subr.bf16.mxu0 0
  %1769 = vmatpush1.bf16.msra.mxu0 %v1196
  %1770 = vmatprep.subr.bf16.mxu0 0
  %1771 = vmatpush1.bf16.msra.mxu0 %v1197
  %1772 = vmatprep.subr.bf16.mxu0 0
  %1773 = vmatpush1.bf16.msra.mxu0 %v1198
  %1774 = vmatprep.subr.bf16.mxu0 0
  %1775 = vmatpush1.bf16.msra.mxu0 %v1199
  %1776 = vmatprep.subr.bf16.mxu0 0
  %1777 = vmatpush1.bf16.msra.mxu0 %v1200
  %1778 = vmatprep.subr.bf16.mxu0 0
  %1779 = vmatpush1.bf16.msra.mxu0 0
  %1780 = vmatprep.subr.bf16.mxu0 0
  %1781 = vmatpush1.bf16.msra.mxu0 0
  %1782 = vmatprep.subr.bf16.mxu0 0
  %1783 = vmatpush1.bf16.msra.mxu0 0
  %1784 = vmatprep.subr.bf16.mxu0 0
  %1785 = vmatpush1.bf16.msra.mxu0 0
  %1786 = vmatprep.subr.bf16.mxu0 0
  %1787 = vmatpush1.bf16.msra.mxu0 0
  %1788 = vmatprep.subr.bf16.mxu0 0
  %1789 = vmatpush1.bf16.msra.mxu0 0
  %1790 = vmatprep.subr.bf16.mxu0 0
  %1791 = vmatpush1.bf16.msra.mxu0 0
  %1792 = vmatprep.subr.bf16.mxu0 0
  %1793 = vmatpush1.bf16.msra.mxu0 0
  %1794 = vmatprep.mubr.bf16.mxu0 0
  %1795 = vmatmul.mubr.bf16.gmra.mrb[0].mxu0 %v1159
  %v1796 = vpop.f32.mrb[0].mxu0
  %v1797 = vadd.f32 0.0, %v1796
  %v1798 = vpop.f32.mrb[0].mxu0
  %v1799 = vpop.f32.mrb[0].mxu0
  %v1800 = vpop.f32.mrb[0].mxu0
  %1801 = vdwg.mxu0
  %v1802 = vpack.c.bf16 %v1797, %v1797
  %v1803 = vadd.bf16 %v1802, %v1256
  %v1804 = vmax.bf16 %v1803, 0
  %1805 = vmatprep.subr.bf16.mxu0 0
  %1806 = vmatpush1.bf16.msra.mxu0 %v1193
  %1807 = vmatprep.subr.bf16.mxu0 0
  %1808 = vmatpush1.bf16.msra.mxu0 %v1194
  %1809 = vmatprep.subr.bf16.mxu0 0
  %1810 = vmatpush1.bf16.msra.mxu0 %v1195
  %1811 = vmatprep.subr.bf16.mxu0 0
  %1812 = vmatpush1.bf16.msra.mxu0 %v1196
  %1813 = vmatprep.subr.bf16.mxu0 0
  %1814 = vmatpush1.bf16.msra.mxu0 %v1197
  %1815 = vmatprep.subr.bf16.mxu0 0
  %1816 = vmatpush1.bf16.msra.mxu0 %v1198
  %1817 = vmatprep.subr.bf16.mxu0 0
  %1818 = vmatpush1.bf16.msra.mxu0 %v1199
  %1819 = vmatprep.subr.bf16.mxu0 0
  %1820 = vmatpush1.bf16.msra.mxu0 %v1200
  %1821 = vmatprep.subr.bf16.mxu0 0
  %1822 = vmatpush1.bf16.msra.mxu0 0
  %1823 = vmatprep.subr.bf16.mxu0 0
  %1824 = vmatpush1.bf16.msra.mxu0 0
  %1825 = vmatprep.subr.bf16.mxu0 0
  %1826 = vmatpush1.bf16.msra.mxu0 0
  %1827 = vmatprep.subr.bf16.mxu0 0
  %1828 = vmatpush1.bf16.msra.mxu0 0
  %1829 = vmatprep.subr.bf16.mxu0 0
  %1830 = vmatpush1.bf16.msra.mxu0 0
  %1831 = vmatprep.subr.bf16.mxu0 0
  %1832 = vmatpush1.bf16.msra.mxu0 0
  %1833 = vmatprep.subr.bf16.mxu0 0
  %1834 = vmatpush1.bf16.msra.mxu0 0
  %1835 = vmatprep.subr.bf16.mxu0 0
  %1836 = vmatpush1.bf16.msra.mxu0 0
  %1837 = vmatprep.mubr.bf16.mxu0 0
  %1838 = vmatmul.mubr.bf16.gmra.mrb[0].mxu0 %v1160
  %v1839 = vpop.f32.mrb[0].mxu0
  %v1840 = vadd.f32 0.0, %v1839
  %v1841 = vpop.f32.mrb[0].mxu0
  %v1842 = vpop.f32.mrb[0].mxu0
  %v1843 = vpop.f32.mrb[0].mxu0
  %1844 = vdwg.mxu0
  %v1845 = vpack.c.bf16 %v1840, %v1840
  %v1846 = vadd.bf16 %v1845, %v1256
  %v1847 = vmax.bf16 %v1846, 0
  %v1848 = vmax.bf16 %v1804, %v1847
  %1849 = vmatprep.subr.bf16.mxu0 %v1439
  %1850 = vmatpush1.bf16.msra.mxu0 %v1438
  %1851 = vmatprep.subr.bf16.mxu0 %v1441
  %1852 = vmatpush1.bf16.msra.mxu0 %v1440
  %1853 = vmatprep.subr.bf16.mxu0 %v1443
  %1854 = vmatpush1.bf16.msra.mxu0 %v1442
  %1855 = vmatprep.subr.bf16.mxu0 %v1445
  %1856 = vmatpush1.bf16.msra.mxu0 %v1444
  %1857 = vmatprep.subr.bf16.mxu0 %v1447
  %1858 = vmatpush1.bf16.msra.mxu0 %v1446
  %1859 = vmatprep.subr.bf16.mxu0 %v1449
  %1860 = vmatpush1.bf16.msra.mxu0 %v1448
  %1861 = vmatprep.subr.bf16.mxu0 %v1451
  %1862 = vmatpush1.bf16.msra.mxu0 %v1450
  %1863 = vmatprep.subr.bf16.mxu0 %v1453
  %1864 = vmatpush1.bf16.msra.mxu0 %v1452
  %1865 = vmatprep.subr.bf16.mxu0 0
  %1866 = vmatpush1.bf16.msra.mxu0 0
  %1867 = vmatprep.subr.bf16.mxu0 0
  %1868 = vmatpush1.bf16.msra.mxu0 0
  %1869 = vmatprep.subr.bf16.mxu0 0
  %1870 = vmatpush1.bf16.msra.mxu0 0
  %1871 = vmatprep.subr.bf16.mxu0 0
  %1872 = vmatpush1.bf16.msra.mxu0 0
  %1873 = vmatprep.subr.bf16.mxu0 0
  %1874 = vmatpush1.bf16.msra.mxu0 0
  %1875 = vmatprep.subr.bf16.mxu0 0
  %1876 = vmatpush1.bf16.msra.mxu0 0
  %1877 = vmatprep.subr.bf16.mxu0 0
  %1878 = vmatpush1.bf16.msra.mxu0 0
  %1879 = vmatprep.subr.bf16.mxu0 0
  %1880 = vmatpush1.bf16.msra.mxu0 0
  %1881 = vmatprep.mubr.bf16.mxu0 0
  %1882 = vmatmul.mubr.bf16.gmra.mrb[0].mxu0 %v1848
  %v1883 = vpop.f32.mrb[0].mxu0
  %v1884 = vadd.f32 0.0, %v1883
  %v1885 = vpop.f32.mrb[0].mxu0
  %v1886 = vadd.f32 0.0, %v1885
  %v1887 = vpop.f32.mrb[0].mxu0
  %v1888 = vpop.f32.mrb[0].mxu0
  %1889 = vdwg.mxu0
  %1890 = vmatprep.subr.bf16.mxu0 %v1560
  %1891 = vmatpush1.bf16.msra.mxu0 %v1559
  %1892 = vmatprep.subr.bf16.mxu0 %v1562
  %1893 = vmatpush1.bf16.msra.mxu0 %v1561
  %1894 = vmatprep.subr.bf16.mxu0 %v1564
  %1895 = vmatpush1.bf16.msra.mxu0 %v1563
  %1896 = vmatprep.subr.bf16.mxu0 %v1566
  %1897 = vmatpush1.bf16.msra.mxu0 %v1565
  %1898 = vmatprep.subr.bf16.mxu0 %v1568
  %1899 = vmatpush1.bf16.msra.mxu0 %v1567
  %1900 = vmatprep.subr.bf16.mxu0 %v1570
  %1901 = vmatpush1.bf16.msra.mxu0 %v1569
  %1902 = vmatprep.subr.bf16.mxu0 %v1572
  %1903 = vmatpush1.bf16.msra.mxu0 %v1571
  %1904 = vmatprep.subr.bf16.mxu0 %v1574
  %1905 = vmatpush1.bf16.msra.mxu0 %v1573
  %1906 = vmatprep.subr.bf16.mxu0 0
  %1907 = vmatpush1.bf16.msra.mxu0 0
  %1908 = vmatprep.subr.bf16.mxu0 0
  %1909 = vmatpush1.bf16.msra.mxu0 0
  %1910 = vmatprep.subr.bf16.mxu0 0
  %1911 = vmatpush1.bf16.msra.mxu0 0
  %1912 = vmatprep.subr.bf16.mxu0 0
  %1913 = vmatpush1.bf16.msra.mxu0 0
  %1914 = vmatprep.subr.bf16.mxu0 0
  %1915 = vmatpush1.bf16.msra.mxu0 0
  %1916 = vmatprep.subr.bf16.mxu0 0
  %1917 = vmatpush1.bf16.msra.mxu0 0
  %1918 = vmatprep.subr.bf16.mxu0 0
  %1919 = vmatpush1.bf16.msra.mxu0 0
  %1920 = vmatprep.subr.bf16.mxu0 0
  %1921 = vmatpush1.bf16.msra.mxu0 0
  %1922 = vmatprep.mubr.bf16.mxu0 0
  %1923 = vmatmul.mubr.bf16.gmra.mrb[0].mxu0 %v1761
  %v1924 = vpop.f32.mrb[0].mxu0
  %v1925 = vadd.f32 %v1884, %v1924
  %v1926 = vpop.f32.mrb[0].mxu0
  %v1927 = vadd.f32 %v1886, %v1926
  %v1928 = vpop.f32.mrb[0].mxu0
  %v1929 = vpop.f32.mrb[0].mxu0
  %1930 = vdwg.mxu0
  %v1931 = vpack.c.bf16 %v1925, %v1925
  %v1932 = vpack.c.bf16 %v1927, %v1927
  %v1933 = vadd.bf16 %v1931, %v1663
  %v1934 = vadd.bf16 %v1932, %v1670
  %v1935 = vmax.bf16 %v1933, 0
  %v1936 = vmax.bf16 %v1934, 0
  %v1937 = vmax.bf16 %v1673, %v1935
  %v1938 = vmax.bf16 %v1674, %v1936
  %v1939 = vld [vmem:[%s7] sm:$0xff]
  %v1940 = vld [vmem:[%s7 + $0x8] sm:$0xff]
  %v1941 = vld [vmem:[%s7 + $0x10] sm:$0xff]
  %v1942 = vld [vmem:[%s7 + $0x18] sm:$0xff]
  %v1943 = vld [vmem:[%s7 + $0x20] sm:$0xff]
  %v1944 = vld [vmem:[%s7 + $0x28] sm:$0xff]
  %v1945 = vld [vmem:[%s7 + $0x30] sm:$0xff]
  %v1946 = vld [vmem:[%s7 + $0x38] sm:$0xff]
  %v1947 = vld [vmem:[%s7 + $0x40] sm:$0xff]
  %v1948 = vld [vmem:[%s7 + $0x48] sm:$0xff]
  %v1949 = vld [vmem:[%s7 + $0x50] sm:$0xff]
  %v1950 = vld [vmem:[%s7 + $0x58] sm:$0xff]
  %v1951 = vld [vmem:[%s7 + $0x60] sm:$0xff]
  %v1952 = vld [vmem:[%s7 + $0x68] sm:$0xff]
  %v1953 = vld [vmem:[%s7 + $0x70] sm:$0xff]
  %v1954 = vld [vmem:[%s7 + $0x78] sm:$0xff]
  %v1955 = vld [vmem:[%s7 + $0x80] sm:$0xff]
  %v1956 = vld [vmem:[%s7 + $0x88] sm:$0xff]
  %v1957 = vld [vmem:[%s7 + $0x90] sm:$0xff]
  %v1958 = vld [vmem:[%s7 + $0x98] sm:$0xff]
  %v1959 = vld [vmem:[%s7 + $0xa0] sm:$0xff]
  %v1960 = vld [vmem:[%s7 + $0xa8] sm:$0xff]
  %v1961 = vld [vmem:[%s7 + $0xb0] sm:$0xff]
  %v1962 = vld [vmem:[%s7 + $0xb8] sm:$0xff]
  %v1963 = vld [vmem:[%s7 + $0xc0] sm:$0xff]
  %v1964 = vld [vmem:[%s7 + $0xc8] sm:$0xff]
  %v1965 = vld [vmem:[%s7 + $0xd0] sm:$0xff]
  %v1966 = vld [vmem:[%s7 + $0xd8] sm:$0xff]
  %v1967 = vld [vmem:[%s7 + $0xe0] sm:$0xff]
  %v1968 = vld [vmem:[%s7 + $0xe8] sm:$0xff]
  %v1969 = vld [vmem:[%s7 + $0xf0] sm:$0xff]
  %v1970 = vld [vmem:[%s7 + $0xf8] sm:$0xff]
  %v1971 = vld [vmem:[%s7 + $0x100] sm:$0xff]
  %v1972 = vld [vmem:[%s7 + $0x108] sm:$0xff]
  %v1973 = vld [vmem:[%s7 + $0x110] sm:$0xff]
  %v1974 = vld [vmem:[%s7 + $0x118] sm:$0xff]
  %v1975 = vld [vmem:[%s7 + $0x120] sm:$0xff]
  %v1976 = vld [vmem:[%s7 + $0x128] sm:$0xff]
  %v1977 = vld [vmem:[%s7 + $0x130] sm:$0xff]
  %v1978 = vld [vmem:[%s7 + $0x138] sm:$0xff]
  %v1979 = vld [vmem:[%s7 + $0x140] sm:$0xff]
  %v1980 = vld [vmem:[%s7 + $0x148] sm:$0xff]
  %v1981 = vld [vmem:[%s7 + $0x150] sm:$0xff]
  %v1982 = vld [vmem:[%s7 + $0x158] sm:$0xff]
  %v1983 = vld [vmem:[%s7 + $0x160] sm:$0xff]
  %v1984 = vld [vmem:[%s7 + $0x168] sm:$0xff]
  %v1985 = vld [vmem:[%s7 + $0x170] sm:$0xff]
  %v1986 = vld [vmem:[%s7 + $0x178] sm:$0xff]
  %v1987 = vld [vmem:[%s7 + $0x180] sm:$0xff]
  %v1988 = vld [vmem:[%s7 + $0x188] sm:$0xff]
  %v1989 = vld [vmem:[%s7 + $0x190] sm:$0xff]
  %v1990 = vld [vmem:[%s7 + $0x198] sm:$0xff]
  %v1991 = vld [vmem:[%s7 + $0x1a0] sm:$0xff]
  %v1992 = vld [vmem:[%s7 + $0x1a8] sm:$0xff]
  %v1993 = vld [vmem:[%s7 + $0x1b0] sm:$0xff]
  %v1994 = vld [vmem:[%s7 + $0x1b8] sm:$0xff]
  %v1995 = vld [vmem:[%s7 + $0x1c0] sm:$0xff]
  %v1996 = vld [vmem:[%s7 + $0x1c8] sm:$0xff]
  %v1997 = vld [vmem:[%s7 + $0x1d0] sm:$0xff]
  %v1998 = vld [vmem:[%s7 + $0x1d8] sm:$0xff]
  %v1999 = vld [vmem:[%s7 + $0x1e0] sm:$0xff]
  %v2000 = vld [vmem:[%s7 + $0x1e8] sm:$0xff]
  %v2001 = vld [vmem:[%s7 + $0x1f0] sm:$0xff]
  %v2002 = vld [vmem:[%s7 + $0x1f8] sm:$0xff]
  %v2067 = vunpack.c.l.b16 %v1939
  %v2068 = vunpack.c.h.b16 %v1939
  %v2069 = vunpack.c.l.b16 %v1940
  %v2070 = vunpack.c.h.b16 %v1940
  %v2071 = vunpack.c.l.b16 %v1941
  %v2072 = vunpack.c.h.b16 %v1941
  %v2073 = vunpack.c.l.b16 %v1942
  %v2074 = vunpack.c.h.b16 %v1942
  %v2075 = vunpack.c.l.b16 %v1943
  %v2076 = vunpack.c.h.b16 %v1943
  %v2077 = vunpack.c.l.b16 %v1944
  %v2078 = vunpack.c.h.b16 %v1944
  %v2079 = vunpack.c.l.b16 %v1945
  %v2080 = vunpack.c.h.b16 %v1945
  %v2081 = vunpack.c.l.b16 %v1946
  %v2082 = vunpack.c.h.b16 %v1946
  %v2083 = vunpack.c.l.b16 %v1947
  %v2084 = vunpack.c.h.b16 %v1947
  %v2085 = vunpack.c.l.b16 %v1948
  %v2086 = vunpack.c.h.b16 %v1948
  %v2087 = vunpack.c.l.b16 %v1949
  %v2088 = vunpack.c.h.b16 %v1949
  %v2089 = vunpack.c.l.b16 %v1950
  %v2090 = vunpack.c.h.b16 %v1950
  %v2091 = vunpack.c.l.b16 %v1951
  %v2092 = vunpack.c.h.b16 %v1951
  %v2093 = vunpack.c.l.b16 %v1952
  %v2094 = vunpack.c.h.b16 %v1952
  %v2095 = vunpack.c.l.b16 %v1953
  %v2096 = vunpack.c.h.b16 %v1953
  %v2097 = vunpack.c.l.b16 %v1954
  %v2098 = vunpack.c.h.b16 %v1954
  %v2099 = vunpack.c.l.b16 %v1955
  %v2100 = vunpack.c.h.b16 %v1955
  %v2101 = vunpack.c.l.b16 %v1956
  %v2102 = vunpack.c.h.b16 %v1956
  %v2103 = vunpack.c.l.b16 %v1957
  %v2104 = vunpack.c.h.b16 %v1957
  %v2105 = vunpack.c.l.b16 %v1958
  %v2106 = vunpack.c.h.b16 %v1958
  %v2107 = vunpack.c.l.b16 %v1959
  %v2108 = vunpack.c.h.b16 %v1959
  %v2109 = vunpack.c.l.b16 %v1960
  %v2110 = vunpack.c.h.b16 %v1960
  %v2111 = vunpack.c.l.b16 %v1961
  %v2112 = vunpack.c.h.b16 %v1961
  %v2113 = vunpack.c.l.b16 %v1962
  %v2114 = vunpack.c.h.b16 %v1962
  %v2115 = vunpack.c.l.b16 %v1963
  %v2116 = vunpack.c.h.b16 %v1963
  %v2117 = vunpack.c.l.b16 %v1964
  %v2118 = vunpack.c.h.b16 %v1964
  %v2119 = vunpack.c.l.b16 %v1965
  %v2120 = vunpack.c.h.b16 %v1965
  %v2121 = vunpack.c.l.b16 %v1966
  %v2122 = vunpack.c.h.b16 %v1966
  %v2123 = vunpack.c.l.b16 %v1967
  %v2124 = vunpack.c.h.b16 %v1967
  %v2125 = vunpack.c.l.b16 %v1968
  %v2126 = vunpack.c.h.b16 %v1968
  %v2127 = vunpack.c.l.b16 %v1969
  %v2128 = vunpack.c.h.b16 %v1969
  %v2129 = vunpack.c.l.b16 %v1970
  %v2130 = vunpack.c.h.b16 %v1970
  %v2131 = vunpack.c.l.b16 %v1971
  %v2132 = vunpack.c.h.b16 %v1971
  %v2133 = vunpack.c.l.b16 %v1972
  %v2134 = vunpack.c.h.b16 %v1972
  %v2135 = vunpack.c.l.b16 %v1973
  %v2136 = vunpack.c.h.b16 %v1973
  %v2137 = vunpack.c.l.b16 %v1974
  %v2138 = vunpack.c.h.b16 %v1974
  %v2139 = vunpack.c.l.b16 %v1975
  %v2140 = vunpack.c.h.b16 %v1975
  %v2141 = vunpack.c.l.b16 %v1976
  %v2142 = vunpack.c.h.b16 %v1976
  %v2143 = vunpack.c.l.b16 %v1977
  %v2144 = vunpack.c.h.b16 %v1977
  %v2145 = vunpack.c.l.b16 %v1978
  %v2146 = vunpack.c.h.b16 %v1978
  %v2147 = vunpack.c.l.b16 %v1979
  %v2148 = vunpack.c.h.b16 %v1979
  %v2149 = vunpack.c.l.b16 %v1980
  %v2150 = vunpack.c.h.b16 %v1980
  %v2151 = vunpack.c.l.b16 %v1981
  %v2152 = vunpack.c.h.b16 %v1981
  %v2153 = vunpack.c.l.b16 %v1982
  %v2154 = vunpack.c.h.b16 %v1982
  %v2155 = vunpack.c.l.b16 %v1983
  %v2156 = vunpack.c.h.b16 %v1983
  %v2157 = vunpack.c.l.b16 %v1984
  %v2158 = vunpack.c.h.b16 %v1984
  %v2159 = vunpack.c.l.b16 %v1985
  %v2160 = vunpack.c.h.b16 %v1985
  %v2161 = vunpack.c.l.b16 %v1986
  %v2162 = vunpack.c.h.b16 %v1986
  %v2163 = vunpack.c.l.b16 %v1987
  %v2164 = vunpack.c.h.b16 %v1987
  %v2165 = vunpack.c.l.b16 %v1988
  %v2166 = vunpack.c.h.b16 %v1988
  %v2167 = vunpack.c.l.b16 %v1989
  %v2168 = vunpack.c.h.b16 %v1989
  %v2169 = vunpack.c.l.b16 %v1990
  %v2170 = vunpack.c.h.b16 %v1990
  %v2171 = vunpack.c.l.b16 %v1991
  %v2172 = vunpack.c.h.b16 %v1991
  %v2173 = vunpack.c.l.b16 %v1992
  %v2174 = vunpack.c.h.b16 %v1992
  %v2175 = vunpack.c.l.b16 %v1993
  %v2176 = vunpack.c.h.b16 %v1993
  %v2177 = vunpack.c.l.b16 %v1994
  %v2178 = vunpack.c.h.b16 %v1994
  %v2179 = vunpack.c.l.b16 %v1995
  %v2180 = vunpack.c.h.b16 %v1995
  %v2181 = vunpack.c.l.b16 %v1996
  %v2182 = vunpack.c.h.b16 %v1996
  %v2183 = vunpack.c.l.b16 %v1997
  %v2184 = vunpack.c.h.b16 %v1997
  %v2185 = vunpack.c.l.b16 %v1998
  %v2186 = vunpack.c.h.b16 %v1998
  %v2187 = vunpack.c.l.b16 %v1999
  %v2188 = vunpack.c.h.b16 %v1999
  %v2189 = vunpack.c.l.b16 %v2000
  %v2190 = vunpack.c.h.b16 %v2000
  %v2191 = vunpack.c.l.b16 %v2001
  %v2192 = vunpack.c.h.b16 %v2001
  %v2193 = vunpack.c.l.b16 %v2002
  %v2194 = vunpack.c.h.b16 %v2002
  %v2195 = vpack.c.b16 %v2071, %v2067
  %v2196 = vpack.c.b16 %v2072, %v2068
  %v2197 = vpack.c.b16 %v2073, %v2069
  %v2198 = vpack.c.b16 %v2074, %v2070
  %v2199 = vpack.c.b16 %v2079, %v2075
  %v2200 = vpack.c.b16 %v2080, %v2076
  %v2201 = vpack.c.b16 %v2081, %v2077
  %v2202 = vpack.c.b16 %v2082, %v2078
  %v2203 = vpack.c.b16 %v2087, %v2083
  %v2204 = vpack.c.b16 %v2088, %v2084
  %v2205 = vpack.c.b16 %v2089, %v2085
  %v2206 = vpack.c.b16 %v2090, %v2086
  %v2207 = vpack.c.b16 %v2095, %v2091
  %v2208 = vpack.c.b16 %v2096, %v2092
  %v2209 = vpack.c.b16 %v2097, %v2093
  %v2210 = vpack.c.b16 %v2098, %v2094
  %v2211 = vpack.c.b16 %v2103, %v2099
  %v2212 = vpack.c.b16 %v2104, %v2100
  %v2213 = vpack.c.b16 %v2105, %v2101
  %v2214 = vpack.c.b16 %v2106, %v2102
  %v2215 = vpack.c.b16 %v2111, %v2107
  %v2216 = vpack.c.b16 %v2112, %v2108
  %v2217 = vpack.c.b16 %v2113, %v2109
  %v2218 = vpack.c.b16 %v2114, %v2110
  %v2219 = vpack.c.b16 %v2119, %v2115
  %v2220 = vpack.c.b16 %v2120, %v2116
  %v2221 = vpack.c.b16 %v2121, %v2117
  %v2222 = vpack.c.b16 %v2122, %v2118
  %v2223 = vpack.c.b16 %v2127, %v2123
  %v2224 = vpack.c.b16 %v2128, %v2124
  %v2225 = vpack.c.b16 %v2129, %v2125
  %v2226 = vpack.c.b16 %v2130, %v2126
  %v2227 = vpack.c.b16 %v2135, %v2131
  %v2228 = vpack.c.b16 %v2136, %v2132
  %v2229 = vpack.c.b16 %v2137, %v2133
  %v2230 = vpack.c.b16 %v2138, %v2134
  %v2231 = vpack.c.b16 %v2143, %v2139
  %v2232 = vpack.c.b16 %v2144, %v2140
  %v2233 = vpack.c.b16 %v2145, %v2141
  %v2234 = vpack.c.b16 %v2146, %v2142
  %v2235 = vpack.c.b16 %v2151, %v2147
  %v2236 = vpack.c.b16 %v2152, %v2148
  %v2237 = vpack.c.b16 %v2153, %v2149
  %v2238 = vpack.c.b16 %v2154, %v2150
  %v2239 = vpack.c.b16 %v2159, %v2155
  %v2240 = vpack.c.b16 %v2160, %v2156
  %v2241 = vpack.c.b16 %v2161, %v2157
  %v2242 = vpack.c.b16 %v2162, %v2158
  %v2243 = vpack.c.b16 %v2167, %v2163
  %v2244 = vpack.c.b16 %v2168, %v2164
  %v2245 = vpack.c.b16 %v2169, %v2165
  %v2246 = vpack.c.b16 %v2170, %v2166
  %v2247 = vpack.c.b16 %v2175, %v2171
  %v2248 = vpack.c.b16 %v2176, %v2172
  %v2249 = vpack.c.b16 %v2177, %v2173
  %v2250 = vpack.c.b16 %v2178, %v2174
  %v2251 = vpack.c.b16 %v2183, %v2179
  %v2252 = vpack.c.b16 %v2184, %v2180
  %v2253 = vpack.c.b16 %v2185, %v2181
  %v2254 = vpack.c.b16 %v2186, %v2182
  %v2255 = vpack.c.b16 %v2191, %v2187
  %v2256 = vpack.c.b16 %v2192, %v2188
  %v2257 = vpack.c.b16 %v2193, %v2189
  %v2258 = vpack.c.b16 %v2194, %v2190
  %2323 = vmatprep.subr.bf16.mxu0 %v2196
  %2324 = vmatpush1.bf16.msra.mxu0 %v2195
  %2325 = vmatprep.subr.bf16.mxu0 %v2200
  %2326 = vmatpush1.bf16.msra.mxu0 %v2199
  %2327 = vmatprep.subr.bf16.mxu0 %v2204
  %2328 = vmatpush1.bf16.msra.mxu0 %v2203
  %2329 = vmatprep.subr.bf16.mxu0 %v2208
  %2330 = vmatpush1.bf16.msra.mxu0 %v2207
  %2331 = vmatprep.subr.bf16.mxu0 %v2212
  %2332 = vmatpush1.bf16.msra.mxu0 %v2211
  %2333 = vmatprep.subr.bf16.mxu0 %v2216
  %2334 = vmatpush1.bf16.msra.mxu0 %v2215
  %2335 = vmatprep.subr.bf16.mxu0 %v2220
  %2336 = vmatpush1.bf16.msra.mxu0 %v2219
  %2337 = vmatprep.subr.bf16.mxu0 %v2224
  %2338 = vmatpush1.bf16.msra.mxu0 %v2223
  %2339 = vmatprep.subr.bf16.mxu0 %v2228
  %2340 = vmatpush1.bf16.msra.mxu0 %v2227
  %2341 = vmatprep.subr.bf16.mxu0 %v2232
  %2342 = vmatpush1.bf16.msra.mxu0 %v2231
  %2343 = vmatprep.subr.bf16.mxu0 %v2236
  %2344 = vmatpush1.bf16.msra.mxu0 %v2235
  %2345 = vmatprep.subr.bf16.mxu0 %v2240
  %2346 = vmatpush1.bf16.msra.mxu0 %v2239
  %2347 = vmatprep.subr.bf16.mxu0 %v2244
  %2348 = vmatpush1.bf16.msra.mxu0 %v2243
  %2349 = vmatprep.subr.bf16.mxu0 %v2248
  %2350 = vmatpush1.bf16.msra.mxu0 %v2247
  %2351 = vmatprep.subr.bf16.mxu0 %v2252
  %2352 = vmatpush1.bf16.msra.mxu0 %v2251
  %2353 = vmatprep.subr.bf16.mxu0 %v2256
  %2354 = vmatpush1.bf16.msra.mxu0 %v2255
  %2355 = vmatprep.mubr.bf16.mxu0 %v1938
  %2356 = vmatmul.mubr.bf16.gmra.mrb[0].mxu0 %v1937
  %v2357 = vpop.f32.mrb[0].mxu0
  %v2358 = vadd.f32 0.0, %v2357
  %v2359 = vpop.f32.mrb[0].mxu0
  %v2360 = vadd.f32 0.0, %v2359
  %v2361 = vpop.f32.mrb[0].mxu0
  %v2362 = vpop.f32.mrb[0].mxu0
  %2363 = vdwg.mxu0
  %2364 = vmatprep.subr.bf16.mxu0 %v2198
  %2365 = vmatpush1.bf16.msra.mxu0 %v2197
  %2366 = vmatprep.subr.bf16.mxu0 %v2202
  %2367 = vmatpush1.bf16.msra.mxu0 %v2201
  %2368 = vmatprep.subr.bf16.mxu0 %v2206
  %2369 = vmatpush1.bf16.msra.mxu0 %v2205
  %2370 = vmatprep.subr.bf16.mxu0 %v2210
  %2371 = vmatpush1.bf16.msra.mxu0 %v2209
  %2372 = vmatprep.subr.bf16.mxu0 %v2214
  %2373 = vmatpush1.bf16.msra.mxu0 %v2213
  %2374 = vmatprep.subr.bf16.mxu0 %v2218
  %2375 = vmatpush1.bf16.msra.mxu0 %v2217
  %2376 = vmatprep.subr.bf16.mxu0 %v2222
  %2377 = vmatpush1.bf16.msra.mxu0 %v2221
  %2378 = vmatprep.subr.bf16.mxu0 %v2226
  %2379 = vmatpush1.bf16.msra.mxu0 %v2225
  %2380 = vmatprep.subr.bf16.mxu0 %v2230
  %2381 = vmatpush1.bf16.msra.mxu0 %v2229
  %2382 = vmatprep.subr.bf16.mxu0 %v2234
  %2383 = vmatpush1.bf16.msra.mxu0 %v2233
  %2384 = vmatprep.subr.bf16.mxu0 %v2238
  %2385 = vmatpush1.bf16.msra.mxu0 %v2237
  %2386 = vmatprep.subr.bf16.mxu0 %v2242
  %2387 = vmatpush1.bf16.msra.mxu0 %v2241
  %2388 = vmatprep.subr.bf16.mxu0 %v2246
  %2389 = vmatpush1.bf16.msra.mxu0 %v2245
  %2390 = vmatprep.subr.bf16.mxu0 %v2250
  %2391 = vmatpush1.bf16.msra.mxu0 %v2249
  %2392 = vmatprep.subr.bf16.mxu0 %v2254
  %2393 = vmatpush1.bf16.msra.mxu0 %v2253
  %2394 = vmatprep.subr.bf16.mxu0 %v2258
  %2395 = vmatpush1.bf16.msra.mxu0 %v2257
  %2396 = vmatprep.mubr.bf16.mxu0 %v1938
  %2397 = vmatmul.mubr.bf16.gmra.mrb[0].mxu0 %v1937
  %v2398 = vpop.f32.mrb[0].mxu0
  %v2399 = vadd.f32 0.0, %v2398
  %v2400 = vpop.f32.mrb[0].mxu0
  %v2401 = vadd.f32 0.0, %v2400
  %v2402 = vpop.f32.mrb[0].mxu0
  %v2403 = vpop.f32.mrb[0].mxu0
  %2404 = vdwg.mxu0
  %v2406 = vlaneseq
  %v2407 = vshrl.u32 %v2406, 7
  %v2408 = vsub.s32 0, %v2407
  %v2409 = vrot.slane %v218, %v2408
  %v2410 = vlaneseq
  %v2411 = vshrl.u32 %v2410, 7
  %v2412 = vsub.s32 1, %v2411
  %v2413 = vrot.slane %v218, %v2412
  %v2414 = vlaneseq
  %v2415 = vshrl.u32 %v2414, 7
  %v2416 = vsub.s32 2, %v2415
  %v2417 = vrot.slane %v218, %v2416
  %v2418 = vlaneseq
  %v2419 = vshrl.u32 %v2418, 7
  %v2420 = vsub.s32 3, %v2419
  %v2421 = vrot.slane %v218, %v2420
  %v2426 = vadd.f32 %v2409, %v2358
  %v2427 = vadd.f32 %v2413, %v2360
  %v2428 = vadd.f32 %v2417, %v2399
  %v2429 = vadd.f32 %v2421, %v2401
  %s2430 = scalar_lea.vmem %s0, 8
  %v2431 = vld [vmem:[%s2430] sm:$0xff]
  %v2433 = vunpack.c.l.b16 %v2431
  %v2434 = vunpack.c.h.b16 %v2431
  %v2435 = vpack.c.b16 %v2433, %v2433
  %v2436 = vpack.c.b16 %v2434, %v2434
  %2439 = vmatprep.subr.bf16.mxu0 %v612
  %2440 = vmatpush1.bf16.msra.mxu0 %v611
  %2441 = vmatprep.subr.bf16.mxu0 %v620
  %2442 = vmatpush1.bf16.msra.mxu0 %v619
  %2443 = vmatprep.subr.bf16.mxu0 %v628
  %2444 = vmatpush1.bf16.msra.mxu0 %v627
  %2445 = vmatprep.subr.bf16.mxu0 %v636
  %2446 = vmatpush1.bf16.msra.mxu0 %v635
  %2447 = vmatprep.subr.bf16.mxu0 %v644
  %2448 = vmatpush1.bf16.msra.mxu0 %v643
  %2449 = vmatprep.subr.bf16.mxu0 %v652
  %2450 = vmatpush1.bf16.msra.mxu0 %v651
  %2451 = vmatprep.subr.bf16.mxu0 %v660
  %2452 = vmatpush1.bf16.msra.mxu0 %v659
  %2453 = vmatprep.subr.bf16.mxu0 %v668
  %2454 = vmatpush1.bf16.msra.mxu0 %v667
  %2455 = vmatprep.subr.bf16.mxu0 %v676
  %2456 = vmatpush1.bf16.msra.mxu0 %v675
  %2457 = vmatprep.subr.bf16.mxu0 %v684
  %2458 = vmatpush1.bf16.msra.mxu0 %v683
  %2459 = vmatprep.subr.bf16.mxu0 %v692
  %2460 = vmatpush1.bf16.msra.mxu0 %v691
  %2461 = vmatprep.subr.bf16.mxu0 %v700
  %2462 = vmatpush1.bf16.msra.mxu0 %v699
  %2463 = vmatprep.subr.bf16.mxu0 %v708
  %2464 = vmatpush1.bf16.msra.mxu0 %v707
  %2465 = vmatprep.subr.bf16.mxu0 %v716
  %2466 = vmatpush1.bf16.msra.mxu0 %v715
  %2467 = vmatprep.subr.bf16.mxu0 %v724
  %2468 = vmatpush1.bf16.msra.mxu0 %v723
  %2469 = vmatprep.subr.bf16.mxu0 %v732
  %2470 = vmatpush1.bf16.msra.mxu0 %v731
  %2471 = vmatprep.mubr.bf16.mxu0 %v2436
  %2472 = vmatmul.mubr.bf16.gmra.mrb[0].mxu0 %v2435
  %v2473 = vpop.f32.mrb[0].mxu0
  %v2474 = vadd.f32 0.0, %v2473
  %v2475 = vpop.f32.mrb[0].mxu0
  %v2476 = vadd.f32 0.0, %v2475
  %v2477 = vpop.f32.mrb[0].mxu0
  %v2478 = vpop.f32.mrb[0].mxu0
  %2479 = vdwg.mxu0
  %2480 = vmatprep.subr.bf16.mxu0 %v614
  %2481 = vmatpush1.bf16.msra.mxu0 %v613
  %2482 = vmatprep.subr.bf16.mxu0 %v622
  %2483 = vmatpush1.bf16.msra.mxu0 %v621
  %2484 = vmatprep.subr.bf16.mxu0 %v630
  %2485 = vmatpush1.bf16.msra.mxu0 %v629
  %2486 = vmatprep.subr.bf16.mxu0 %v638
  %2487 = vmatpush1.bf16.msra.mxu0 %v637
  %2488 = vmatprep.subr.bf16.mxu0 %v646
  %2489 = vmatpush1.bf16.msra.mxu0 %v645
  %2490 = vmatprep.subr.bf16.mxu0 %v654
  %2491 = vmatpush1.bf16.msra.mxu0 %v653
  %2492 = vmatprep.subr.bf16.mxu0 %v662
  %2493 = vmatpush1.bf16.msra.mxu0 %v661
  %2494 = vmatprep.subr.bf16.mxu0 %v670
  %2495 = vmatpush1.bf16.msra.mxu0 %v669
  %2496 = vmatprep.subr.bf16.mxu0 %v678
  %2497 = vmatpush1.bf16.msra.mxu0 %v677
  %2498 = vmatprep.subr.bf16.mxu0 %v686
  %2499 = vmatpush1.bf16.msra.mxu0 %v685
  %2500 = vmatprep.subr.bf16.mxu0 %v694
  %2501 = vmatpush1.bf16.msra.mxu0 %v693
  %2502 = vmatprep.subr.bf16.mxu0 %v702
  %2503 = vmatpush1.bf16.msra.mxu0 %v701
  %2504 = vmatprep.subr.bf16.mxu0 %v710
  %2505 = vmatpush1.bf16.msra.mxu0 %v709
  %2506 = vmatprep.subr.bf16.mxu0 %v718
  %2507 = vmatpush1.bf16.msra.mxu0 %v717
  %2508 = vmatprep.subr.bf16.mxu0 %v726
  %2509 = vmatpush1.bf16.msra.mxu0 %v725
  %2510 = vmatprep.subr.bf16.mxu0 %v734
  %2511 = vmatpush1.bf16.msra.mxu0 %v733
  %2512 = vmatprep.mubr.bf16.mxu0 %v2436
  %2513 = vmatmul.mubr.bf16.gmra.mrb[0].mxu0 %v2435
  %v2514 = vpop.f32.mrb[0].mxu0
  %v2515 = vadd.f32 0.0, %v2514
  %v2516 = vpop.f32.mrb[0].mxu0
  %v2517 = vadd.f32 0.0, %v2516
  %v2518 = vpop.f32.mrb[0].mxu0
  %v2519 = vpop.f32.mrb[0].mxu0
  %2520 = vdwg.mxu0
  %2521 = vmatprep.subr.bf16.mxu0 %v616
  %2522 = vmatpush1.bf16.msra.mxu0 %v615
  %2523 = vmatprep.subr.bf16.mxu0 %v624
  %2524 = vmatpush1.bf16.msra.mxu0 %v623
  %2525 = vmatprep.subr.bf16.mxu0 %v632
  %2526 = vmatpush1.bf16.msra.mxu0 %v631
  %2527 = vmatprep.subr.bf16.mxu0 %v640
  %2528 = vmatpush1.bf16.msra.mxu0 %v639
  %2529 = vmatprep.subr.bf16.mxu0 %v648
  %2530 = vmatpush1.bf16.msra.mxu0 %v647
  %2531 = vmatprep.subr.bf16.mxu0 %v656
  %2532 = vmatpush1.bf16.msra.mxu0 %v655
  %2533 = vmatprep.subr.bf16.mxu0 %v664
  %2534 = vmatpush1.bf16.msra.mxu0 %v663
  %2535 = vmatprep.subr.bf16.mxu0 %v672
  %2536 = vmatpush1.bf16.msra.mxu0 %v671
  %2537 = vmatprep.subr.bf16.mxu0 %v680
  %2538 = vmatpush1.bf16.msra.mxu0 %v679
  %2539 = vmatprep.subr.bf16.mxu0 %v688
  %2540 = vmatpush1.bf16.msra.mxu0 %v687
  %2541 = vmatprep.subr.bf16.mxu0 %v696
  %2542 = vmatpush1.bf16.msra.mxu0 %v695
  %2543 = vmatprep.subr.bf16.mxu0 %v704
  %2544 = vmatpush1.bf16.msra.mxu0 %v703
  %2545 = vmatprep.subr.bf16.mxu0 %v712
  %2546 = vmatpush1.bf16.msra.mxu0 %v711
  %2547 = vmatprep.subr.bf16.mxu0 %v720
  %2548 = vmatpush1.bf16.msra.mxu0 %v719
  %2549 = vmatprep.subr.bf16.mxu0 %v728
  %2550 = vmatpush1.bf16.msra.mxu0 %v727
  %2551 = vmatprep.subr.bf16.mxu0 %v736
  %2552 = vmatpush1.bf16.msra.mxu0 %v735
  %2553 = vmatprep.mubr.bf16.mxu0 %v2436
  %2554 = vmatmul.mubr.bf16.gmra.mrb[0].mxu0 %v2435
  %v2555 = vpop.f32.mrb[0].mxu0
  %v2556 = vadd.f32 0.0, %v2555
  %v2557 = vpop.f32.mrb[0].mxu0
  %v2558 = vadd.f32 0.0, %v2557
  %v2559 = vpop.f32.mrb[0].mxu0
  %v2560 = vpop.f32.mrb[0].mxu0
  %2561 = vdwg.mxu0
  %2562 = vmatprep.subr.bf16.mxu0 %v618
  %2563 = vmatpush1.bf16.msra.mxu0 %v617
  %2564 = vmatprep.subr.bf16.mxu0 %v626
  %2565 = vmatpush1.bf16.msra.mxu0 %v625
  %2566 = vmatprep.subr.bf16.mxu0 %v634
  %2567 = vmatpush1.bf16.msra.mxu0 %v633
  %2568 = vmatprep.subr.bf16.mxu0 %v642
  %2569 = vmatpush1.bf16.msra.mxu0 %v641
  %2570 = vmatprep.subr.bf16.mxu0 %v650
  %2571 = vmatpush1.bf16.msra.mxu0 %v649
  %2572 = vmatprep.subr.bf16.mxu0 %v658
  %2573 = vmatpush1.bf16.msra.mxu0 %v657
  %2574 = vmatprep.subr.bf16.mxu0 %v666
  %2575 = vmatpush1.bf16.msra.mxu0 %v665
  %2576 = vmatprep.subr.bf16.mxu0 %v674
  %2577 = vmatpush1.bf16.msra.mxu0 %v673
  %2578 = vmatprep.subr.bf16.mxu0 %v682
  %2579 = vmatpush1.bf16.msra.mxu0 %v681
  %2580 = vmatprep.subr.bf16.mxu0 %v690
  %2581 = vmatpush1.bf16.msra.mxu0 %v689
  %2582 = vmatprep.subr.bf16.mxu0 %v698
  %2583 = vmatpush1.bf16.msra.mxu0 %v697
  %2584 = vmatprep.subr.bf16.mxu0 %v706
  %2585 = vmatpush1.bf16.msra.mxu0 %v705
  %2586 = vmatprep.subr.bf16.mxu0 %v714
  %2587 = vmatpush1.bf16.msra.mxu0 %v713
  %2588 = vmatprep.subr.bf16.mxu0 %v722
  %2589 = vmatpush1.bf16.msra.mxu0 %v721
  %2590 = vmatprep.subr.bf16.mxu0 %v730
  %2591 = vmatpush1.bf16.msra.mxu0 %v729
  %2592 = vmatprep.subr.bf16.mxu0 %v738
  %2593 = vmatpush1.bf16.msra.mxu0 %v737
  %2594 = vmatprep.mubr.bf16.mxu0 %v2436
  %2595 = vmatmul.mubr.bf16.gmra.mrb[0].mxu0 %v2435
  %v2596 = vpop.f32.mrb[0].mxu0
  %v2597 = vadd.f32 0.0, %v2596
  %v2598 = vpop.f32.mrb[0].mxu0
  %v2599 = vadd.f32 0.0, %v2598
  %v2600 = vpop.f32.mrb[0].mxu0
  %v2601 = vpop.f32.mrb[0].mxu0
  %2602 = vdwg.mxu0
  %v2603 = vpack.c.bf16 %v2474, %v2474
  %v2604 = vpack.c.bf16 %v2476, %v2476
  %v2605 = vpack.c.bf16 %v2515, %v2515
  %v2606 = vpack.c.bf16 %v2517, %v2517
  %v2607 = vpack.c.bf16 %v2556, %v2556
  %v2608 = vpack.c.bf16 %v2558, %v2558
  %v2609 = vpack.c.bf16 %v2597, %v2597
  %v2610 = vpack.c.bf16 %v2599, %v2599
  %v2611 = vadd.bf16 %v2603, %v1095
  %v2612 = vadd.bf16 %v2604, %v1102
  %v2613 = vadd.bf16 %v2605, %v1109
  %v2614 = vadd.bf16 %v2606, %v1116
  %v2615 = vadd.bf16 %v2607, %v1123
  %v2616 = vadd.bf16 %v2608, %v1130
  %v2617 = vadd.bf16 %v2609, %v1137
  %v2618 = vadd.bf16 %v2610, %v1144
  %v2619 = vmax.bf16 %v2611, 0
  %v2620 = vmax.bf16 %v2612, 0
  %v2621 = vmax.bf16 %v2613, 0
  %v2622 = vmax.bf16 %v2614, 0
  %v2623 = vmax.bf16 %v2615, 0
  %v2624 = vmax.bf16 %v2616, 0
  %v2625 = vmax.bf16 %v2617, 0
  %v2626 = vmax.bf16 %v2618, 0
  %2627 = vmatprep.subr.bf16.mxu0 0
  %2628 = vmatpush1.bf16.msra.mxu0 %v1193
  %2629 = vmatprep.subr.bf16.mxu0 0
  %2630 = vmatpush1.bf16.msra.mxu0 %v1194
  %2631 = vmatprep.subr.bf16.mxu0 0
  %2632 = vmatpush1.bf16.msra.mxu0 %v1195
  %2633 = vmatprep.subr.bf16.mxu0 0
  %2634 = vmatpush1.bf16.msra.mxu0 %v1196
  %2635 = vmatprep.subr.bf16.mxu0 0
  %2636 = vmatpush1.bf16.msra.mxu0 %v1197
  %2637 = vmatprep.subr.bf16.mxu0 0
  %2638 = vmatpush1.bf16.msra.mxu0 %v1198
  %2639 = vmatprep.subr.bf16.mxu0 0
  %2640 = vmatpush1.bf16.msra.mxu0 %v1199
  %2641 = vmatprep.subr.bf16.mxu0 0
  %2642 = vmatpush1.bf16.msra.mxu0 %v1200
  %2643 = vmatprep.subr.bf16.mxu0 0
  %2644 = vmatpush1.bf16.msra.mxu0 0
  %2645 = vmatprep.subr.bf16.mxu0 0
  %2646 = vmatpush1.bf16.msra.mxu0 0
  %2647 = vmatprep.subr.bf16.mxu0 0
  %2648 = vmatpush1.bf16.msra.mxu0 0
  %2649 = vmatprep.subr.bf16.mxu0 0
  %2650 = vmatpush1.bf16.msra.mxu0 0
  %2651 = vmatprep.subr.bf16.mxu0 0
  %2652 = vmatpush1.bf16.msra.mxu0 0
  %2653 = vmatprep.subr.bf16.mxu0 0
  %2654 = vmatpush1.bf16.msra.mxu0 0
  %2655 = vmatprep.subr.bf16.mxu0 0
  %2656 = vmatpush1.bf16.msra.mxu0 0
  %2657 = vmatprep.subr.bf16.mxu0 0
  %2658 = vmatpush1.bf16.msra.mxu0 0
  %2659 = vmatprep.mubr.bf16.mxu0 0
  %2660 = vmatmul.mubr.bf16.gmra.mrb[0].mxu0 %v2619
  %v2661 = vpop.f32.mrb[0].mxu0
  %v2662 = vadd.f32 0.0, %v2661
  %v2663 = vpop.f32.mrb[0].mxu0
  %v2664 = vpop.f32.mrb[0].mxu0
  %v2665 = vpop.f32.mrb[0].mxu0
  %2666 = vdwg.mxu0
  %v2667 = vpack.c.bf16 %v2662, %v2662
  %v2668 = vadd.bf16 %v2667, %v1256
  %v2669 = vmax.bf16 %v2668, 0
  %2670 = vmatprep.subr.bf16.mxu0 0
  %2671 = vmatpush1.bf16.msra.mxu0 %v1193
  %2672 = vmatprep.subr.bf16.mxu0 0
  %2673 = vmatpush1.bf16.msra.mxu0 %v1194
  %2674 = vmatprep.subr.bf16.mxu0 0
  %2675 = vmatpush1.bf16.msra.mxu0 %v1195
  %2676 = vmatprep.subr.bf16.mxu0 0
  %2677 = vmatpush1.bf16.msra.mxu0 %v1196
  %2678 = vmatprep.subr.bf16.mxu0 0
  %2679 = vmatpush1.bf16.msra.mxu0 %v1197
  %2680 = vmatprep.subr.bf16.mxu0 0
  %2681 = vmatpush1.bf16.msra.mxu0 %v1198
  %2682 = vmatprep.subr.bf16.mxu0 0
  %2683 = vmatpush1.bf16.msra.mxu0 %v1199
  %2684 = vmatprep.subr.bf16.mxu0 0
  %2685 = vmatpush1.bf16.msra.mxu0 %v1200
  %2686 = vmatprep.subr.bf16.mxu0 0
  %2687 = vmatpush1.bf16.msra.mxu0 0
  %2688 = vmatprep.subr.bf16.mxu0 0
  %2689 = vmatpush1.bf16.msra.mxu0 0
  %2690 = vmatprep.subr.bf16.mxu0 0
  %2691 = vmatpush1.bf16.msra.mxu0 0
  %2692 = vmatprep.subr.bf16.mxu0 0
  %2693 = vmatpush1.bf16.msra.mxu0 0
  %2694 = vmatprep.subr.bf16.mxu0 0
  %2695 = vmatpush1.bf16.msra.mxu0 0
  %2696 = vmatprep.subr.bf16.mxu0 0
  %2697 = vmatpush1.bf16.msra.mxu0 0
  %2698 = vmatprep.subr.bf16.mxu0 0
  %2699 = vmatpush1.bf16.msra.mxu0 0
  %2700 = vmatprep.subr.bf16.mxu0 0
  %2701 = vmatpush1.bf16.msra.mxu0 0
  %2702 = vmatprep.mubr.bf16.mxu0 0
  %2703 = vmatmul.mubr.bf16.gmra.mrb[0].mxu0 %v2620
  %v2704 = vpop.f32.mrb[0].mxu0
  %v2705 = vadd.f32 0.0, %v2704
  %v2706 = vpop.f32.mrb[0].mxu0
  %v2707 = vpop.f32.mrb[0].mxu0
  %v2708 = vpop.f32.mrb[0].mxu0
  %2709 = vdwg.mxu0
  %v2710 = vpack.c.bf16 %v2705, %v2705
  %v2711 = vadd.bf16 %v2710, %v1256
  %v2712 = vmax.bf16 %v2711, 0
  %v2713 = vmax.bf16 %v2669, %v2712
  %2714 = vmatprep.subr.bf16.mxu0 0
  %2715 = vmatpush1.bf16.msra.mxu0 %v1193
  %2716 = vmatprep.subr.bf16.mxu0 0
  %2717 = vmatpush1.bf16.msra.mxu0 %v1194
  %2718 = vmatprep.subr.bf16.mxu0 0
  %2719 = vmatpush1.bf16.msra.mxu0 %v1195
  %2720 = vmatprep.subr.bf16.mxu0 0
  %2721 = vmatpush1.bf16.msra.mxu0 %v1196
  %2722 = vmatprep.subr.bf16.mxu0 0
  %2723 = vmatpush1.bf16.msra.mxu0 %v1197
  %2724 = vmatprep.subr.bf16.mxu0 0
  %2725 = vmatpush1.bf16.msra.mxu0 %v1198
  %2726 = vmatprep.subr.bf16.mxu0 0
  %2727 = vmatpush1.bf16.msra.mxu0 %v1199
  %2728 = vmatprep.subr.bf16.mxu0 0
  %2729 = vmatpush1.bf16.msra.mxu0 %v1200
  %2730 = vmatprep.subr.bf16.mxu0 0
  %2731 = vmatpush1.bf16.msra.mxu0 0
  %2732 = vmatprep.subr.bf16.mxu0 0
  %2733 = vmatpush1.bf16.msra.mxu0 0
  %2734 = vmatprep.subr.bf16.mxu0 0
  %2735 = vmatpush1.bf16.msra.mxu0 0
  %2736 = vmatprep.subr.bf16.mxu0 0
  %2737 = vmatpush1.bf16.msra.mxu0 0
  %2738 = vmatprep.subr.bf16.mxu0 0
  %2739 = vmatpush1.bf16.msra.mxu0 0
  %2740 = vmatprep.subr.bf16.mxu0 0
  %2741 = vmatpush1.bf16.msra.mxu0 0
  %2742 = vmatprep.subr.bf16.mxu0 0
  %2743 = vmatpush1.bf16.msra.mxu0 0
  %2744 = vmatprep.subr.bf16.mxu0 0
  %2745 = vmatpush1.bf16.msra.mxu0 0
  %2746 = vmatprep.mubr.bf16.mxu0 0
  %2747 = vmatmul.mubr.bf16.gmra.mrb[0].mxu0 %v2621
  %v2748 = vpop.f32.mrb[0].mxu0
  %v2749 = vadd.f32 0.0, %v2748
  %v2750 = vpop.f32.mrb[0].mxu0
  %v2751 = vpop.f32.mrb[0].mxu0
  %v2752 = vpop.f32.mrb[0].mxu0
  %2753 = vdwg.mxu0
  %v2754 = vpack.c.bf16 %v2749, %v2749
  %v2755 = vadd.bf16 %v2754, %v1256
  %v2756 = vmax.bf16 %v2755, 0
  %2757 = vmatprep.subr.bf16.mxu0 0
  %2758 = vmatpush1.bf16.msra.mxu0 %v1193
  %2759 = vmatprep.subr.bf16.mxu0 0
  %2760 = vmatpush1.bf16.msra.mxu0 %v1194
  %2761 = vmatprep.subr.bf16.mxu0 0
  %2762 = vmatpush1.bf16.msra.mxu0 %v1195
  %2763 = vmatprep.subr.bf16.mxu0 0
  %2764 = vmatpush1.bf16.msra.mxu0 %v1196
  %2765 = vmatprep.subr.bf16.mxu0 0
  %2766 = vmatpush1.bf16.msra.mxu0 %v1197
  %2767 = vmatprep.subr.bf16.mxu0 0
  %2768 = vmatpush1.bf16.msra.mxu0 %v1198
  %2769 = vmatprep.subr.bf16.mxu0 0
  %2770 = vmatpush1.bf16.msra.mxu0 %v1199
  %2771 = vmatprep.subr.bf16.mxu0 0
  %2772 = vmatpush1.bf16.msra.mxu0 %v1200
  %2773 = vmatprep.subr.bf16.mxu0 0
  %2774 = vmatpush1.bf16.msra.mxu0 0
  %2775 = vmatprep.subr.bf16.mxu0 0
  %2776 = vmatpush1.bf16.msra.mxu0 0
  %2777 = vmatprep.subr.bf16.mxu0 0
  %2778 = vmatpush1.bf16.msra.mxu0 0
  %2779 = vmatprep.subr.bf16.mxu0 0
  %2780 = vmatpush1.bf16.msra.mxu0 0
  %2781 = vmatprep.subr.bf16.mxu0 0
  %2782 = vmatpush1.bf16.msra.mxu0 0
  %2783 = vmatprep.subr.bf16.mxu0 0
  %2784 = vmatpush1.bf16.msra.mxu0 0
  %2785 = vmatprep.subr.bf16.mxu0 0
  %2786 = vmatpush1.bf16.msra.mxu0 0
  %2787 = vmatprep.subr.bf16.mxu0 0
  %2788 = vmatpush1.bf16.msra.mxu0 0
  %2789 = vmatprep.mubr.bf16.mxu0 0
  %2790 = vmatmul.mubr.bf16.gmra.mrb[0].mxu0 %v2622
  %v2791 = vpop.f32.mrb[0].mxu0
  %v2792 = vadd.f32 0.0, %v2791
  %v2793 = vpop.f32.mrb[0].mxu0
  %v2794 = vpop.f32.mrb[0].mxu0
  %v2795 = vpop.f32.mrb[0].mxu0
  %2796 = vdwg.mxu0
  %v2797 = vpack.c.bf16 %v2792, %v2792
  %v2798 = vadd.bf16 %v2797, %v1256
  %v2799 = vmax.bf16 %v2798, 0
  %v2800 = vmax.bf16 %v2756, %v2799
  %2801 = vmatprep.subr.bf16.mxu0 %v1439
  %2802 = vmatpush1.bf16.msra.mxu0 %v1438
  %2803 = vmatprep.subr.bf16.mxu0 %v1441
  %2804 = vmatpush1.bf16.msra.mxu0 %v1440
  %2805 = vmatprep.subr.bf16.mxu0 %v1443
  %2806 = vmatpush1.bf16.msra.mxu0 %v1442
  %2807 = vmatprep.subr.bf16.mxu0 %v1445
  %2808 = vmatpush1.bf16.msra.mxu0 %v1444
  %2809 = vmatprep.subr.bf16.mxu0 %v1447
  %2810 = vmatpush1.bf16.msra.mxu0 %v1446
  %2811 = vmatprep.subr.bf16.mxu0 %v1449
  %2812 = vmatpush1.bf16.msra.mxu0 %v1448
  %2813 = vmatprep.subr.bf16.mxu0 %v1451
  %2814 = vmatpush1.bf16.msra.mxu0 %v1450
  %2815 = vmatprep.subr.bf16.mxu0 %v1453
  %2816 = vmatpush1.bf16.msra.mxu0 %v1452
  %2817 = vmatprep.subr.bf16.mxu0 0
  %2818 = vmatpush1.bf16.msra.mxu0 0
  %2819 = vmatprep.subr.bf16.mxu0 0
  %2820 = vmatpush1.bf16.msra.mxu0 0
  %2821 = vmatprep.subr.bf16.mxu0 0
  %2822 = vmatpush1.bf16.msra.mxu0 0
  %2823 = vmatprep.subr.bf16.mxu0 0
  %2824 = vmatpush1.bf16.msra.mxu0 0
  %2825 = vmatprep.subr.bf16.mxu0 0
  %2826 = vmatpush1.bf16.msra.mxu0 0
  %2827 = vmatprep.subr.bf16.mxu0 0
  %2828 = vmatpush1.bf16.msra.mxu0 0
  %2829 = vmatprep.subr.bf16.mxu0 0
  %2830 = vmatpush1.bf16.msra.mxu0 0
  %2831 = vmatprep.subr.bf16.mxu0 0
  %2832 = vmatpush1.bf16.msra.mxu0 0
  %2833 = vmatprep.mubr.bf16.mxu0 0
  %2834 = vmatmul.mubr.bf16.gmra.mrb[0].mxu0 %v2800
  %v2835 = vpop.f32.mrb[0].mxu0
  %v2836 = vadd.f32 0.0, %v2835
  %v2837 = vpop.f32.mrb[0].mxu0
  %v2838 = vadd.f32 0.0, %v2837
  %v2839 = vpop.f32.mrb[0].mxu0
  %v2840 = vpop.f32.mrb[0].mxu0
  %2841 = vdwg.mxu0
  %2842 = vmatprep.subr.bf16.mxu0 %v1560
  %2843 = vmatpush1.bf16.msra.mxu0 %v1559
  %2844 = vmatprep.subr.bf16.mxu0 %v1562
  %2845 = vmatpush1.bf16.msra.mxu0 %v1561
  %2846 = vmatprep.subr.bf16.mxu0 %v1564
  %2847 = vmatpush1.bf16.msra.mxu0 %v1563
  %2848 = vmatprep.subr.bf16.mxu0 %v1566
  %2849 = vmatpush1.bf16.msra.mxu0 %v1565
  %2850 = vmatprep.subr.bf16.mxu0 %v1568
  %2851 = vmatpush1.bf16.msra.mxu0 %v1567
  %2852 = vmatprep.subr.bf16.mxu0 %v1570
  %2853 = vmatpush1.bf16.msra.mxu0 %v1569
  %2854 = vmatprep.subr.bf16.mxu0 %v1572
  %2855 = vmatpush1.bf16.msra.mxu0 %v1571
  %2856 = vmatprep.subr.bf16.mxu0 %v1574
  %2857 = vmatpush1.bf16.msra.mxu0 %v1573
  %2858 = vmatprep.subr.bf16.mxu0 0
  %2859 = vmatpush1.bf16.msra.mxu0 0
  %2860 = vmatprep.subr.bf16.mxu0 0
  %2861 = vmatpush1.bf16.msra.mxu0 0
  %2862 = vmatprep.subr.bf16.mxu0 0
  %2863 = vmatpush1.bf16.msra.mxu0 0
  %2864 = vmatprep.subr.bf16.mxu0 0
  %2865 = vmatpush1.bf16.msra.mxu0 0
  %2866 = vmatprep.subr.bf16.mxu0 0
  %2867 = vmatpush1.bf16.msra.mxu0 0
  %2868 = vmatprep.subr.bf16.mxu0 0
  %2869 = vmatpush1.bf16.msra.mxu0 0
  %2870 = vmatprep.subr.bf16.mxu0 0
  %2871 = vmatpush1.bf16.msra.mxu0 0
  %2872 = vmatprep.subr.bf16.mxu0 0
  %2873 = vmatpush1.bf16.msra.mxu0 0
  %2874 = vmatprep.mubr.bf16.mxu0 0
  %2875 = vmatmul.mubr.bf16.gmra.mrb[0].mxu0 %v2713
  %v2876 = vpop.f32.mrb[0].mxu0
  %v2877 = vadd.f32 %v2836, %v2876
  %v2878 = vpop.f32.mrb[0].mxu0
  %v2879 = vadd.f32 %v2838, %v2878
  %v2880 = vpop.f32.mrb[0].mxu0
  %v2881 = vpop.f32.mrb[0].mxu0
  %2882 = vdwg.mxu0
  %v2883 = vpack.c.bf16 %v2877, %v2877
  %v2884 = vpack.c.bf16 %v2879, %v2879
  %v2885 = vadd.bf16 %v2883, %v1663
  %v2886 = vadd.bf16 %v2884, %v1670
  %v2887 = vmax.bf16 %v2885, 0
  %v2888 = vmax.bf16 %v2886, 0
  %2889 = vmatprep.subr.bf16.mxu0 0
  %2890 = vmatpush1.bf16.msra.mxu0 %v1193
  %2891 = vmatprep.subr.bf16.mxu0 0
  %2892 = vmatpush1.bf16.msra.mxu0 %v1194
  %2893 = vmatprep.subr.bf16.mxu0 0
  %2894 = vmatpush1.bf16.msra.mxu0 %v1195
  %2895 = vmatprep.subr.bf16.mxu0 0
  %2896 = vmatpush1.bf16.msra.mxu0 %v1196
  %2897 = vmatprep.subr.bf16.mxu0 0
  %2898 = vmatpush1.bf16.msra.mxu0 %v1197
  %2899 = vmatprep.subr.bf16.mxu0 0
  %2900 = vmatpush1.bf16.msra.mxu0 %v1198
  %2901 = vmatprep.subr.bf16.mxu0 0
  %2902 = vmatpush1.bf16.msra.mxu0 %v1199
  %2903 = vmatprep.subr.bf16.mxu0 0
  %2904 = vmatpush1.bf16.msra.mxu0 %v1200
  %2905 = vmatprep.subr.bf16.mxu0 0
  %2906 = vmatpush1.bf16.msra.mxu0 0
  %2907 = vmatprep.subr.bf16.mxu0 0
  %2908 = vmatpush1.bf16.msra.mxu0 0
  %2909 = vmatprep.subr.bf16.mxu0 0
  %2910 = vmatpush1.bf16.msra.mxu0 0
  %2911 = vmatprep.subr.bf16.mxu0 0
  %2912 = vmatpush1.bf16.msra.mxu0 0
  %2913 = vmatprep.subr.bf16.mxu0 0
  %2914 = vmatpush1.bf16.msra.mxu0 0
  %2915 = vmatprep.subr.bf16.mxu0 0
  %2916 = vmatpush1.bf16.msra.mxu0 0
  %2917 = vmatprep.subr.bf16.mxu0 0
  %2918 = vmatpush1.bf16.msra.mxu0 0
  %2919 = vmatprep.subr.bf16.mxu0 0
  %2920 = vmatpush1.bf16.msra.mxu0 0
  %2921 = vmatprep.mubr.bf16.mxu0 0
  %2922 = vmatmul.mubr.bf16.gmra.mrb[0].mxu0 %v2623
  %v2923 = vpop.f32.mrb[0].mxu0
  %v2924 = vadd.f32 0.0, %v2923
  %v2925 = vpop.f32.mrb[0].mxu0
  %v2926 = vpop.f32.mrb[0].mxu0
  %v2927 = vpop.f32.mrb[0].mxu0
  %2928 = vdwg.mxu0
  %v2929 = vpack.c.bf16 %v2924, %v2924
  %v2930 = vadd.bf16 %v2929, %v1256
  %v2931 = vmax.bf16 %v2930, 0
  %2932 = vmatprep.subr.bf16.mxu0 0
  %2933 = vmatpush1.bf16.msra.mxu0 %v1193
  %2934 = vmatprep.subr.bf16.mxu0 0
  %2935 = vmatpush1.bf16.msra.mxu0 %v1194
  %2936 = vmatprep.subr.bf16.mxu0 0
  %2937 = vmatpush1.bf16.msra.mxu0 %v1195
  %2938 = vmatprep.subr.bf16.mxu0 0
  %2939 = vmatpush1.bf16.msra.mxu0 %v1196
  %2940 = vmatprep.subr.bf16.mxu0 0
  %2941 = vmatpush1.bf16.msra.mxu0 %v1197
  %2942 = vmatprep.subr.bf16.mxu0 0
  %2943 = vmatpush1.bf16.msra.mxu0 %v1198
  %2944 = vmatprep.subr.bf16.mxu0 0
  %2945 = vmatpush1.bf16.msra.mxu0 %v1199
  %2946 = vmatprep.subr.bf16.mxu0 0
  %2947 = vmatpush1.bf16.msra.mxu0 %v1200
  %2948 = vmatprep.subr.bf16.mxu0 0
  %2949 = vmatpush1.bf16.msra.mxu0 0
  %2950 = vmatprep.subr.bf16.mxu0 0
  %2951 = vmatpush1.bf16.msra.mxu0 0
  %2952 = vmatprep.subr.bf16.mxu0 0
  %2953 = vmatpush1.bf16.msra.mxu0 0
  %2954 = vmatprep.subr.bf16.mxu0 0
  %2955 = vmatpush1.bf16.msra.mxu0 0
  %2956 = vmatprep.subr.bf16.mxu0 0
  %2957 = vmatpush1.bf16.msra.mxu0 0
  %2958 = vmatprep.subr.bf16.mxu0 0
  %2959 = vmatpush1.bf16.msra.mxu0 0
  %2960 = vmatprep.subr.bf16.mxu0 0
  %2961 = vmatpush1.bf16.msra.mxu0 0
  %2962 = vmatprep.subr.bf16.mxu0 0
  %2963 = vmatpush1.bf16.msra.mxu0 0
  %2964 = vmatprep.mubr.bf16.mxu0 0
  %2965 = vmatmul.mubr.bf16.gmra.mrb[0].mxu0 %v2624
  %v2966 = vpop.f32.mrb[0].mxu0
  %v2967 = vadd.f32 0.0, %v2966
  %v2968 = vpop.f32.mrb[0].mxu0
  %v2969 = vpop.f32.mrb[0].mxu0
  %v2970 = vpop.f32.mrb[0].mxu0
  %2971 = vdwg.mxu0
  %v2972 = vpack.c.bf16 %v2967, %v2967
  %v2973 = vadd.bf16 %v2972, %v1256
  %v2974 = vmax.bf16 %v2973, 0
  %v2975 = vmax.bf16 %v2931, %v2974
  %2976 = vmatprep.subr.bf16.mxu0 0
  %2977 = vmatpush1.bf16.msra.mxu0 %v1193
  %2978 = vmatprep.subr.bf16.mxu0 0
  %2979 = vmatpush1.bf16.msra.mxu0 %v1194
  %2980 = vmatprep.subr.bf16.mxu0 0
  %2981 = vmatpush1.bf16.msra.mxu0 %v1195
  %2982 = vmatprep.subr.bf16.mxu0 0
  %2983 = vmatpush1.bf16.msra.mxu0 %v1196
  %2984 = vmatprep.subr.bf16.mxu0 0
  %2985 = vmatpush1.bf16.msra.mxu0 %v1197
  %2986 = vmatprep.subr.bf16.mxu0 0
  %2987 = vmatpush1.bf16.msra.mxu0 %v1198
  %2988 = vmatprep.subr.bf16.mxu0 0
  %2989 = vmatpush1.bf16.msra.mxu0 %v1199
  %2990 = vmatprep.subr.bf16.mxu0 0
  %2991 = vmatpush1.bf16.msra.mxu0 %v1200
  %2992 = vmatprep.subr.bf16.mxu0 0
  %2993 = vmatpush1.bf16.msra.mxu0 0
  %2994 = vmatprep.subr.bf16.mxu0 0
  %2995 = vmatpush1.bf16.msra.mxu0 0
  %2996 = vmatprep.subr.bf16.mxu0 0
  %2997 = vmatpush1.bf16.msra.mxu0 0
  %2998 = vmatprep.subr.bf16.mxu0 0
  %2999 = vmatpush1.bf16.msra.mxu0 0
  %3000 = vmatprep.subr.bf16.mxu0 0
  %3001 = vmatpush1.bf16.msra.mxu0 0
  %3002 = vmatprep.subr.bf16.mxu0 0
  %3003 = vmatpush1.bf16.msra.mxu0 0
  %3004 = vmatprep.subr.bf16.mxu0 0
  %3005 = vmatpush1.bf16.msra.mxu0 0
  %3006 = vmatprep.subr.bf16.mxu0 0
  %3007 = vmatpush1.bf16.msra.mxu0 0
  %3008 = vmatprep.mubr.bf16.mxu0 0
  %3009 = vmatmul.mubr.bf16.gmra.mrb[0].mxu0 %v2625
  %v3010 = vpop.f32.mrb[0].mxu0
  %v3011 = vadd.f32 0.0, %v3010
  %v3012 = vpop.f32.mrb[0].mxu0
  %v3013 = vpop.f32.mrb[0].mxu0
  %v3014 = vpop.f32.mrb[0].mxu0
  %3015 = vdwg.mxu0
  %v3016 = vpack.c.bf16 %v3011, %v3011
  %v3017 = vadd.bf16 %v3016, %v1256
  %v3018 = vmax.bf16 %v3017, 0
  %3019 = vmatprep.subr.bf16.mxu0 0
  %3020 = vmatpush1.bf16.msra.mxu0 %v1193
  %3021 = vmatprep.subr.bf16.mxu0 0
  %3022 = vmatpush1.bf16.msra.mxu0 %v1194
  %3023 = vmatprep.subr.bf16.mxu0 0
  %3024 = vmatpush1.bf16.msra.mxu0 %v1195
  %3025 = vmatprep.subr.bf16.mxu0 0
  %3026 = vmatpush1.bf16.msra.mxu0 %v1196
  %3027 = vmatprep.subr.bf16.mxu0 0
  %3028 = vmatpush1.bf16.msra.mxu0 %v1197
  %3029 = vmatprep.subr.bf16.mxu0 0
  %3030 = vmatpush1.bf16.msra.mxu0 %v1198
  %3031 = vmatprep.subr.bf16.mxu0 0
  %3032 = vmatpush1.bf16.msra.mxu0 %v1199
  %3033 = vmatprep.subr.bf16.mxu0 0
  %3034 = vmatpush1.bf16.msra.mxu0 %v1200
  %3035 = vmatprep.subr.bf16.mxu0 0
  %3036 = vmatpush1.bf16.msra.mxu0 0
  %3037 = vmatprep.subr.bf16.mxu0 0
  %3038 = vmatpush1.bf16.msra.mxu0 0
  %3039 = vmatprep.subr.bf16.mxu0 0
  %3040 = vmatpush1.bf16.msra.mxu0 0
  %3041 = vmatprep.subr.bf16.mxu0 0
  %3042 = vmatpush1.bf16.msra.mxu0 0
  %3043 = vmatprep.subr.bf16.mxu0 0
  %3044 = vmatpush1.bf16.msra.mxu0 0
  %3045 = vmatprep.subr.bf16.mxu0 0
  %3046 = vmatpush1.bf16.msra.mxu0 0
  %3047 = vmatprep.subr.bf16.mxu0 0
  %3048 = vmatpush1.bf16.msra.mxu0 0
  %3049 = vmatprep.subr.bf16.mxu0 0
  %3050 = vmatpush1.bf16.msra.mxu0 0
  %3051 = vmatprep.mubr.bf16.mxu0 0
  %3052 = vmatmul.mubr.bf16.gmra.mrb[0].mxu0 %v2626
  %v3053 = vpop.f32.mrb[0].mxu0
  %v3054 = vadd.f32 0.0, %v3053
  %v3055 = vpop.f32.mrb[0].mxu0
  %v3056 = vpop.f32.mrb[0].mxu0
  %v3057 = vpop.f32.mrb[0].mxu0
  %3058 = vdwg.mxu0
  %v3059 = vpack.c.bf16 %v3054, %v3054
  %v3060 = vadd.bf16 %v3059, %v1256
  %v3061 = vmax.bf16 %v3060, 0
  %v3062 = vmax.bf16 %v3018, %v3061
  %3063 = vmatprep.subr.bf16.mxu0 %v1439
  %3064 = vmatpush1.bf16.msra.mxu0 %v1438
  %3065 = vmatprep.subr.bf16.mxu0 %v1441
  %3066 = vmatpush1.bf16.msra.mxu0 %v1440
  %3067 = vmatprep.subr.bf16.mxu0 %v1443
  %3068 = vmatpush1.bf16.msra.mxu0 %v1442
  %3069 = vmatprep.subr.bf16.mxu0 %v1445
  %3070 = vmatpush1.bf16.msra.mxu0 %v1444
  %3071 = vmatprep.subr.bf16.mxu0 %v1447
  %3072 = vmatpush1.bf16.msra.mxu0 %v1446
  %3073 = vmatprep.subr.bf16.mxu0 %v1449
  %3074 = vmatpush1.bf16.msra.mxu0 %v1448
  %3075 = vmatprep.subr.bf16.mxu0 %v1451
  %3076 = vmatpush1.bf16.msra.mxu0 %v1450
  %3077 = vmatprep.subr.bf16.mxu0 %v1453
  %3078 = vmatpush1.bf16.msra.mxu0 %v1452
  %3079 = vmatprep.subr.bf16.mxu0 0
  %3080 = vmatpush1.bf16.msra.mxu0 0
  %3081 = vmatprep.subr.bf16.mxu0 0
  %3082 = vmatpush1.bf16.msra.mxu0 0
  %3083 = vmatprep.subr.bf16.mxu0 0
  %3084 = vmatpush1.bf16.msra.mxu0 0
  %3085 = vmatprep.subr.bf16.mxu0 0
  %3086 = vmatpush1.bf16.msra.mxu0 0
  %3087 = vmatprep.subr.bf16.mxu0 0
  %3088 = vmatpush1.bf16.msra.mxu0 0
  %3089 = vmatprep.subr.bf16.mxu0 0
  %3090 = vmatpush1.bf16.msra.mxu0 0
  %3091 = vmatprep.subr.bf16.mxu0 0
  %3092 = vmatpush1.bf16.msra.mxu0 0
  %3093 = vmatprep.subr.bf16.mxu0 0
  %3094 = vmatpush1.bf16.msra.mxu0 0
  %3095 = vmatprep.mubr.bf16.mxu0 0
  %3096 = vmatmul.mubr.bf16.gmra.mrb[0].mxu0 %v3062
  %v3097 = vpop.f32.mrb[0].mxu0
  %v3098 = vadd.f32 0.0, %v3097
  %v3099 = vpop.f32.mrb[0].mxu0
  %v3100 = vadd.f32 0.0, %v3099
  %v3101 = vpop.f32.mrb[0].mxu0
  %v3102 = vpop.f32.mrb[0].mxu0
  %3103 = vdwg.mxu0
  %3104 = vmatprep.subr.bf16.mxu0 %v1560
  %3105 = vmatpush1.bf16.msra.mxu0 %v1559
  %3106 = vmatprep.subr.bf16.mxu0 %v1562
  %3107 = vmatpush1.bf16.msra.mxu0 %v1561
  %3108 = vmatprep.subr.bf16.mxu0 %v1564
  %3109 = vmatpush1.bf16.msra.mxu0 %v1563
  %3110 = vmatprep.subr.bf16.mxu0 %v1566
  %3111 = vmatpush1.bf16.msra.mxu0 %v1565
  %3112 = vmatprep.subr.bf16.mxu0 %v1568
  %3113 = vmatpush1.bf16.msra.mxu0 %v1567
  %3114 = vmatprep.subr.bf16.mxu0 %v1570
  %3115 = vmatpush1.bf16.msra.mxu0 %v1569
  %3116 = vmatprep.subr.bf16.mxu0 %v1572
  %3117 = vmatpush1.bf16.msra.mxu0 %v1571
  %3118 = vmatprep.subr.bf16.mxu0 %v1574
  %3119 = vmatpush1.bf16.msra.mxu0 %v1573
  %3120 = vmatprep.subr.bf16.mxu0 0
  %3121 = vmatpush1.bf16.msra.mxu0 0
  %3122 = vmatprep.subr.bf16.mxu0 0
  %3123 = vmatpush1.bf16.msra.mxu0 0
  %3124 = vmatprep.subr.bf16.mxu0 0
  %3125 = vmatpush1.bf16.msra.mxu0 0
  %3126 = vmatprep.subr.bf16.mxu0 0
  %3127 = vmatpush1.bf16.msra.mxu0 0
  %3128 = vmatprep.subr.bf16.mxu0 0
  %3129 = vmatpush1.bf16.msra.mxu0 0
  %3130 = vmatprep.subr.bf16.mxu0 0
  %3131 = vmatpush1.bf16.msra.mxu0 0
  %3132 = vmatprep.subr.bf16.mxu0 0
  %3133 = vmatpush1.bf16.msra.mxu0 0
  %3134 = vmatprep.subr.bf16.mxu0 0
  %3135 = vmatpush1.bf16.msra.mxu0 0
  %3136 = vmatprep.mubr.bf16.mxu0 0
  %3137 = vmatmul.mubr.bf16.gmra.mrb[0].mxu0 %v2975
  %v3138 = vpop.f32.mrb[0].mxu0
  %v3139 = vadd.f32 %v3098, %v3138
  %v3140 = vpop.f32.mrb[0].mxu0
  %v3141 = vadd.f32 %v3100, %v3140
  %v3142 = vpop.f32.mrb[0].mxu0
  %v3143 = vpop.f32.mrb[0].mxu0
  %3144 = vdwg.mxu0
  %v3145 = vpack.c.bf16 %v3139, %v3139
  %v3146 = vpack.c.bf16 %v3141, %v3141
  %v3147 = vadd.bf16 %v3145, %v1663
  %v3148 = vadd.bf16 %v3146, %v1670
  %v3149 = vmax.bf16 %v3147, 0
  %v3150 = vmax.bf16 %v3148, 0
  %v3151 = vmax.bf16 %v2887, %v3149
  %v3152 = vmax.bf16 %v2888, %v3150
  %s3153 = scalar_lea.vmem %s7, 512
  %v3154 = vld [vmem:[%s3153] sm:$0xff]
  %v3155 = vld [vmem:[%s3153 + $0x8] sm:$0xff]
  %v3156 = vld [vmem:[%s3153 + $0x10] sm:$0xff]
  %v3157 = vld [vmem:[%s3153 + $0x18] sm:$0xff]
  %v3158 = vld [vmem:[%s3153 + $0x20] sm:$0xff]
  %v3159 = vld [vmem:[%s3153 + $0x28] sm:$0xff]
  %v3160 = vld [vmem:[%s3153 + $0x30] sm:$0xff]
  %v3161 = vld [vmem:[%s3153 + $0x38] sm:$0xff]
  %v3162 = vld [vmem:[%s3153 + $0x40] sm:$0xff]
  %v3163 = vld [vmem:[%s3153 + $0x48] sm:$0xff]
  %v3164 = vld [vmem:[%s3153 + $0x50] sm:$0xff]
  %v3165 = vld [vmem:[%s3153 + $0x58] sm:$0xff]
  %v3166 = vld [vmem:[%s3153 + $0x60] sm:$0xff]
  %v3167 = vld [vmem:[%s3153 + $0x68] sm:$0xff]
  %v3168 = vld [vmem:[%s3153 + $0x70] sm:$0xff]
  %v3169 = vld [vmem:[%s3153 + $0x78] sm:$0xff]
  %v3170 = vld [vmem:[%s3153 + $0x80] sm:$0xff]
  %v3171 = vld [vmem:[%s3153 + $0x88] sm:$0xff]
  %v3172 = vld [vmem:[%s3153 + $0x90] sm:$0xff]
  %v3173 = vld [vmem:[%s3153 + $0x98] sm:$0xff]
  %v3174 = vld [vmem:[%s3153 + $0xa0] sm:$0xff]
  %v3175 = vld [vmem:[%s3153 + $0xa8] sm:$0xff]
  %v3176 = vld [vmem:[%s3153 + $0xb0] sm:$0xff]
  %v3177 = vld [vmem:[%s3153 + $0xb8] sm:$0xff]
  %v3178 = vld [vmem:[%s3153 + $0xc0] sm:$0xff]
  %v3179 = vld [vmem:[%s3153 + $0xc8] sm:$0xff]
  %v3180 = vld [vmem:[%s3153 + $0xd0] sm:$0xff]
  %v3181 = vld [vmem:[%s3153 + $0xd8] sm:$0xff]
  %v3182 = vld [vmem:[%s3153 + $0xe0] sm:$0xff]
  %v3183 = vld [vmem:[%s3153 + $0xe8] sm:$0xff]
  %v3184 = vld [vmem:[%s3153 + $0xf0] sm:$0xff]
  %v3185 = vld [vmem:[%s3153 + $0xf8] sm:$0xff]
  %v3186 = vld [vmem:[%s3153 + $0x100] sm:$0xff]
  %v3187 = vld [vmem:[%s3153 + $0x108] sm:$0xff]
  %v3188 = vld [vmem:[%s3153 + $0x110] sm:$0xff]
  %v3189 = vld [vmem:[%s3153 + $0x118] sm:$0xff]
  %v3190 = vld [vmem:[%s3153 + $0x120] sm:$0xff]
  %v3191 = vld [vmem:[%s3153 + $0x128] sm:$0xff]
  %v3192 = vld [vmem:[%s3153 + $0x130] sm:$0xff]
  %v3193 = vld [vmem:[%s3153 + $0x138] sm:$0xff]
  %v3194 = vld [vmem:[%s3153 + $0x140] sm:$0xff]
  %v3195 = vld [vmem:[%s3153 + $0x148] sm:$0xff]
  %v3196 = vld [vmem:[%s3153 + $0x150] sm:$0xff]
  %v3197 = vld [vmem:[%s3153 + $0x158] sm:$0xff]
  %v3198 = vld [vmem:[%s3153 + $0x160] sm:$0xff]
  %v3199 = vld [vmem:[%s3153 + $0x168] sm:$0xff]
  %v3200 = vld [vmem:[%s3153 + $0x170] sm:$0xff]
  %v3201 = vld [vmem:[%s3153 + $0x178] sm:$0xff]
  %v3202 = vld [vmem:[%s3153 + $0x180] sm:$0xff]
  %v3203 = vld [vmem:[%s3153 + $0x188] sm:$0xff]
  %v3204 = vld [vmem:[%s3153 + $0x190] sm:$0xff]
  %v3205 = vld [vmem:[%s3153 + $0x198] sm:$0xff]
  %v3206 = vld [vmem:[%s3153 + $0x1a0] sm:$0xff]
  %v3207 = vld [vmem:[%s3153 + $0x1a8] sm:$0xff]
  %v3208 = vld [vmem:[%s3153 + $0x1b0] sm:$0xff]
  %v3209 = vld [vmem:[%s3153 + $0x1b8] sm:$0xff]
  %v3210 = vld [vmem:[%s3153 + $0x1c0] sm:$0xff]
  %v3211 = vld [vmem:[%s3153 + $0x1c8] sm:$0xff]
  %v3212 = vld [vmem:[%s3153 + $0x1d0] sm:$0xff]
  %v3213 = vld [vmem:[%s3153 + $0x1d8] sm:$0xff]
  %v3214 = vld [vmem:[%s3153 + $0x1e0] sm:$0xff]
  %v3215 = vld [vmem:[%s3153 + $0x1e8] sm:$0xff]
  %v3216 = vld [vmem:[%s3153 + $0x1f0] sm:$0xff]
  %v3217 = vld [vmem:[%s3153 + $0x1f8] sm:$0xff]
  %v3282 = vunpack.c.l.b16 %v3154
  %v3283 = vunpack.c.h.b16 %v3154
  %v3284 = vunpack.c.l.b16 %v3155
  %v3285 = vunpack.c.h.b16 %v3155
  %v3286 = vunpack.c.l.b16 %v3156
  %v3287 = vunpack.c.h.b16 %v3156
  %v3288 = vunpack.c.l.b16 %v3157
  %v3289 = vunpack.c.h.b16 %v3157
  %v3290 = vunpack.c.l.b16 %v3158
  %v3291 = vunpack.c.h.b16 %v3158
  %v3292 = vunpack.c.l.b16 %v3159
  %v3293 = vunpack.c.h.b16 %v3159
  %v3294 = vunpack.c.l.b16 %v3160
  %v3295 = vunpack.c.h.b16 %v3160
  %v3296 = vunpack.c.l.b16 %v3161
  %v3297 = vunpack.c.h.b16 %v3161
  %v3298 = vunpack.c.l.b16 %v3162
  %v3299 = vunpack.c.h.b16 %v3162
  %v3300 = vunpack.c.l.b16 %v3163
  %v3301 = vunpack.c.h.b16 %v3163
  %v3302 = vunpack.c.l.b16 %v3164
  %v3303 = vunpack.c.h.b16 %v3164
  %v3304 = vunpack.c.l.b16 %v3165
  %v3305 = vunpack.c.h.b16 %v3165
  %v3306 = vunpack.c.l.b16 %v3166
  %v3307 = vunpack.c.h.b16 %v3166
  %v3308 = vunpack.c.l.b16 %v3167
  %v3309 = vunpack.c.h.b16 %v3167
  %v3310 = vunpack.c.l.b16 %v3168
  %v3311 = vunpack.c.h.b16 %v3168
  %v3312 = vunpack.c.l.b16 %v3169
  %v3313 = vunpack.c.h.b16 %v3169
  %v3314 = vunpack.c.l.b16 %v3170
  %v3315 = vunpack.c.h.b16 %v3170
  %v3316 = vunpack.c.l.b16 %v3171
  %v3317 = vunpack.c.h.b16 %v3171
  %v3318 = vunpack.c.l.b16 %v3172
  %v3319 = vunpack.c.h.b16 %v3172
  %v3320 = vunpack.c.l.b16 %v3173
  %v3321 = vunpack.c.h.b16 %v3173
  %v3322 = vunpack.c.l.b16 %v3174
  %v3323 = vunpack.c.h.b16 %v3174
  %v3324 = vunpack.c.l.b16 %v3175
  %v3325 = vunpack.c.h.b16 %v3175
  %v3326 = vunpack.c.l.b16 %v3176
  %v3327 = vunpack.c.h.b16 %v3176
  %v3328 = vunpack.c.l.b16 %v3177
  %v3329 = vunpack.c.h.b16 %v3177
  %v3330 = vunpack.c.l.b16 %v3178
  %v3331 = vunpack.c.h.b16 %v3178
  %v3332 = vunpack.c.l.b16 %v3179
  %v3333 = vunpack.c.h.b16 %v3179
  %v3334 = vunpack.c.l.b16 %v3180
  %v3335 = vunpack.c.h.b16 %v3180
  %v3336 = vunpack.c.l.b16 %v3181
  %v3337 = vunpack.c.h.b16 %v3181
  %v3338 = vunpack.c.l.b16 %v3182
  %v3339 = vunpack.c.h.b16 %v3182
  %v3340 = vunpack.c.l.b16 %v3183
  %v3341 = vunpack.c.h.b16 %v3183
  %v3342 = vunpack.c.l.b16 %v3184
  %v3343 = vunpack.c.h.b16 %v3184
  %v3344 = vunpack.c.l.b16 %v3185
  %v3345 = vunpack.c.h.b16 %v3185
  %v3346 = vunpack.c.l.b16 %v3186
  %v3347 = vunpack.c.h.b16 %v3186
  %v3348 = vunpack.c.l.b16 %v3187
  %v3349 = vunpack.c.h.b16 %v3187
  %v3350 = vunpack.c.l.b16 %v3188
  %v3351 = vunpack.c.h.b16 %v3188
  %v3352 = vunpack.c.l.b16 %v3189
  %v3353 = vunpack.c.h.b16 %v3189
  %v3354 = vunpack.c.l.b16 %v3190
  %v3355 = vunpack.c.h.b16 %v3190
  %v3356 = vunpack.c.l.b16 %v3191
  %v3357 = vunpack.c.h.b16 %v3191
  %v3358 = vunpack.c.l.b16 %v3192
  %v3359 = vunpack.c.h.b16 %v3192
  %v3360 = vunpack.c.l.b16 %v3193
  %v3361 = vunpack.c.h.b16 %v3193
  %v3362 = vunpack.c.l.b16 %v3194
  %v3363 = vunpack.c.h.b16 %v3194
  %v3364 = vunpack.c.l.b16 %v3195
  %v3365 = vunpack.c.h.b16 %v3195
  %v3366 = vunpack.c.l.b16 %v3196
  %v3367 = vunpack.c.h.b16 %v3196
  %v3368 = vunpack.c.l.b16 %v3197
  %v3369 = vunpack.c.h.b16 %v3197
  %v3370 = vunpack.c.l.b16 %v3198
  %v3371 = vunpack.c.h.b16 %v3198
  %v3372 = vunpack.c.l.b16 %v3199
  %v3373 = vunpack.c.h.b16 %v3199
  %v3374 = vunpack.c.l.b16 %v3200
  %v3375 = vunpack.c.h.b16 %v3200
  %v3376 = vunpack.c.l.b16 %v3201
  %v3377 = vunpack.c.h.b16 %v3201
  %v3378 = vunpack.c.l.b16 %v3202
  %v3379 = vunpack.c.h.b16 %v3202
  %v3380 = vunpack.c.l.b16 %v3203
  %v3381 = vunpack.c.h.b16 %v3203
  %v3382 = vunpack.c.l.b16 %v3204
  %v3383 = vunpack.c.h.b16 %v3204
  %v3384 = vunpack.c.l.b16 %v3205
  %v3385 = vunpack.c.h.b16 %v3205
  %v3386 = vunpack.c.l.b16 %v3206
  %v3387 = vunpack.c.h.b16 %v3206
  %v3388 = vunpack.c.l.b16 %v3207
  %v3389 = vunpack.c.h.b16 %v3207
  %v3390 = vunpack.c.l.b16 %v3208
  %v3391 = vunpack.c.h.b16 %v3208
  %v3392 = vunpack.c.l.b16 %v3209
  %v3393 = vunpack.c.h.b16 %v3209
  %v3394 = vunpack.c.l.b16 %v3210
  %v3395 = vunpack.c.h.b16 %v3210
  %v3396 = vunpack.c.l.b16 %v3211
  %v3397 = vunpack.c.h.b16 %v3211
  %v3398 = vunpack.c.l.b16 %v3212
  %v3399 = vunpack.c.h.b16 %v3212
  %v3400 = vunpack.c.l.b16 %v3213
  %v3401 = vunpack.c.h.b16 %v3213
  %v3402 = vunpack.c.l.b16 %v3214
  %v3403 = vunpack.c.h.b16 %v3214
  %v3404 = vunpack.c.l.b16 %v3215
  %v3405 = vunpack.c.h.b16 %v3215
  %v3406 = vunpack.c.l.b16 %v3216
  %v3407 = vunpack.c.h.b16 %v3216
  %v3408 = vunpack.c.l.b16 %v3217
  %v3409 = vunpack.c.h.b16 %v3217
  %v3410 = vpack.c.b16 %v3286, %v3282
  %v3411 = vpack.c.b16 %v3287, %v3283
  %v3412 = vpack.c.b16 %v3288, %v3284
  %v3413 = vpack.c.b16 %v3289, %v3285
  %v3414 = vpack.c.b16 %v3294, %v3290
  %v3415 = vpack.c.b16 %v3295, %v3291
  %v3416 = vpack.c.b16 %v3296, %v3292
  %v3417 = vpack.c.b16 %v3297, %v3293
  %v3418 = vpack.c.b16 %v3302, %v3298
  %v3419 = vpack.c.b16 %v3303, %v3299
  %v3420 = vpack.c.b16 %v3304, %v3300
  %v3421 = vpack.c.b16 %v3305, %v3301
  %v3422 = vpack.c.b16 %v3310, %v3306
  %v3423 = vpack.c.b16 %v3311, %v3307
  %v3424 = vpack.c.b16 %v3312, %v3308
  %v3425 = vpack.c.b16 %v3313, %v3309
  %v3426 = vpack.c.b16 %v3318, %v3314
  %v3427 = vpack.c.b16 %v3319, %v3315
  %v3428 = vpack.c.b16 %v3320, %v3316
  %v3429 = vpack.c.b16 %v3321, %v3317
  %v3430 = vpack.c.b16 %v3326, %v3322
  %v3431 = vpack.c.b16 %v3327, %v3323
  %v3432 = vpack.c.b16 %v3328, %v3324
  %v3433 = vpack.c.b16 %v3329, %v3325
  %v3434 = vpack.c.b16 %v3334, %v3330
  %v3435 = vpack.c.b16 %v3335, %v3331
  %v3436 = vpack.c.b16 %v3336, %v3332
  %v3437 = vpack.c.b16 %v3337, %v3333
  %v3438 = vpack.c.b16 %v3342, %v3338
  %v3439 = vpack.c.b16 %v3343, %v3339
  %v3440 = vpack.c.b16 %v3344, %v3340
  %v3441 = vpack.c.b16 %v3345, %v3341
  %v3442 = vpack.c.b16 %v3350, %v3346
  %v3443 = vpack.c.b16 %v3351, %v3347
  %v3444 = vpack.c.b16 %v3352, %v3348
  %v3445 = vpack.c.b16 %v3353, %v3349
  %v3446 = vpack.c.b16 %v3358, %v3354
  %v3447 = vpack.c.b16 %v3359, %v3355
  %v3448 = vpack.c.b16 %v3360, %v3356
  %v3449 = vpack.c.b16 %v3361, %v3357
  %v3450 = vpack.c.b16 %v3366, %v3362
  %v3451 = vpack.c.b16 %v3367, %v3363
  %v3452 = vpack.c.b16 %v3368, %v3364
  %v3453 = vpack.c.b16 %v3369, %v3365
  %v3454 = vpack.c.b16 %v3374, %v3370
  %v3455 = vpack.c.b16 %v3375, %v3371
  %v3456 = vpack.c.b16 %v3376, %v3372
  %v3457 = vpack.c.b16 %v3377, %v3373
  %v3458 = vpack.c.b16 %v3382, %v3378
  %v3459 = vpack.c.b16 %v3383, %v3379
  %v3460 = vpack.c.b16 %v3384, %v3380
  %v3461 = vpack.c.b16 %v3385, %v3381
  %v3462 = vpack.c.b16 %v3390, %v3386
  %v3463 = vpack.c.b16 %v3391, %v3387
  %v3464 = vpack.c.b16 %v3392, %v3388
  %v3465 = vpack.c.b16 %v3393, %v3389
  %v3466 = vpack.c.b16 %v3398, %v3394
  %v3467 = vpack.c.b16 %v3399, %v3395
  %v3468 = vpack.c.b16 %v3400, %v3396
  %v3469 = vpack.c.b16 %v3401, %v3397
  %v3470 = vpack.c.b16 %v3406, %v3402
  %v3471 = vpack.c.b16 %v3407, %v3403
  %v3472 = vpack.c.b16 %v3408, %v3404
  %v3473 = vpack.c.b16 %v3409, %v3405
  %3538 = vmatprep.subr.bf16.mxu0 %v3411
  %3539 = vmatpush1.bf16.msra.mxu0 %v3410
  %3540 = vmatprep.subr.bf16.mxu0 %v3415
  %3541 = vmatpush1.bf16.msra.mxu0 %v3414
  %3542 = vmatprep.subr.bf16.mxu0 %v3419
  %3543 = vmatpush1.bf16.msra.mxu0 %v3418
  %3544 = vmatprep.subr.bf16.mxu0 %v3423
  %3545 = vmatpush1.bf16.msra.mxu0 %v3422
  %3546 = vmatprep.subr.bf16.mxu0 %v3427
  %3547 = vmatpush1.bf16.msra.mxu0 %v3426
  %3548 = vmatprep.subr.bf16.mxu0 %v3431
  %3549 = vmatpush1.bf16.msra.mxu0 %v3430
  %3550 = vmatprep.subr.bf16.mxu0 %v3435
  %3551 = vmatpush1.bf16.msra.mxu0 %v3434
  %3552 = vmatprep.subr.bf16.mxu0 %v3439
  %3553 = vmatpush1.bf16.msra.mxu0 %v3438
  %3554 = vmatprep.subr.bf16.mxu0 %v3443
  %3555 = vmatpush1.bf16.msra.mxu0 %v3442
  %3556 = vmatprep.subr.bf16.mxu0 %v3447
  %3557 = vmatpush1.bf16.msra.mxu0 %v3446
  %3558 = vmatprep.subr.bf16.mxu0 %v3451
  %3559 = vmatpush1.bf16.msra.mxu0 %v3450
  %3560 = vmatprep.subr.bf16.mxu0 %v3455
  %3561 = vmatpush1.bf16.msra.mxu0 %v3454
  %3562 = vmatprep.subr.bf16.mxu0 %v3459
  %3563 = vmatpush1.bf16.msra.mxu0 %v3458
  %3564 = vmatprep.subr.bf16.mxu0 %v3463
  %3565 = vmatpush1.bf16.msra.mxu0 %v3462
  %3566 = vmatprep.subr.bf16.mxu0 %v3467
  %3567 = vmatpush1.bf16.msra.mxu0 %v3466
  %3568 = vmatprep.subr.bf16.mxu0 %v3471
  %3569 = vmatpush1.bf16.msra.mxu0 %v3470
  %3570 = vmatprep.mubr.bf16.mxu0 %v3152
  %3571 = vmatmul.mubr.bf16.gmra.mrb[0].mxu0 %v3151
  %v3572 = vpop.f32.mrb[0].mxu0
  %v3573 = vadd.f32 0.0, %v3572
  %v3574 = vpop.f32.mrb[0].mxu0
  %v3575 = vadd.f32 0.0, %v3574
  %v3576 = vpop.f32.mrb[0].mxu0
  %v3577 = vpop.f32.mrb[0].mxu0
  %3578 = vdwg.mxu0
  %3579 = vmatprep.subr.bf16.mxu0 %v3413
  %3580 = vmatpush1.bf16.msra.mxu0 %v3412
  %3581 = vmatprep.subr.bf16.mxu0 %v3417
  %3582 = vmatpush1.bf16.msra.mxu0 %v3416
  %3583 = vmatprep.subr.bf16.mxu0 %v3421
  %3584 = vmatpush1.bf16.msra.mxu0 %v3420
  %3585 = vmatprep.subr.bf16.mxu0 %v3425
  %3586 = vmatpush1.bf16.msra.mxu0 %v3424
  %3587 = vmatprep.subr.bf16.mxu0 %v3429
  %3588 = vmatpush1.bf16.msra.mxu0 %v3428
  %3589 = vmatprep.subr.bf16.mxu0 %v3433
  %3590 = vmatpush1.bf16.msra.mxu0 %v3432
  %3591 = vmatprep.subr.bf16.mxu0 %v3437
  %3592 = vmatpush1.bf16.msra.mxu0 %v3436
  %3593 = vmatprep.subr.bf16.mxu0 %v3441
  %3594 = vmatpush1.bf16.msra.mxu0 %v3440
  %3595 = vmatprep.subr.bf16.mxu0 %v3445
  %3596 = vmatpush1.bf16.msra.mxu0 %v3444
  %3597 = vmatprep.subr.bf16.mxu0 %v3449
  %3598 = vmatpush1.bf16.msra.mxu0 %v3448
  %3599 = vmatprep.subr.bf16.mxu0 %v3453
  %3600 = vmatpush1.bf16.msra.mxu0 %v3452
  %3601 = vmatprep.subr.bf16.mxu0 %v3457
  %3602 = vmatpush1.bf16.msra.mxu0 %v3456
  %3603 = vmatprep.subr.bf16.mxu0 %v3461
  %3604 = vmatpush1.bf16.msra.mxu0 %v3460
  %3605 = vmatprep.subr.bf16.mxu0 %v3465
  %3606 = vmatpush1.bf16.msra.mxu0 %v3464
  %3607 = vmatprep.subr.bf16.mxu0 %v3469
  %3608 = vmatpush1.bf16.msra.mxu0 %v3468
  %3609 = vmatprep.subr.bf16.mxu0 %v3473
  %3610 = vmatpush1.bf16.msra.mxu0 %v3472
  %3611 = vmatprep.mubr.bf16.mxu0 %v3152
  %3612 = vmatmul.mubr.bf16.gmra.mrb[0].mxu0 %v3151
  %v3613 = vpop.f32.mrb[0].mxu0
  %v3614 = vadd.f32 0.0, %v3613
  %v3615 = vpop.f32.mrb[0].mxu0
  %v3616 = vadd.f32 0.0, %v3615
  %v3617 = vpop.f32.mrb[0].mxu0
  %v3618 = vpop.f32.mrb[0].mxu0
  %3619 = vdwg.mxu0
  %v3620 = vadd.f32 %v2426, %v3573
  %v3621 = vadd.f32 %v2427, %v3575
  %v3622 = vadd.f32 %v2428, %v3614
  %v3623 = vadd.f32 %v2429, %v3616
  %s3624 = scalar_lea.vmem %s0, 16
  %v3625 = vld [vmem:[%s3624] sm:$0xff]
  %v3627 = vunpack.c.l.b16 %v3625
  %v3628 = vunpack.c.h.b16 %v3625
  %v3629 = vpack.c.b16 %v3627, %v3627
  %v3630 = vpack.c.b16 %v3628, %v3628
  %3633 = vmatprep.subr.bf16.mxu0 %v612
  %3634 = vmatpush1.bf16.msra.mxu0 %v611
  %3635 = vmatprep.subr.bf16.mxu0 %v620
  %3636 = vmatpush1.bf16.msra.mxu0 %v619
  %3637 = vmatprep.subr.bf16.mxu0 %v628
  %3638 = vmatpush1.bf16.msra.mxu0 %v627
  %3639 = vmatprep.subr.bf16.mxu0 %v636
  %3640 = vmatpush1.bf16.msra.mxu0 %v635
  %3641 = vmatprep.subr.bf16.mxu0 %v644
  %3642 = vmatpush1.bf16.msra.mxu0 %v643
  %3643 = vmatprep.subr.bf16.mxu0 %v652
  %3644 = vmatpush1.bf16.msra.mxu0 %v651
  %3645 = vmatprep.subr.bf16.mxu0 %v660
  %3646 = vmatpush1.bf16.msra.mxu0 %v659
  %3647 = vmatprep.subr.bf16.mxu0 %v668
  %3648 = vmatpush1.bf16.msra.mxu0 %v667
  %3649 = vmatprep.subr.bf16.mxu0 %v676
  %3650 = vmatpush1.bf16.msra.mxu0 %v675
  %3651 = vmatprep.subr.bf16.mxu0 %v684
  %3652 = vmatpush1.bf16.msra.mxu0 %v683
  %3653 = vmatprep.subr.bf16.mxu0 %v692
  %3654 = vmatpush1.bf16.msra.mxu0 %v691
  %3655 = vmatprep.subr.bf16.mxu0 %v700
  %3656 = vmatpush1.bf16.msra.mxu0 %v699
  %3657 = vmatprep.subr.bf16.mxu0 %v708
  %3658 = vmatpush1.bf16.msra.mxu0 %v707
  %3659 = vmatprep.subr.bf16.mxu0 %v716
  %3660 = vmatpush1.bf16.msra.mxu0 %v715
  %3661 = vmatprep.subr.bf16.mxu0 %v724
  %3662 = vmatpush1.bf16.msra.mxu0 %v723
  %3663 = vmatprep.subr.bf16.mxu0 %v732
  %3664 = vmatpush1.bf16.msra.mxu0 %v731
  %3665 = vmatprep.mubr.bf16.mxu0 %v3630
  %3666 = vmatmul.mubr.bf16.gmra.mrb[0].mxu0 %v3629
  %v3667 = vpop.f32.mrb[0].mxu0
  %v3668 = vadd.f32 0.0, %v3667
  %v3669 = vpop.f32.mrb[0].mxu0
  %v3670 = vadd.f32 0.0, %v3669
  %v3671 = vpop.f32.mrb[0].mxu0
  %v3672 = vpop.f32.mrb[0].mxu0
  %3673 = vdwg.mxu0
  %3674 = vmatprep.subr.bf16.mxu0 %v614
  %3675 = vmatpush1.bf16.msra.mxu0 %v613
  %3676 = vmatprep.subr.bf16.mxu0 %v622
  %3677 = vmatpush1.bf16.msra.mxu0 %v621
  %3678 = vmatprep.subr.bf16.mxu0 %v630
  %3679 = vmatpush1.bf16.msra.mxu0 %v629
  %3680 = vmatprep.subr.bf16.mxu0 %v638
  %3681 = vmatpush1.bf16.msra.mxu0 %v637
  %3682 = vmatprep.subr.bf16.mxu0 %v646
  %3683 = vmatpush1.bf16.msra.mxu0 %v645
  %3684 = vmatprep.subr.bf16.mxu0 %v654
  %3685 = vmatpush1.bf16.msra.mxu0 %v653
  %3686 = vmatprep.subr.bf16.mxu0 %v662
  %3687 = vmatpush1.bf16.msra.mxu0 %v661
  %3688 = vmatprep.subr.bf16.mxu0 %v670
  %3689 = vmatpush1.bf16.msra.mxu0 %v669
  %3690 = vmatprep.subr.bf16.mxu0 %v678
  %3691 = vmatpush1.bf16.msra.mxu0 %v677
  %3692 = vmatprep.subr.bf16.mxu0 %v686
  %3693 = vmatpush1.bf16.msra.mxu0 %v685
  %3694 = vmatprep.subr.bf16.mxu0 %v694
  %3695 = vmatpush1.bf16.msra.mxu0 %v693
  %3696 = vmatprep.subr.bf16.mxu0 %v702
  %3697 = vmatpush1.bf16.msra.mxu0 %v701
  %3698 = vmatprep.subr.bf16.mxu0 %v710
  %3699 = vmatpush1.bf16.msra.mxu0 %v709
  %3700 = vmatprep.subr.bf16.mxu0 %v718
  %3701 = vmatpush1.bf16.msra.mxu0 %v717
  %3702 = vmatprep.subr.bf16.mxu0 %v726
  %3703 = vmatpush1.bf16.msra.mxu0 %v725
  %3704 = vmatprep.subr.bf16.mxu0 %v734
  %3705 = vmatpush1.bf16.msra.mxu0 %v733
  %3706 = vmatprep.mubr.bf16.mxu0 %v3630
  %3707 = vmatmul.mubr.bf16.gmra.mrb[0].mxu0 %v3629
  %v3708 = vpop.f32.mrb[0].mxu0
  %v3709 = vadd.f32 0.0, %v3708
  %v3710 = vpop.f32.mrb[0].mxu0
  %v3711 = vadd.f32 0.0, %v3710
  %v3712 = vpop.f32.mrb[0].mxu0
  %v3713 = vpop.f32.mrb[0].mxu0
  %3714 = vdwg.mxu0
  %3715 = vmatprep.subr.bf16.mxu0 %v616
  %3716 = vmatpush1.bf16.msra.mxu0 %v615
  %3717 = vmatprep.subr.bf16.mxu0 %v624
  %3718 = vmatpush1.bf16.msra.mxu0 %v623
  %3719 = vmatprep.subr.bf16.mxu0 %v632
  %3720 = vmatpush1.bf16.msra.mxu0 %v631
  %3721 = vmatprep.subr.bf16.mxu0 %v640
  %3722 = vmatpush1.bf16.msra.mxu0 %v639
  %3723 = vmatprep.subr.bf16.mxu0 %v648
  %3724 = vmatpush1.bf16.msra.mxu0 %v647
  %3725 = vmatprep.subr.bf16.mxu0 %v656
  %3726 = vmatpush1.bf16.msra.mxu0 %v655
  %3727 = vmatprep.subr.bf16.mxu0 %v664
  %3728 = vmatpush1.bf16.msra.mxu0 %v663
  %3729 = vmatprep.subr.bf16.mxu0 %v672
  %3730 = vmatpush1.bf16.msra.mxu0 %v671
  %3731 = vmatprep.subr.bf16.mxu0 %v680
  %3732 = vmatpush1.bf16.msra.mxu0 %v679
  %3733 = vmatprep.subr.bf16.mxu0 %v688
  %3734 = vmatpush1.bf16.msra.mxu0 %v687
  %3735 = vmatprep.subr.bf16.mxu0 %v696
  %3736 = vmatpush1.bf16.msra.mxu0 %v695
  %3737 = vmatprep.subr.bf16.mxu0 %v704
  %3738 = vmatpush1.bf16.msra.mxu0 %v703
  %3739 = vmatprep.subr.bf16.mxu0 %v712
  %3740 = vmatpush1.bf16.msra.mxu0 %v711
  %3741 = vmatprep.subr.bf16.mxu0 %v720
  %3742 = vmatpush1.bf16.msra.mxu0 %v719
  %3743 = vmatprep.subr.bf16.mxu0 %v728
  %3744 = vmatpush1.bf16.msra.mxu0 %v727
  %3745 = vmatprep.subr.bf16.mxu0 %v736
  %3746 = vmatpush1.bf16.msra.mxu0 %v735
  %3747 = vmatprep.mubr.bf16.mxu0 %v3630
  %3748 = vmatmul.mubr.bf16.gmra.mrb[0].mxu0 %v3629
  %v3749 = vpop.f32.mrb[0].mxu0
  %v3750 = vadd.f32 0.0, %v3749
  %v3751 = vpop.f32.mrb[0].mxu0
  %v3752 = vadd.f32 0.0, %v3751
  %v3753 = vpop.f32.mrb[0].mxu0
  %v3754 = vpop.f32.mrb[0].mxu0
  %3755 = vdwg.mxu0
  %3756 = vmatprep.subr.bf16.mxu0 %v618
  %3757 = vmatpush1.bf16.msra.mxu0 %v617
  %3758 = vmatprep.subr.bf16.mxu0 %v626
  %3759 = vmatpush1.bf16.msra.mxu0 %v625
  %3760 = vmatprep.subr.bf16.mxu0 %v634
  %3761 = vmatpush1.bf16.msra.mxu0 %v633
  %3762 = vmatprep.subr.bf16.mxu0 %v642
  %3763 = vmatpush1.bf16.msra.mxu0 %v641
  %3764 = vmatprep.subr.bf16.mxu0 %v650
  %3765 = vmatpush1.bf16.msra.mxu0 %v649
  %3766 = vmatprep.subr.bf16.mxu0 %v658
  %3767 = vmatpush1.bf16.msra.mxu0 %v657
  %3768 = vmatprep.subr.bf16.mxu0 %v666
  %3769 = vmatpush1.bf16.msra.mxu0 %v665
  %3770 = vmatprep.subr.bf16.mxu0 %v674
  %3771 = vmatpush1.bf16.msra.mxu0 %v673
  %3772 = vmatprep.subr.bf16.mxu0 %v682
  %3773 = vmatpush1.bf16.msra.mxu0 %v681
  %3774 = vmatprep.subr.bf16.mxu0 %v690
  %3775 = vmatpush1.bf16.msra.mxu0 %v689
  %3776 = vmatprep.subr.bf16.mxu0 %v698
  %3777 = vmatpush1.bf16.msra.mxu0 %v697
  %3778 = vmatprep.subr.bf16.mxu0 %v706
  %3779 = vmatpush1.bf16.msra.mxu0 %v705
  %3780 = vmatprep.subr.bf16.mxu0 %v714
  %3781 = vmatpush1.bf16.msra.mxu0 %v713
  %3782 = vmatprep.subr.bf16.mxu0 %v722
  %3783 = vmatpush1.bf16.msra.mxu0 %v721
  %3784 = vmatprep.subr.bf16.mxu0 %v730
  %3785 = vmatpush1.bf16.msra.mxu0 %v729
  %3786 = vmatprep.subr.bf16.mxu0 %v738
  %3787 = vmatpush1.bf16.msra.mxu0 %v737
  %3788 = vmatprep.mubr.bf16.mxu0 %v3630
  %3789 = vmatmul.mubr.bf16.gmra.mrb[0].mxu0 %v3629
  %v3790 = vpop.f32.mrb[0].mxu0
  %v3791 = vadd.f32 0.0, %v3790
  %v3792 = vpop.f32.mrb[0].mxu0
  %v3793 = vadd.f32 0.0, %v3792
  %v3794 = vpop.f32.mrb[0].mxu0
  %v3795 = vpop.f32.mrb[0].mxu0
  %3796 = vdwg.mxu0
  %v3797 = vpack.c.bf16 %v3668, %v3668
  %v3798 = vpack.c.bf16 %v3670, %v3670
  %v3799 = vpack.c.bf16 %v3709, %v3709
  %v3800 = vpack.c.bf16 %v3711, %v3711
  %v3801 = vpack.c.bf16 %v3750, %v3750
  %v3802 = vpack.c.bf16 %v3752, %v3752
  %v3803 = vpack.c.bf16 %v3791, %v3791
  %v3804 = vpack.c.bf16 %v3793, %v3793
  %v3805 = vadd.bf16 %v3797, %v1095
  %v3806 = vadd.bf16 %v3798, %v1102
  %v3807 = vadd.bf16 %v3799, %v1109
  %v3808 = vadd.bf16 %v3800, %v1116
  %v3809 = vadd.bf16 %v3801, %v1123
  %v3810 = vadd.bf16 %v3802, %v1130
  %v3811 = vadd.bf16 %v3803, %v1137
  %v3812 = vadd.bf16 %v3804, %v1144
  %v3813 = vmax.bf16 %v3805, 0
  %v3814 = vmax.bf16 %v3806, 0
  %v3815 = vmax.bf16 %v3807, 0
  %v3816 = vmax.bf16 %v3808, 0
  %v3817 = vmax.bf16 %v3809, 0
  %v3818 = vmax.bf16 %v3810, 0
  %v3819 = vmax.bf16 %v3811, 0
  %v3820 = vmax.bf16 %v3812, 0
  %3821 = vmatprep.subr.bf16.mxu0 0
  %3822 = vmatpush1.bf16.msra.mxu0 %v1193
  %3823 = vmatprep.subr.bf16.mxu0 0
  %3824 = vmatpush1.bf16.msra.mxu0 %v1194
  %3825 = vmatprep.subr.bf16.mxu0 0
  %3826 = vmatpush1.bf16.msra.mxu0 %v1195
  %3827 = vmatprep.subr.bf16.mxu0 0
  %3828 = vmatpush1.bf16.msra.mxu0 %v1196
  %3829 = vmatprep.subr.bf16.mxu0 0
  %3830 = vmatpush1.bf16.msra.mxu0 %v1197
  %3831 = vmatprep.subr.bf16.mxu0 0
  %3832 = vmatpush1.bf16.msra.mxu0 %v1198
  %3833 = vmatprep.subr.bf16.mxu0 0
  %3834 = vmatpush1.bf16.msra.mxu0 %v1199
  %3835 = vmatprep.subr.bf16.mxu0 0
  %3836 = vmatpush1.bf16.msra.mxu0 %v1200
  %3837 = vmatprep.subr.bf16.mxu0 0
  %3838 = vmatpush1.bf16.msra.mxu0 0
  %3839 = vmatprep.subr.bf16.mxu0 0
  %3840 = vmatpush1.bf16.msra.mxu0 0
  %3841 = vmatprep.subr.bf16.mxu0 0
  %3842 = vmatpush1.bf16.msra.mxu0 0
  %3843 = vmatprep.subr.bf16.mxu0 0
  %3844 = vmatpush1.bf16.msra.mxu0 0
  %3845 = vmatprep.subr.bf16.mxu0 0
  %3846 = vmatpush1.bf16.msra.mxu0 0
  %3847 = vmatprep.subr.bf16.mxu0 0
  %3848 = vmatpush1.bf16.msra.mxu0 0
  %3849 = vmatprep.subr.bf16.mxu0 0
  %3850 = vmatpush1.bf16.msra.mxu0 0
  %3851 = vmatprep.subr.bf16.mxu0 0
  %3852 = vmatpush1.bf16.msra.mxu0 0
  %3853 = vmatprep.mubr.bf16.mxu0 0
  %3854 = vmatmul.mubr.bf16.gmra.mrb[0].mxu0 %v3813
  %v3855 = vpop.f32.mrb[0].mxu0
  %v3856 = vadd.f32 0.0, %v3855
  %v3857 = vpop.f32.mrb[0].mxu0
  %v3858 = vpop.f32.mrb[0].mxu0
  %v3859 = vpop.f32.mrb[0].mxu0
  %3860 = vdwg.mxu0
  %v3861 = vpack.c.bf16 %v3856, %v3856
  %v3862 = vadd.bf16 %v3861, %v1256
  %v3863 = vmax.bf16 %v3862, 0
  %3864 = vmatprep.subr.bf16.mxu0 0
  %3865 = vmatpush1.bf16.msra.mxu0 %v1193
  %3866 = vmatprep.subr.bf16.mxu0 0
  %3867 = vmatpush1.bf16.msra.mxu0 %v1194
  %3868 = vmatprep.subr.bf16.mxu0 0
  %3869 = vmatpush1.bf16.msra.mxu0 %v1195
  %3870 = vmatprep.subr.bf16.mxu0 0
  %3871 = vmatpush1.bf16.msra.mxu0 %v1196
  %3872 = vmatprep.subr.bf16.mxu0 0
  %3873 = vmatpush1.bf16.msra.mxu0 %v1197
  %3874 = vmatprep.subr.bf16.mxu0 0
  %3875 = vmatpush1.bf16.msra.mxu0 %v1198
  %3876 = vmatprep.subr.bf16.mxu0 0
  %3877 = vmatpush1.bf16.msra.mxu0 %v1199
  %3878 = vmatprep.subr.bf16.mxu0 0
  %3879 = vmatpush1.bf16.msra.mxu0 %v1200
  %3880 = vmatprep.subr.bf16.mxu0 0
  %3881 = vmatpush1.bf16.msra.mxu0 0
  %3882 = vmatprep.subr.bf16.mxu0 0
  %3883 = vmatpush1.bf16.msra.mxu0 0
  %3884 = vmatprep.subr.bf16.mxu0 0
  %3885 = vmatpush1.bf16.msra.mxu0 0
  %3886 = vmatprep.subr.bf16.mxu0 0
  %3887 = vmatpush1.bf16.msra.mxu0 0
  %3888 = vmatprep.subr.bf16.mxu0 0
  %3889 = vmatpush1.bf16.msra.mxu0 0
  %3890 = vmatprep.subr.bf16.mxu0 0
  %3891 = vmatpush1.bf16.msra.mxu0 0
  %3892 = vmatprep.subr.bf16.mxu0 0
  %3893 = vmatpush1.bf16.msra.mxu0 0
  %3894 = vmatprep.subr.bf16.mxu0 0
  %3895 = vmatpush1.bf16.msra.mxu0 0
  %3896 = vmatprep.mubr.bf16.mxu0 0
  %3897 = vmatmul.mubr.bf16.gmra.mrb[0].mxu0 %v3814
  %v3898 = vpop.f32.mrb[0].mxu0
  %v3899 = vadd.f32 0.0, %v3898
  %v3900 = vpop.f32.mrb[0].mxu0
  %v3901 = vpop.f32.mrb[0].mxu0
  %v3902 = vpop.f32.mrb[0].mxu0
  %3903 = vdwg.mxu0
  %v3904 = vpack.c.bf16 %v3899, %v3899
  %v3905 = vadd.bf16 %v3904, %v1256
  %v3906 = vmax.bf16 %v3905, 0
  %v3907 = vmax.bf16 %v3863, %v3906
  %3908 = vmatprep.subr.bf16.mxu0 0
  %3909 = vmatpush1.bf16.msra.mxu0 %v1193
  %3910 = vmatprep.subr.bf16.mxu0 0
  %3911 = vmatpush1.bf16.msra.mxu0 %v1194
  %3912 = vmatprep.subr.bf16.mxu0 0
  %3913 = vmatpush1.bf16.msra.mxu0 %v1195
  %3914 = vmatprep.subr.bf16.mxu0 0
  %3915 = vmatpush1.bf16.msra.mxu0 %v1196
  %3916 = vmatprep.subr.bf16.mxu0 0
  %3917 = vmatpush1.bf16.msra.mxu0 %v1197
  %3918 = vmatprep.subr.bf16.mxu0 0
  %3919 = vmatpush1.bf16.msra.mxu0 %v1198
  %3920 = vmatprep.subr.bf16.mxu0 0
  %3921 = vmatpush1.bf16.msra.mxu0 %v1199
  %3922 = vmatprep.subr.bf16.mxu0 0
  %3923 = vmatpush1.bf16.msra.mxu0 %v1200
  %3924 = vmatprep.subr.bf16.mxu0 0
  %3925 = vmatpush1.bf16.msra.mxu0 0
  %3926 = vmatprep.subr.bf16.mxu0 0
  %3927 = vmatpush1.bf16.msra.mxu0 0
  %3928 = vmatprep.subr.bf16.mxu0 0
  %3929 = vmatpush1.bf16.msra.mxu0 0
  %3930 = vmatprep.subr.bf16.mxu0 0
  %3931 = vmatpush1.bf16.msra.mxu0 0
  %3932 = vmatprep.subr.bf16.mxu0 0
  %3933 = vmatpush1.bf16.msra.mxu0 0
  %3934 = vmatprep.subr.bf16.mxu0 0
  %3935 = vmatpush1.bf16.msra.mxu0 0
  %3936 = vmatprep.subr.bf16.mxu0 0
  %3937 = vmatpush1.bf16.msra.mxu0 0
  %3938 = vmatprep.subr.bf16.mxu0 0
  %3939 = vmatpush1.bf16.msra.mxu0 0
  %3940 = vmatprep.mubr.bf16.mxu0 0
  %3941 = vmatmul.mubr.bf16.gmra.mrb[0].mxu0 %v3815
  %v3942 = vpop.f32.mrb[0].mxu0
  %v3943 = vadd.f32 0.0, %v3942
  %v3944 = vpop.f32.mrb[0].mxu0
  %v3945 = vpop.f32.mrb[0].mxu0
  %v3946 = vpop.f32.mrb[0].mxu0
  %3947 = vdwg.mxu0
  %v3948 = vpack.c.bf16 %v3943, %v3943
  %v3949 = vadd.bf16 %v3948, %v1256
  %v3950 = vmax.bf16 %v3949, 0
  %3951 = vmatprep.subr.bf16.mxu0 0
  %3952 = vmatpush1.bf16.msra.mxu0 %v1193
  %3953 = vmatprep.subr.bf16.mxu0 0
  %3954 = vmatpush1.bf16.msra.mxu0 %v1194
  %3955 = vmatprep.subr.bf16.mxu0 0
  %3956 = vmatpush1.bf16.msra.mxu0 %v1195
  %3957 = vmatprep.subr.bf16.mxu0 0
  %3958 = vmatpush1.bf16.msra.mxu0 %v1196
  %3959 = vmatprep.subr.bf16.mxu0 0
  %3960 = vmatpush1.bf16.msra.mxu0 %v1197
  %3961 = vmatprep.subr.bf16.mxu0 0
  %3962 = vmatpush1.bf16.msra.mxu0 %v1198
  %3963 = vmatprep.subr.bf16.mxu0 0
  %3964 = vmatpush1.bf16.msra.mxu0 %v1199
  %3965 = vmatprep.subr.bf16.mxu0 0
  %3966 = vmatpush1.bf16.msra.mxu0 %v1200
  %3967 = vmatprep.subr.bf16.mxu0 0
  %3968 = vmatpush1.bf16.msra.mxu0 0
  %3969 = vmatprep.subr.bf16.mxu0 0
  %3970 = vmatpush1.bf16.msra.mxu0 0
  %3971 = vmatprep.subr.bf16.mxu0 0
  %3972 = vmatpush1.bf16.msra.mxu0 0
  %3973 = vmatprep.subr.bf16.mxu0 0
  %3974 = vmatpush1.bf16.msra.mxu0 0
  %3975 = vmatprep.subr.bf16.mxu0 0
  %3976 = vmatpush1.bf16.msra.mxu0 0
  %3977 = vmatprep.subr.bf16.mxu0 0
  %3978 = vmatpush1.bf16.msra.mxu0 0
  %3979 = vmatprep.subr.bf16.mxu0 0
  %3980 = vmatpush1.bf16.msra.mxu0 0
  %3981 = vmatprep.subr.bf16.mxu0 0
  %3982 = vmatpush1.bf16.msra.mxu0 0
  %3983 = vmatprep.mubr.bf16.mxu0 0
  %3984 = vmatmul.mubr.bf16.gmra.mrb[0].mxu0 %v3816
  %v3985 = vpop.f32.mrb[0].mxu0
  %v3986 = vadd.f32 0.0, %v3985
  %v3987 = vpop.f32.mrb[0].mxu0
  %v3988 = vpop.f32.mrb[0].mxu0
  %v3989 = vpop.f32.mrb[0].mxu0
  %3990 = vdwg.mxu0
  %v3991 = vpack.c.bf16 %v3986, %v3986
  %v3992 = vadd.bf16 %v3991, %v1256
  %v3993 = vmax.bf16 %v3992, 0
  %v3994 = vmax.bf16 %v3950, %v3993
  %3995 = vmatprep.subr.bf16.mxu0 %v1439
  %3996 = vmatpush1.bf16.msra.mxu0 %v1438
  %3997 = vmatprep.subr.bf16.mxu0 %v1441
  %3998 = vmatpush1.bf16.msra.mxu0 %v1440
  %3999 = vmatprep.subr.bf16.mxu0 %v1443
  %4000 = vmatpush1.bf16.msra.mxu0 %v1442
  %4001 = vmatprep.subr.bf16.mxu0 %v1445
  %4002 = vmatpush1.bf16.msra.mxu0 %v1444
  %4003 = vmatprep.subr.bf16.mxu0 %v1447
  %4004 = vmatpush1.bf16.msra.mxu0 %v1446
  %4005 = vmatprep.subr.bf16.mxu0 %v1449
  %4006 = vmatpush1.bf16.msra.mxu0 %v1448
  %4007 = vmatprep.subr.bf16.mxu0 %v1451
  %4008 = vmatpush1.bf16.msra.mxu0 %v1450
  %4009 = vmatprep.subr.bf16.mxu0 %v1453
  %4010 = vmatpush1.bf16.msra.mxu0 %v1452
  %4011 = vmatprep.subr.bf16.mxu0 0
  %4012 = vmatpush1.bf16.msra.mxu0 0
  %4013 = vmatprep.subr.bf16.mxu0 0
  %4014 = vmatpush1.bf16.msra.mxu0 0
  %4015 = vmatprep.subr.bf16.mxu0 0
  %4016 = vmatpush1.bf16.msra.mxu0 0
  %4017 = vmatprep.subr.bf16.mxu0 0
  %4018 = vmatpush1.bf16.msra.mxu0 0
  %4019 = vmatprep.subr.bf16.mxu0 0
  %4020 = vmatpush1.bf16.msra.mxu0 0
  %4021 = vmatprep.subr.bf16.mxu0 0
  %4022 = vmatpush1.bf16.msra.mxu0 0
  %4023 = vmatprep.subr.bf16.mxu0 0
  %4024 = vmatpush1.bf16.msra.mxu0 0
  %4025 = vmatprep.subr.bf16.mxu0 0
  %4026 = vmatpush1.bf16.msra.mxu0 0
  %4027 = vmatprep.mubr.bf16.mxu0 0
  %4028 = vmatmul.mubr.bf16.gmra.mrb[0].mxu0 %v3994
  %v4029 = vpop.f32.mrb[0].mxu0
  %v4030 = vadd.f32 0.0, %v4029
  %v4031 = vpop.f32.mrb[0].mxu0
  %v4032 = vadd.f32 0.0, %v4031
  %v4033 = vpop.f32.mrb[0].mxu0
  %v4034 = vpop.f32.mrb[0].mxu0
  %4035 = vdwg.mxu0
  %4036 = vmatprep.subr.bf16.mxu0 %v1560
  %4037 = vmatpush1.bf16.msra.mxu0 %v1559
  %4038 = vmatprep.subr.bf16.mxu0 %v1562
  %4039 = vmatpush1.bf16.msra.mxu0 %v1561
  %4040 = vmatprep.subr.bf16.mxu0 %v1564
  %4041 = vmatpush1.bf16.msra.mxu0 %v1563
  %4042 = vmatprep.subr.bf16.mxu0 %v1566
  %4043 = vmatpush1.bf16.msra.mxu0 %v1565
  %4044 = vmatprep.subr.bf16.mxu0 %v1568
  %4045 = vmatpush1.bf16.msra.mxu0 %v1567
  %4046 = vmatprep.subr.bf16.mxu0 %v1570
  %4047 = vmatpush1.bf16.msra.mxu0 %v1569
  %4048 = vmatprep.subr.bf16.mxu0 %v1572
  %4049 = vmatpush1.bf16.msra.mxu0 %v1571
  %4050 = vmatprep.subr.bf16.mxu0 %v1574
  %4051 = vmatpush1.bf16.msra.mxu0 %v1573
  %4052 = vmatprep.subr.bf16.mxu0 0
  %4053 = vmatpush1.bf16.msra.mxu0 0
  %4054 = vmatprep.subr.bf16.mxu0 0
  %4055 = vmatpush1.bf16.msra.mxu0 0
  %4056 = vmatprep.subr.bf16.mxu0 0
  %4057 = vmatpush1.bf16.msra.mxu0 0
  %4058 = vmatprep.subr.bf16.mxu0 0
  %4059 = vmatpush1.bf16.msra.mxu0 0
  %4060 = vmatprep.subr.bf16.mxu0 0
  %4061 = vmatpush1.bf16.msra.mxu0 0
  %4062 = vmatprep.subr.bf16.mxu0 0
  %4063 = vmatpush1.bf16.msra.mxu0 0
  %4064 = vmatprep.subr.bf16.mxu0 0
  %4065 = vmatpush1.bf16.msra.mxu0 0
  %4066 = vmatprep.subr.bf16.mxu0 0
  %4067 = vmatpush1.bf16.msra.mxu0 0
  %4068 = vmatprep.mubr.bf16.mxu0 0
  %4069 = vmatmul.mubr.bf16.gmra.mrb[0].mxu0 %v3907
  %v4070 = vpop.f32.mrb[0].mxu0
  %v4071 = vadd.f32 %v4030, %v4070
  %v4072 = vpop.f32.mrb[0].mxu0
  %v4073 = vadd.f32 %v4032, %v4072
  %v4074 = vpop.f32.mrb[0].mxu0
  %v4075 = vpop.f32.mrb[0].mxu0
  %4076 = vdwg.mxu0
  %v4077 = vpack.c.bf16 %v4071, %v4071
  %v4078 = vpack.c.bf16 %v4073, %v4073
  %v4079 = vadd.bf16 %v4077, %v1663
  %v4080 = vadd.bf16 %v4078, %v1670
  %v4081 = vmax.bf16 %v4079, 0
  %v4082 = vmax.bf16 %v4080, 0
  %4083 = vmatprep.subr.bf16.mxu0 0
  %4084 = vmatpush1.bf16.msra.mxu0 %v1193
  %4085 = vmatprep.subr.bf16.mxu0 0
  %4086 = vmatpush1.bf16.msra.mxu0 %v1194
  %4087 = vmatprep.subr.bf16.mxu0 0
  %4088 = vmatpush1.bf16.msra.mxu0 %v1195
  %4089 = vmatprep.subr.bf16.mxu0 0
  %4090 = vmatpush1.bf16.msra.mxu0 %v1196
  %4091 = vmatprep.subr.bf16.mxu0 0
  %4092 = vmatpush1.bf16.msra.mxu0 %v1197
  %4093 = vmatprep.subr.bf16.mxu0 0
  %4094 = vmatpush1.bf16.msra.mxu0 %v1198
  %4095 = vmatprep.subr.bf16.mxu0 0
  %4096 = vmatpush1.bf16.msra.mxu0 %v1199
  %4097 = vmatprep.subr.bf16.mxu0 0
  %4098 = vmatpush1.bf16.msra.mxu0 %v1200
  %4099 = vmatprep.subr.bf16.mxu0 0
  %4100 = vmatpush1.bf16.msra.mxu0 0
  %4101 = vmatprep.subr.bf16.mxu0 0
  %4102 = vmatpush1.bf16.msra.mxu0 0
  %4103 = vmatprep.subr.bf16.mxu0 0
  %4104 = vmatpush1.bf16.msra.mxu0 0
  %4105 = vmatprep.subr.bf16.mxu0 0
  %4106 = vmatpush1.bf16.msra.mxu0 0
  %4107 = vmatprep.subr.bf16.mxu0 0
  %4108 = vmatpush1.bf16.msra.mxu0 0
  %4109 = vmatprep.subr.bf16.mxu0 0
  %4110 = vmatpush1.bf16.msra.mxu0 0
  %4111 = vmatprep.subr.bf16.mxu0 0
  %4112 = vmatpush1.bf16.msra.mxu0 0
  %4113 = vmatprep.subr.bf16.mxu0 0
  %4114 = vmatpush1.bf16.msra.mxu0 0
  %4115 = vmatprep.mubr.bf16.mxu0 0
  %4116 = vmatmul.mubr.bf16.gmra.mrb[0].mxu0 %v3817
  %v4117 = vpop.f32.mrb[0].mxu0
  %v4118 = vadd.f32 0.0, %v4117
  %v4119 = vpop.f32.mrb[0].mxu0
  %v4120 = vpop.f32.mrb[0].mxu0
  %v4121 = vpop.f32.mrb[0].mxu0
  %4122 = vdwg.mxu0
  %v4123 = vpack.c.bf16 %v4118, %v4118
  %v4124 = vadd.bf16 %v4123, %v1256
  %v4125 = vmax.bf16 %v4124, 0
  %4126 = vmatprep.subr.bf16.mxu0 0
  %4127 = vmatpush1.bf16.msra.mxu0 %v1193
  %4128 = vmatprep.subr.bf16.mxu0 0
  %4129 = vmatpush1.bf16.msra.mxu0 %v1194
  %4130 = vmatprep.subr.bf16.mxu0 0
  %4131 = vmatpush1.bf16.msra.mxu0 %v1195
  %4132 = vmatprep.subr.bf16.mxu0 0
  %4133 = vmatpush1.bf16.msra.mxu0 %v1196
  %4134 = vmatprep.subr.bf16.mxu0 0
  %4135 = vmatpush1.bf16.msra.mxu0 %v1197
  %4136 = vmatprep.subr.bf16.mxu0 0
  %4137 = vmatpush1.bf16.msra.mxu0 %v1198
  %4138 = vmatprep.subr.bf16.mxu0 0
  %4139 = vmatpush1.bf16.msra.mxu0 %v1199
  %4140 = vmatprep.subr.bf16.mxu0 0
  %4141 = vmatpush1.bf16.msra.mxu0 %v1200
  %4142 = vmatprep.subr.bf16.mxu0 0
  %4143 = vmatpush1.bf16.msra.mxu0 0
  %4144 = vmatprep.subr.bf16.mxu0 0
  %4145 = vmatpush1.bf16.msra.mxu0 0
  %4146 = vmatprep.subr.bf16.mxu0 0
  %4147 = vmatpush1.bf16.msra.mxu0 0
  %4148 = vmatprep.subr.bf16.mxu0 0
  %4149 = vmatpush1.bf16.msra.mxu0 0
  %4150 = vmatprep.subr.bf16.mxu0 0
  %4151 = vmatpush1.bf16.msra.mxu0 0
  %4152 = vmatprep.subr.bf16.mxu0 0
  %4153 = vmatpush1.bf16.msra.mxu0 0
  %4154 = vmatprep.subr.bf16.mxu0 0
  %4155 = vmatpush1.bf16.msra.mxu0 0
  %4156 = vmatprep.subr.bf16.mxu0 0
  %4157 = vmatpush1.bf16.msra.mxu0 0
  %4158 = vmatprep.mubr.bf16.mxu0 0
  %4159 = vmatmul.mubr.bf16.gmra.mrb[0].mxu0 %v3818
  %v4160 = vpop.f32.mrb[0].mxu0
  %v4161 = vadd.f32 0.0, %v4160
  %v4162 = vpop.f32.mrb[0].mxu0
  %v4163 = vpop.f32.mrb[0].mxu0
  %v4164 = vpop.f32.mrb[0].mxu0
  %4165 = vdwg.mxu0
  %v4166 = vpack.c.bf16 %v4161, %v4161
  %v4167 = vadd.bf16 %v4166, %v1256
  %v4168 = vmax.bf16 %v4167, 0
  %v4169 = vmax.bf16 %v4125, %v4168
  %4170 = vmatprep.subr.bf16.mxu0 0
  %4171 = vmatpush1.bf16.msra.mxu0 %v1193
  %4172 = vmatprep.subr.bf16.mxu0 0
  %4173 = vmatpush1.bf16.msra.mxu0 %v1194
  %4174 = vmatprep.subr.bf16.mxu0 0
  %4175 = vmatpush1.bf16.msra.mxu0 %v1195
  %4176 = vmatprep.subr.bf16.mxu0 0
  %4177 = vmatpush1.bf16.msra.mxu0 %v1196
  %4178 = vmatprep.subr.bf16.mxu0 0
  %4179 = vmatpush1.bf16.msra.mxu0 %v1197
  %4180 = vmatprep.subr.bf16.mxu0 0
  %4181 = vmatpush1.bf16.msra.mxu0 %v1198
  %4182 = vmatprep.subr.bf16.mxu0 0
  %4183 = vmatpush1.bf16.msra.mxu0 %v1199
  %4184 = vmatprep.subr.bf16.mxu0 0
  %4185 = vmatpush1.bf16.msra.mxu0 %v1200
  %4186 = vmatprep.subr.bf16.mxu0 0
  %4187 = vmatpush1.bf16.msra.mxu0 0
  %4188 = vmatprep.subr.bf16.mxu0 0
  %4189 = vmatpush1.bf16.msra.mxu0 0
  %4190 = vmatprep.subr.bf16.mxu0 0
  %4191 = vmatpush1.bf16.msra.mxu0 0
  %4192 = vmatprep.subr.bf16.mxu0 0
  %4193 = vmatpush1.bf16.msra.mxu0 0
  %4194 = vmatprep.subr.bf16.mxu0 0
  %4195 = vmatpush1.bf16.msra.mxu0 0
  %4196 = vmatprep.subr.bf16.mxu0 0
  %4197 = vmatpush1.bf16.msra.mxu0 0
  %4198 = vmatprep.subr.bf16.mxu0 0
  %4199 = vmatpush1.bf16.msra.mxu0 0
  %4200 = vmatprep.subr.bf16.mxu0 0
  %4201 = vmatpush1.bf16.msra.mxu0 0
  %4202 = vmatprep.mubr.bf16.mxu0 0
  %4203 = vmatmul.mubr.bf16.gmra.mrb[0].mxu0 %v3819
  %v4204 = vpop.f32.mrb[0].mxu0
  %v4205 = vadd.f32 0.0, %v4204
  %v4206 = vpop.f32.mrb[0].mxu0
  %v4207 = vpop.f32.mrb[0].mxu0
  %v4208 = vpop.f32.mrb[0].mxu0
  %4209 = vdwg.mxu0
  %v4210 = vpack.c.bf16 %v4205, %v4205
  %v4211 = vadd.bf16 %v4210, %v1256
  %v4212 = vmax.bf16 %v4211, 0
  %4213 = vmatprep.subr.bf16.mxu0 0
  %4214 = vmatpush1.bf16.msra.mxu0 %v1193
  %4215 = vmatprep.subr.bf16.mxu0 0
  %4216 = vmatpush1.bf16.msra.mxu0 %v1194
  %4217 = vmatprep.subr.bf16.mxu0 0
  %4218 = vmatpush1.bf16.msra.mxu0 %v1195
  %4219 = vmatprep.subr.bf16.mxu0 0
  %4220 = vmatpush1.bf16.msra.mxu0 %v1196
  %4221 = vmatprep.subr.bf16.mxu0 0
  %4222 = vmatpush1.bf16.msra.mxu0 %v1197
  %4223 = vmatprep.subr.bf16.mxu0 0
  %4224 = vmatpush1.bf16.msra.mxu0 %v1198
  %4225 = vmatprep.subr.bf16.mxu0 0
  %4226 = vmatpush1.bf16.msra.mxu0 %v1199
  %4227 = vmatprep.subr.bf16.mxu0 0
  %4228 = vmatpush1.bf16.msra.mxu0 %v1200
  %4229 = vmatprep.subr.bf16.mxu0 0
  %4230 = vmatpush1.bf16.msra.mxu0 0
  %4231 = vmatprep.subr.bf16.mxu0 0
  %4232 = vmatpush1.bf16.msra.mxu0 0
  %4233 = vmatprep.subr.bf16.mxu0 0
  %4234 = vmatpush1.bf16.msra.mxu0 0
  %4235 = vmatprep.subr.bf16.mxu0 0
  %4236 = vmatpush1.bf16.msra.mxu0 0
  %4237 = vmatprep.subr.bf16.mxu0 0
  %4238 = vmatpush1.bf16.msra.mxu0 0
  %4239 = vmatprep.subr.bf16.mxu0 0
  %4240 = vmatpush1.bf16.msra.mxu0 0
  %4241 = vmatprep.subr.bf16.mxu0 0
  %4242 = vmatpush1.bf16.msra.mxu0 0
  %4243 = vmatprep.subr.bf16.mxu0 0
  %4244 = vmatpush1.bf16.msra.mxu0 0
  %4245 = vmatprep.mubr.bf16.mxu0 0
  %4246 = vmatmul.mubr.bf16.gmra.mrb[0].mxu0 %v3820
  %v4247 = vpop.f32.mrb[0].mxu0
  %v4248 = vadd.f32 0.0, %v4247
  %v4249 = vpop.f32.mrb[0].mxu0
  %v4250 = vpop.f32.mrb[0].mxu0
  %v4251 = vpop.f32.mrb[0].mxu0
  %4252 = vdwg.mxu0
  %v4253 = vpack.c.bf16 %v4248, %v4248
  %v4254 = vadd.bf16 %v4253, %v1256
  %v4255 = vmax.bf16 %v4254, 0
  %v4256 = vmax.bf16 %v4212, %v4255
  %4257 = vmatprep.subr.bf16.mxu0 %v1439
  %4258 = vmatpush1.bf16.msra.mxu0 %v1438
  %4259 = vmatprep.subr.bf16.mxu0 %v1441
  %4260 = vmatpush1.bf16.msra.mxu0 %v1440
  %4261 = vmatprep.subr.bf16.mxu0 %v1443
  %4262 = vmatpush1.bf16.msra.mxu0 %v1442
  %4263 = vmatprep.subr.bf16.mxu0 %v1445
  %4264 = vmatpush1.bf16.msra.mxu0 %v1444
  %4265 = vmatprep.subr.bf16.mxu0 %v1447
  %4266 = vmatpush1.bf16.msra.mxu0 %v1446
  %4267 = vmatprep.subr.bf16.mxu0 %v1449
  %4268 = vmatpush1.bf16.msra.mxu0 %v1448
  %4269 = vmatprep.subr.bf16.mxu0 %v1451
  %4270 = vmatpush1.bf16.msra.mxu0 %v1450
  %4271 = vmatprep.subr.bf16.mxu0 %v1453
  %4272 = vmatpush1.bf16.msra.mxu0 %v1452
  %4273 = vmatprep.subr.bf16.mxu0 0
  %4274 = vmatpush1.bf16.msra.mxu0 0
  %4275 = vmatprep.subr.bf16.mxu0 0
  %4276 = vmatpush1.bf16.msra.mxu0 0
  %4277 = vmatprep.subr.bf16.mxu0 0
  %4278 = vmatpush1.bf16.msra.mxu0 0
  %4279 = vmatprep.subr.bf16.mxu0 0
  %4280 = vmatpush1.bf16.msra.mxu0 0
  %4281 = vmatprep.subr.bf16.mxu0 0
  %4282 = vmatpush1.bf16.msra.mxu0 0
  %4283 = vmatprep.subr.bf16.mxu0 0
  %4284 = vmatpush1.bf16.msra.mxu0 0
  %4285 = vmatprep.subr.bf16.mxu0 0
  %4286 = vmatpush1.bf16.msra.mxu0 0
  %4287 = vmatprep.subr.bf16.mxu0 0
  %4288 = vmatpush1.bf16.msra.mxu0 0
  %4289 = vmatprep.mubr.bf16.mxu0 0
  %4290 = vmatmul.mubr.bf16.gmra.mrb[0].mxu0 %v4256
  %v4291 = vpop.f32.mrb[0].mxu0
  %v4292 = vadd.f32 0.0, %v4291
  %v4293 = vpop.f32.mrb[0].mxu0
  %v4294 = vadd.f32 0.0, %v4293
  %v4295 = vpop.f32.mrb[0].mxu0
  %v4296 = vpop.f32.mrb[0].mxu0
  %4297 = vdwg.mxu0
  %4298 = vmatprep.subr.bf16.mxu0 %v1560
  %4299 = vmatpush1.bf16.msra.mxu0 %v1559
  %4300 = vmatprep.subr.bf16.mxu0 %v1562
  %4301 = vmatpush1.bf16.msra.mxu0 %v1561
  %4302 = vmatprep.subr.bf16.mxu0 %v1564
  %4303 = vmatpush1.bf16.msra.mxu0 %v1563
  %4304 = vmatprep.subr.bf16.mxu0 %v1566
  %4305 = vmatpush1.bf16.msra.mxu0 %v1565
  %4306 = vmatprep.subr.bf16.mxu0 %v1568
  %4307 = vmatpush1.bf16.msra.mxu0 %v1567
  %4308 = vmatprep.subr.bf16.mxu0 %v1570
  %4309 = vmatpush1.bf16.msra.mxu0 %v1569
  %4310 = vmatprep.subr.bf16.mxu0 %v1572
  %4311 = vmatpush1.bf16.msra.mxu0 %v1571
  %4312 = vmatprep.subr.bf16.mxu0 %v1574
  %4313 = vmatpush1.bf16.msra.mxu0 %v1573
  %4314 = vmatprep.subr.bf16.mxu0 0
  %4315 = vmatpush1.bf16.msra.mxu0 0
  %4316 = vmatprep.subr.bf16.mxu0 0
  %4317 = vmatpush1.bf16.msra.mxu0 0
  %4318 = vmatprep.subr.bf16.mxu0 0
  %4319 = vmatpush1.bf16.msra.mxu0 0
  %4320 = vmatprep.subr.bf16.mxu0 0
  %4321 = vmatpush1.bf16.msra.mxu0 0
  %4322 = vmatprep.subr.bf16.mxu0 0
  %4323 = vmatpush1.bf16.msra.mxu0 0
  %4324 = vmatprep.subr.bf16.mxu0 0
  %4325 = vmatpush1.bf16.msra.mxu0 0
  %4326 = vmatprep.subr.bf16.mxu0 0
  %4327 = vmatpush1.bf16.msra.mxu0 0
  %4328 = vmatprep.subr.bf16.mxu0 0
  %4329 = vmatpush1.bf16.msra.mxu0 0
  %4330 = vmatprep.mubr.bf16.mxu0 0
  %4331 = vmatmul.mubr.bf16.gmra.mrb[0].mxu0 %v4169
  %v4332 = vpop.f32.mrb[0].mxu0
  %v4333 = vadd.f32 %v4292, %v4332
  %v4334 = vpop.f32.mrb[0].mxu0
  %v4335 = vadd.f32 %v4294, %v4334
  %v4336 = vpop.f32.mrb[0].mxu0
  %v4337 = vpop.f32.mrb[0].mxu0
  %4338 = vdwg.mxu0
  %v4339 = vpack.c.bf16 %v4333, %v4333
  %v4340 = vpack.c.bf16 %v4335, %v4335
  %v4341 = vadd.bf16 %v4339, %v1663
  %v4342 = vadd.bf16 %v4340, %v1670
  %v4343 = vmax.bf16 %v4341, 0
  %v4344 = vmax.bf16 %v4342, 0
  %v4345 = vmax.bf16 %v4081, %v4343
  %v4346 = vmax.bf16 %v4082, %v4344
  %s4347 = scalar_lea.vmem %s7, 1024
  %v4348 = vld [vmem:[%s4347] sm:$0xff]
  %v4349 = vld [vmem:[%s4347 + $0x8] sm:$0xff]
  %v4350 = vld [vmem:[%s4347 + $0x10] sm:$0xff]
  %v4351 = vld [vmem:[%s4347 + $0x18] sm:$0xff]
  %v4352 = vld [vmem:[%s4347 + $0x20] sm:$0xff]
  %v4353 = vld [vmem:[%s4347 + $0x28] sm:$0xff]
  %v4354 = vld [vmem:[%s4347 + $0x30] sm:$0xff]
  %v4355 = vld [vmem:[%s4347 + $0x38] sm:$0xff]
  %v4356 = vld [vmem:[%s4347 + $0x40] sm:$0xff]
  %v4357 = vld [vmem:[%s4347 + $0x48] sm:$0xff]
  %v4358 = vld [vmem:[%s4347 + $0x50] sm:$0xff]
  %v4359 = vld [vmem:[%s4347 + $0x58] sm:$0xff]
  %v4360 = vld [vmem:[%s4347 + $0x60] sm:$0xff]
  %v4361 = vld [vmem:[%s4347 + $0x68] sm:$0xff]
  %v4362 = vld [vmem:[%s4347 + $0x70] sm:$0xff]
  %v4363 = vld [vmem:[%s4347 + $0x78] sm:$0xff]
  %v4364 = vld [vmem:[%s4347 + $0x80] sm:$0xff]
  %v4365 = vld [vmem:[%s4347 + $0x88] sm:$0xff]
  %v4366 = vld [vmem:[%s4347 + $0x90] sm:$0xff]
  %v4367 = vld [vmem:[%s4347 + $0x98] sm:$0xff]
  %v4368 = vld [vmem:[%s4347 + $0xa0] sm:$0xff]
  %v4369 = vld [vmem:[%s4347 + $0xa8] sm:$0xff]
  %v4370 = vld [vmem:[%s4347 + $0xb0] sm:$0xff]
  %v4371 = vld [vmem:[%s4347 + $0xb8] sm:$0xff]
  %v4372 = vld [vmem:[%s4347 + $0xc0] sm:$0xff]
  %v4373 = vld [vmem:[%s4347 + $0xc8] sm:$0xff]
  %v4374 = vld [vmem:[%s4347 + $0xd0] sm:$0xff]
  %v4375 = vld [vmem:[%s4347 + $0xd8] sm:$0xff]
  %v4376 = vld [vmem:[%s4347 + $0xe0] sm:$0xff]
  %v4377 = vld [vmem:[%s4347 + $0xe8] sm:$0xff]
  %v4378 = vld [vmem:[%s4347 + $0xf0] sm:$0xff]
  %v4379 = vld [vmem:[%s4347 + $0xf8] sm:$0xff]
  %v4380 = vld [vmem:[%s4347 + $0x100] sm:$0xff]
  %v4381 = vld [vmem:[%s4347 + $0x108] sm:$0xff]
  %v4382 = vld [vmem:[%s4347 + $0x110] sm:$0xff]
  %v4383 = vld [vmem:[%s4347 + $0x118] sm:$0xff]
  %v4384 = vld [vmem:[%s4347 + $0x120] sm:$0xff]
  %v4385 = vld [vmem:[%s4347 + $0x128] sm:$0xff]
  %v4386 = vld [vmem:[%s4347 + $0x130] sm:$0xff]
  %v4387 = vld [vmem:[%s4347 + $0x138] sm:$0xff]
  %v4388 = vld [vmem:[%s4347 + $0x140] sm:$0xff]
  %v4389 = vld [vmem:[%s4347 + $0x148] sm:$0xff]
  %v4390 = vld [vmem:[%s4347 + $0x150] sm:$0xff]
  %v4391 = vld [vmem:[%s4347 + $0x158] sm:$0xff]
  %v4392 = vld [vmem:[%s4347 + $0x160] sm:$0xff]
  %v4393 = vld [vmem:[%s4347 + $0x168] sm:$0xff]
  %v4394 = vld [vmem:[%s4347 + $0x170] sm:$0xff]
  %v4395 = vld [vmem:[%s4347 + $0x178] sm:$0xff]
  %v4396 = vld [vmem:[%s4347 + $0x180] sm:$0xff]
  %v4397 = vld [vmem:[%s4347 + $0x188] sm:$0xff]
  %v4398 = vld [vmem:[%s4347 + $0x190] sm:$0xff]
  %v4399 = vld [vmem:[%s4347 + $0x198] sm:$0xff]
  %v4400 = vld [vmem:[%s4347 + $0x1a0] sm:$0xff]
  %v4401 = vld [vmem:[%s4347 + $0x1a8] sm:$0xff]
  %v4402 = vld [vmem:[%s4347 + $0x1b0] sm:$0xff]
  %v4403 = vld [vmem:[%s4347 + $0x1b8] sm:$0xff]
  %v4404 = vld [vmem:[%s4347 + $0x1c0] sm:$0xff]
  %v4405 = vld [vmem:[%s4347 + $0x1c8] sm:$0xff]
  %v4406 = vld [vmem:[%s4347 + $0x1d0] sm:$0xff]
  %v4407 = vld [vmem:[%s4347 + $0x1d8] sm:$0xff]
  %v4408 = vld [vmem:[%s4347 + $0x1e0] sm:$0xff]
  %v4409 = vld [vmem:[%s4347 + $0x1e8] sm:$0xff]
  %v4410 = vld [vmem:[%s4347 + $0x1f0] sm:$0xff]
  %v4411 = vld [vmem:[%s4347 + $0x1f8] sm:$0xff]
  %v4476 = vunpack.c.l.b16 %v4348
  %v4477 = vunpack.c.h.b16 %v4348
  %v4478 = vunpack.c.l.b16 %v4349
  %v4479 = vunpack.c.h.b16 %v4349
  %v4480 = vunpack.c.l.b16 %v4350
  %v4481 = vunpack.c.h.b16 %v4350
  %v4482 = vunpack.c.l.b16 %v4351
  %v4483 = vunpack.c.h.b16 %v4351
  %v4484 = vunpack.c.l.b16 %v4352
  %v4485 = vunpack.c.h.b16 %v4352
  %v4486 = vunpack.c.l.b16 %v4353
  %v4487 = vunpack.c.h.b16 %v4353
  %v4488 = vunpack.c.l.b16 %v4354
  %v4489 = vunpack.c.h.b16 %v4354
  %v4490 = vunpack.c.l.b16 %v4355
  %v4491 = vunpack.c.h.b16 %v4355
  %v4492 = vunpack.c.l.b16 %v4356
  %v4493 = vunpack.c.h.b16 %v4356
  %v4494 = vunpack.c.l.b16 %v4357
  %v4495 = vunpack.c.h.b16 %v4357
  %v4496 = vunpack.c.l.b16 %v4358
  %v4497 = vunpack.c.h.b16 %v4358
  %v4498 = vunpack.c.l.b16 %v4359
  %v4499 = vunpack.c.h.b16 %v4359
  %v4500 = vunpack.c.l.b16 %v4360
  %v4501 = vunpack.c.h.b16 %v4360
  %v4502 = vunpack.c.l.b16 %v4361
  %v4503 = vunpack.c.h.b16 %v4361
  %v4504 = vunpack.c.l.b16 %v4362
  %v4505 = vunpack.c.h.b16 %v4362
  %v4506 = vunpack.c.l.b16 %v4363
  %v4507 = vunpack.c.h.b16 %v4363
  %v4508 = vunpack.c.l.b16 %v4364
  %v4509 = vunpack.c.h.b16 %v4364
  %v4510 = vunpack.c.l.b16 %v4365
  %v4511 = vunpack.c.h.b16 %v4365
  %v4512 = vunpack.c.l.b16 %v4366
  %v4513 = vunpack.c.h.b16 %v4366
  %v4514 = vunpack.c.l.b16 %v4367
  %v4515 = vunpack.c.h.b16 %v4367
  %v4516 = vunpack.c.l.b16 %v4368
  %v4517 = vunpack.c.h.b16 %v4368
  %v4518 = vunpack.c.l.b16 %v4369
  %v4519 = vunpack.c.h.b16 %v4369
  %v4520 = vunpack.c.l.b16 %v4370
  %v4521 = vunpack.c.h.b16 %v4370
  %v4522 = vunpack.c.l.b16 %v4371
  %v4523 = vunpack.c.h.b16 %v4371
  %v4524 = vunpack.c.l.b16 %v4372
  %v4525 = vunpack.c.h.b16 %v4372
  %v4526 = vunpack.c.l.b16 %v4373
  %v4527 = vunpack.c.h.b16 %v4373
  %v4528 = vunpack.c.l.b16 %v4374
  %v4529 = vunpack.c.h.b16 %v4374
  %v4530 = vunpack.c.l.b16 %v4375
  %v4531 = vunpack.c.h.b16 %v4375
  %v4532 = vunpack.c.l.b16 %v4376
  %v4533 = vunpack.c.h.b16 %v4376
  %v4534 = vunpack.c.l.b16 %v4377
  %v4535 = vunpack.c.h.b16 %v4377
  %v4536 = vunpack.c.l.b16 %v4378
  %v4537 = vunpack.c.h.b16 %v4378
  %v4538 = vunpack.c.l.b16 %v4379
  %v4539 = vunpack.c.h.b16 %v4379
  %v4540 = vunpack.c.l.b16 %v4380
  %v4541 = vunpack.c.h.b16 %v4380
  %v4542 = vunpack.c.l.b16 %v4381
  %v4543 = vunpack.c.h.b16 %v4381
  %v4544 = vunpack.c.l.b16 %v4382
  %v4545 = vunpack.c.h.b16 %v4382
  %v4546 = vunpack.c.l.b16 %v4383
  %v4547 = vunpack.c.h.b16 %v4383
  %v4548 = vunpack.c.l.b16 %v4384
  %v4549 = vunpack.c.h.b16 %v4384
  %v4550 = vunpack.c.l.b16 %v4385
  %v4551 = vunpack.c.h.b16 %v4385
  %v4552 = vunpack.c.l.b16 %v4386
  %v4553 = vunpack.c.h.b16 %v4386
  %v4554 = vunpack.c.l.b16 %v4387
  %v4555 = vunpack.c.h.b16 %v4387
  %v4556 = vunpack.c.l.b16 %v4388
  %v4557 = vunpack.c.h.b16 %v4388
  %v4558 = vunpack.c.l.b16 %v4389
  %v4559 = vunpack.c.h.b16 %v4389
  %v4560 = vunpack.c.l.b16 %v4390
  %v4561 = vunpack.c.h.b16 %v4390
  %v4562 = vunpack.c.l.b16 %v4391
  %v4563 = vunpack.c.h.b16 %v4391
  %v4564 = vunpack.c.l.b16 %v4392
  %v4565 = vunpack.c.h.b16 %v4392
  %v4566 = vunpack.c.l.b16 %v4393
  %v4567 = vunpack.c.h.b16 %v4393
  %v4568 = vunpack.c.l.b16 %v4394
  %v4569 = vunpack.c.h.b16 %v4394
  %v4570 = vunpack.c.l.b16 %v4395
  %v4571 = vunpack.c.h.b16 %v4395
  %v4572 = vunpack.c.l.b16 %v4396
  %v4573 = vunpack.c.h.b16 %v4396
  %v4574 = vunpack.c.l.b16 %v4397
  %v4575 = vunpack.c.h.b16 %v4397
  %v4576 = vunpack.c.l.b16 %v4398
  %v4577 = vunpack.c.h.b16 %v4398
  %v4578 = vunpack.c.l.b16 %v4399
  %v4579 = vunpack.c.h.b16 %v4399
  %v4580 = vunpack.c.l.b16 %v4400
  %v4581 = vunpack.c.h.b16 %v4400
  %v4582 = vunpack.c.l.b16 %v4401
  %v4583 = vunpack.c.h.b16 %v4401
  %v4584 = vunpack.c.l.b16 %v4402
  %v4585 = vunpack.c.h.b16 %v4402
  %v4586 = vunpack.c.l.b16 %v4403
  %v4587 = vunpack.c.h.b16 %v4403
  %v4588 = vunpack.c.l.b16 %v4404
  %v4589 = vunpack.c.h.b16 %v4404
  %v4590 = vunpack.c.l.b16 %v4405
  %v4591 = vunpack.c.h.b16 %v4405
  %v4592 = vunpack.c.l.b16 %v4406
  %v4593 = vunpack.c.h.b16 %v4406
  %v4594 = vunpack.c.l.b16 %v4407
  %v4595 = vunpack.c.h.b16 %v4407
  %v4596 = vunpack.c.l.b16 %v4408
  %v4597 = vunpack.c.h.b16 %v4408
  %v4598 = vunpack.c.l.b16 %v4409
  %v4599 = vunpack.c.h.b16 %v4409
  %v4600 = vunpack.c.l.b16 %v4410
  %v4601 = vunpack.c.h.b16 %v4410
  %v4602 = vunpack.c.l.b16 %v4411
  %v4603 = vunpack.c.h.b16 %v4411
  %v4604 = vpack.c.b16 %v4480, %v4476
  %v4605 = vpack.c.b16 %v4481, %v4477
  %v4606 = vpack.c.b16 %v4482, %v4478
  %v4607 = vpack.c.b16 %v4483, %v4479
  %v4608 = vpack.c.b16 %v4488, %v4484
  %v4609 = vpack.c.b16 %v4489, %v4485
  %v4610 = vpack.c.b16 %v4490, %v4486
  %v4611 = vpack.c.b16 %v4491, %v4487
  %v4612 = vpack.c.b16 %v4496, %v4492
  %v4613 = vpack.c.b16 %v4497, %v4493
  %v4614 = vpack.c.b16 %v4498, %v4494
  %v4615 = vpack.c.b16 %v4499, %v4495
  %v4616 = vpack.c.b16 %v4504, %v4500
  %v4617 = vpack.c.b16 %v4505, %v4501
  %v4618 = vpack.c.b16 %v4506, %v4502
  %v4619 = vpack.c.b16 %v4507, %v4503
  %v4620 = vpack.c.b16 %v4512, %v4508
  %v4621 = vpack.c.b16 %v4513, %v4509
  %v4622 = vpack.c.b16 %v4514, %v4510
  %v4623 = vpack.c.b16 %v4515, %v4511
  %v4624 = vpack.c.b16 %v4520, %v4516
  %v4625 = vpack.c.b16 %v4521, %v4517
  %v4626 = vpack.c.b16 %v4522, %v4518
  %v4627 = vpack.c.b16 %v4523, %v4519
  %v4628 = vpack.c.b16 %v4528, %v4524
  %v4629 = vpack.c.b16 %v4529, %v4525
  %v4630 = vpack.c.b16 %v4530, %v4526
  %v4631 = vpack.c.b16 %v4531, %v4527
  %v4632 = vpack.c.b16 %v4536, %v4532
  %v4633 = vpack.c.b16 %v4537, %v4533
  %v4634 = vpack.c.b16 %v4538, %v4534
  %v4635 = vpack.c.b16 %v4539, %v4535
  %v4636 = vpack.c.b16 %v4544, %v4540
  %v4637 = vpack.c.b16 %v4545, %v4541
  %v4638 = vpack.c.b16 %v4546, %v4542
  %v4639 = vpack.c.b16 %v4547, %v4543
  %v4640 = vpack.c.b16 %v4552, %v4548
  %v4641 = vpack.c.b16 %v4553, %v4549
  %v4642 = vpack.c.b16 %v4554, %v4550
  %v4643 = vpack.c.b16 %v4555, %v4551
  %v4644 = vpack.c.b16 %v4560, %v4556
  %v4645 = vpack.c.b16 %v4561, %v4557
  %v4646 = vpack.c.b16 %v4562, %v4558
  %v4647 = vpack.c.b16 %v4563, %v4559
  %v4648 = vpack.c.b16 %v4568, %v4564
  %v4649 = vpack.c.b16 %v4569, %v4565
  %v4650 = vpack.c.b16 %v4570, %v4566
  %v4651 = vpack.c.b16 %v4571, %v4567
  %v4652 = vpack.c.b16 %v4576, %v4572
  %v4653 = vpack.c.b16 %v4577, %v4573
  %v4654 = vpack.c.b16 %v4578, %v4574
  %v4655 = vpack.c.b16 %v4579, %v4575
  %v4656 = vpack.c.b16 %v4584, %v4580
  %v4657 = vpack.c.b16 %v4585, %v4581
  %v4658 = vpack.c.b16 %v4586, %v4582
  %v4659 = vpack.c.b16 %v4587, %v4583
  %v4660 = vpack.c.b16 %v4592, %v4588
  %v4661 = vpack.c.b16 %v4593, %v4589
  %v4662 = vpack.c.b16 %v4594, %v4590
  %v4663 = vpack.c.b16 %v4595, %v4591
  %v4664 = vpack.c.b16 %v4600, %v4596
  %v4665 = vpack.c.b16 %v4601, %v4597
  %v4666 = vpack.c.b16 %v4602, %v4598
  %v4667 = vpack.c.b16 %v4603, %v4599
  %4732 = vmatprep.subr.bf16.mxu0 %v4605
  %4733 = vmatpush1.bf16.msra.mxu0 %v4604
  %4734 = vmatprep.subr.bf16.mxu0 %v4609
  %4735 = vmatpush1.bf16.msra.mxu0 %v4608
  %4736 = vmatprep.subr.bf16.mxu0 %v4613
  %4737 = vmatpush1.bf16.msra.mxu0 %v4612
  %4738 = vmatprep.subr.bf16.mxu0 %v4617
  %4739 = vmatpush1.bf16.msra.mxu0 %v4616
  %4740 = vmatprep.subr.bf16.mxu0 %v4621
  %4741 = vmatpush1.bf16.msra.mxu0 %v4620
  %4742 = vmatprep.subr.bf16.mxu0 %v4625
  %4743 = vmatpush1.bf16.msra.mxu0 %v4624
  %4744 = vmatprep.subr.bf16.mxu0 %v4629
  %4745 = vmatpush1.bf16.msra.mxu0 %v4628
  %4746 = vmatprep.subr.bf16.mxu0 %v4633
  %4747 = vmatpush1.bf16.msra.mxu0 %v4632
  %4748 = vmatprep.subr.bf16.mxu0 %v4637
  %4749 = vmatpush1.bf16.msra.mxu0 %v4636
  %4750 = vmatprep.subr.bf16.mxu0 %v4641
  %4751 = vmatpush1.bf16.msra.mxu0 %v4640
  %4752 = vmatprep.subr.bf16.mxu0 %v4645
  %4753 = vmatpush1.bf16.msra.mxu0 %v4644
  %4754 = vmatprep.subr.bf16.mxu0 %v4649
  %4755 = vmatpush1.bf16.msra.mxu0 %v4648
  %4756 = vmatprep.subr.bf16.mxu0 %v4653
  %4757 = vmatpush1.bf16.msra.mxu0 %v4652
  %4758 = vmatprep.subr.bf16.mxu0 %v4657
  %4759 = vmatpush1.bf16.msra.mxu0 %v4656
  %4760 = vmatprep.subr.bf16.mxu0 %v4661
  %4761 = vmatpush1.bf16.msra.mxu0 %v4660
  %4762 = vmatprep.subr.bf16.mxu0 %v4665
  %4763 = vmatpush1.bf16.msra.mxu0 %v4664
  %4764 = vmatprep.mubr.bf16.mxu0 %v4346
  %4765 = vmatmul.mubr.bf16.gmra.mrb[0].mxu0 %v4345
  %v4766 = vpop.f32.mrb[0].mxu0
  %v4767 = vadd.f32 0.0, %v4766
  %v4768 = vpop.f32.mrb[0].mxu0
  %v4769 = vadd.f32 0.0, %v4768
  %v4770 = vpop.f32.mrb[0].mxu0
  %v4771 = vpop.f32.mrb[0].mxu0
  %4772 = vdwg.mxu0
  %4773 = vmatprep.subr.bf16.mxu0 %v4607
  %4774 = vmatpush1.bf16.msra.mxu0 %v4606
  %4775 = vmatprep.subr.bf16.mxu0 %v4611
  %4776 = vmatpush1.bf16.msra.mxu0 %v4610
  %4777 = vmatprep.subr.bf16.mxu0 %v4615
  %4778 = vmatpush1.bf16.msra.mxu0 %v4614
  %4779 = vmatprep.subr.bf16.mxu0 %v4619
  %4780 = vmatpush1.bf16.msra.mxu0 %v4618
  %4781 = vmatprep.subr.bf16.mxu0 %v4623
  %4782 = vmatpush1.bf16.msra.mxu0 %v4622
  %4783 = vmatprep.subr.bf16.mxu0 %v4627
  %4784 = vmatpush1.bf16.msra.mxu0 %v4626
  %4785 = vmatprep.subr.bf16.mxu0 %v4631
  %4786 = vmatpush1.bf16.msra.mxu0 %v4630
  %4787 = vmatprep.subr.bf16.mxu0 %v4635
  %4788 = vmatpush1.bf16.msra.mxu0 %v4634
  %4789 = vmatprep.subr.bf16.mxu0 %v4639
  %4790 = vmatpush1.bf16.msra.mxu0 %v4638
  %4791 = vmatprep.subr.bf16.mxu0 %v4643
  %4792 = vmatpush1.bf16.msra.mxu0 %v4642
  %4793 = vmatprep.subr.bf16.mxu0 %v4647
  %4794 = vmatpush1.bf16.msra.mxu0 %v4646
  %4795 = vmatprep.subr.bf16.mxu0 %v4651
  %4796 = vmatpush1.bf16.msra.mxu0 %v4650
  %4797 = vmatprep.subr.bf16.mxu0 %v4655
  %4798 = vmatpush1.bf16.msra.mxu0 %v4654
  %4799 = vmatprep.subr.bf16.mxu0 %v4659
  %4800 = vmatpush1.bf16.msra.mxu0 %v4658
  %4801 = vmatprep.subr.bf16.mxu0 %v4663
  %4802 = vmatpush1.bf16.msra.mxu0 %v4662
  %4803 = vmatprep.subr.bf16.mxu0 %v4667
  %4804 = vmatpush1.bf16.msra.mxu0 %v4666
  %4805 = vmatprep.mubr.bf16.mxu0 %v4346
  %4806 = vmatmul.mubr.bf16.gmra.mrb[0].mxu0 %v4345
  %v4807 = vpop.f32.mrb[0].mxu0
  %v4808 = vadd.f32 0.0, %v4807
  %v4809 = vpop.f32.mrb[0].mxu0
  %v4810 = vadd.f32 0.0, %v4809
  %v4811 = vpop.f32.mrb[0].mxu0
  %v4812 = vpop.f32.mrb[0].mxu0
  %4813 = vdwg.mxu0
  %v4814 = vadd.f32 %v3620, %v4767
  %v4815 = vadd.f32 %v3621, %v4769
  %v4816 = vadd.f32 %v3622, %v4808
  %v4817 = vadd.f32 %v3623, %v4810
  %v4818 = vmax.f32 %v4814, 0.0
  %v4819 = vmax.f32 %v4815, 0.0
  %v4820 = vmax.f32 %v4816, 0.0
  %v4821 = vmax.f32 %v4817, 0.0
  %v4822 = vpack.c.bf16 %v4818, %v4818
  %v4823 = vpack.c.bf16 %v4819, %v4819
  %v4824 = vpack.c.bf16 %v4820, %v4820
  %v4825 = vpack.c.bf16 %v4821, %v4821
  %v4826 = vld [vmem:[%s9] sm:$0xf]
  %v4827 = vld [vmem:[%s9 + $0x4] sm:$0xf]
  %v4828 = vld [vmem:[%s9 + $0x8] sm:$0xf]
  %v4829 = vld [vmem:[%s9 + $0xc] sm:$0xf]
  %v4830 = vld [vmem:[%s9 + $0x10] sm:$0xf]
  %v4831 = vld [vmem:[%s9 + $0x14] sm:$0xf]
  %v4832 = vld [vmem:[%s9 + $0x18] sm:$0xf]
  %v4833 = vld [vmem:[%s9 + $0x1c] sm:$0xf]
  %v4834 = vld [vmem:[%s9 + $0x20] sm:$0xf]
  %v4835 = vld [vmem:[%s9 + $0x24] sm:$0xf]
  %v4836 = vld [vmem:[%s9 + $0x28] sm:$0xf]
  %v4837 = vld [vmem:[%s9 + $0x2c] sm:$0xf]
  %v4838 = vld [vmem:[%s9 + $0x30] sm:$0xf]
  %v4839 = vld [vmem:[%s9 + $0x34] sm:$0xf]
  %v4840 = vld [vmem:[%s9 + $0x38] sm:$0xf]
  %v4841 = vld [vmem:[%s9 + $0x3c] sm:$0xf]
  %v4842 = vld [vmem:[%s9 + $0x40] sm:$0xf]
  %v4843 = vld [vmem:[%s9 + $0x44] sm:$0xf]
  %v4844 = vld [vmem:[%s9 + $0x48] sm:$0xf]
  %v4845 = vld [vmem:[%s9 + $0x4c] sm:$0xf]
  %v4846 = vld [vmem:[%s9 + $0x50] sm:$0xf]
  %v4847 = vld [vmem:[%s9 + $0x54] sm:$0xf]
  %v4848 = vld [vmem:[%s9 + $0x58] sm:$0xf]
  %v4849 = vld [vmem:[%s9 + $0x5c] sm:$0xf]
  %v4850 = vld [vmem:[%s9 + $0x60] sm:$0xf]
  %v4851 = vld [vmem:[%s9 + $0x64] sm:$0xf]
  %v4852 = vld [vmem:[%s9 + $0x68] sm:$0xf]
  %v4853 = vld [vmem:[%s9 + $0x6c] sm:$0xf]
  %v4854 = vld [vmem:[%s9 + $0x70] sm:$0xf]
  %v4855 = vld [vmem:[%s9 + $0x74] sm:$0xf]
  %v4856 = vld [vmem:[%s9 + $0x78] sm:$0xf]
  %v4857 = vld [vmem:[%s9 + $0x7c] sm:$0xf]
  %v4858 = vld [vmem:[%s9 + $0x80] sm:$0xf]
  %v4859 = vld [vmem:[%s9 + $0x84] sm:$0xf]
  %v4860 = vld [vmem:[%s9 + $0x88] sm:$0xf]
  %v4861 = vld [vmem:[%s9 + $0x8c] sm:$0xf]
  %v4862 = vld [vmem:[%s9 + $0x90] sm:$0xf]
  %v4863 = vld [vmem:[%s9 + $0x94] sm:$0xf]
  %v4864 = vld [vmem:[%s9 + $0x98] sm:$0xf]
  %v4865 = vld [vmem:[%s9 + $0x9c] sm:$0xf]
  %v4866 = vld [vmem:[%s9 + $0xa0] sm:$0xf]
  %v4867 = vld [vmem:[%s9 + $0xa4] sm:$0xf]
  %v4868 = vld [vmem:[%s9 + $0xa8] sm:$0xf]
  %v4869 = vld [vmem:[%s9 + $0xac] sm:$0xf]
  %v4870 = vld [vmem:[%s9 + $0xb0] sm:$0xf]
  %v4871 = vld [vmem:[%s9 + $0xb4] sm:$0xf]
  %v4872 = vld [vmem:[%s9 + $0xb8] sm:$0xf]
  %v4873 = vld [vmem:[%s9 + $0xbc] sm:$0xf]
  %v4874 = vld [vmem:[%s9 + $0xc0] sm:$0xf]
  %v4875 = vld [vmem:[%s9 + $0xc4] sm:$0xf]
  %v4876 = vld [vmem:[%s9 + $0xc8] sm:$0xf]
  %v4877 = vld [vmem:[%s9 + $0xcc] sm:$0xf]
  %v4878 = vld [vmem:[%s9 + $0xd0] sm:$0xf]
  %v4879 = vld [vmem:[%s9 + $0xd4] sm:$0xf]
  %v4880 = vld [vmem:[%s9 + $0xd8] sm:$0xf]
  %v4881 = vld [vmem:[%s9 + $0xdc] sm:$0xf]
  %v4882 = vld [vmem:[%s9 + $0xe0] sm:$0xf]
  %v4883 = vld [vmem:[%s9 + $0xe4] sm:$0xf]
  %v4884 = vld [vmem:[%s9 + $0xe8] sm:$0xf]
  %v4885 = vld [vmem:[%s9 + $0xec] sm:$0xf]
  %v4886 = vld [vmem:[%s9 + $0xf0] sm:$0xf]
  %v4887 = vld [vmem:[%s9 + $0xf4] sm:$0xf]
  %v4888 = vld [vmem:[%s9 + $0xf8] sm:$0xf]
  %v4889 = vld [vmem:[%s9 + $0xfc] sm:$0xf]
  %v4890 = vld [vmem:[%s10] sm:$0x1]
  %v4892 = vlaneseq
  %v4893 = vshrl.u32 %v4892, 7
  %v4894 = vsub.s32 0, %v4893
  %v4895 = vrot.slane %v4890, %v4894
  %v4961 = vunpack.c.l.b16 %v4826
  %v4962 = vunpack.c.l.b16 %v4827
  %v4963 = vunpack.c.l.b16 %v4828
  %v4964 = vunpack.c.l.b16 %v4829
  %v4965 = vunpack.c.l.b16 %v4830
  %v4966 = vunpack.c.l.b16 %v4831
  %v4967 = vunpack.c.l.b16 %v4832
  %v4968 = vunpack.c.l.b16 %v4833
  %v4969 = vunpack.c.l.b16 %v4834
  %v4970 = vunpack.c.l.b16 %v4835
  %v4971 = vunpack.c.l.b16 %v4836
  %v4972 = vunpack.c.l.b16 %v4837
  %v4973 = vunpack.c.l.b16 %v4838
  %v4974 = vunpack.c.l.b16 %v4839
  %v4975 = vunpack.c.l.b16 %v4840
  %v4976 = vunpack.c.l.b16 %v4841
  %v4977 = vunpack.c.l.b16 %v4842
  %v4978 = vunpack.c.l.b16 %v4843
  %v4979 = vunpack.c.l.b16 %v4844
  %v4980 = vunpack.c.l.b16 %v4845
  %v4981 = vunpack.c.l.b16 %v4846
  %v4982 = vunpack.c.l.b16 %v4847
  %v4983 = vunpack.c.l.b16 %v4848
  %v4984 = vunpack.c.l.b16 %v4849
  %v4985 = vunpack.c.l.b16 %v4850
  %v4986 = vunpack.c.l.b16 %v4851
  %v4987 = vunpack.c.l.b16 %v4852
  %v4988 = vunpack.c.l.b16 %v4853
  %v4989 = vunpack.c.l.b16 %v4854
  %v4990 = vunpack.c.l.b16 %v4855
  %v4991 = vunpack.c.l.b16 %v4856
  %v4992 = vunpack.c.l.b16 %v4857
  %v4993 = vunpack.c.l.b16 %v4858
  %v4994 = vunpack.c.l.b16 %v4859
  %v4995 = vunpack.c.l.b16 %v4860
  %v4996 = vunpack.c.l.b16 %v4861
  %v4997 = vunpack.c.l.b16 %v4862
  %v4998 = vunpack.c.l.b16 %v4863
  %v4999 = vunpack.c.l.b16 %v4864
  %v5000 = vunpack.c.l.b16 %v4865
  %v5001 = vunpack.c.l.b16 %v4866
  %v5002 = vunpack.c.l.b16 %v4867
  %v5003 = vunpack.c.l.b16 %v4868
  %v5004 = vunpack.c.l.b16 %v4869
  %v5005 = vunpack.c.l.b16 %v4870
  %v5006 = vunpack.c.l.b16 %v4871
  %v5007 = vunpack.c.l.b16 %v4872
  %v5008 = vunpack.c.l.b16 %v4873
  %v5009 = vunpack.c.l.b16 %v4874
  %v5010 = vunpack.c.l.b16 %v4875
  %v5011 = vunpack.c.l.b16 %v4876
  %v5012 = vunpack.c.l.b16 %v4877
  %v5013 = vunpack.c.l.b16 %v4878
  %v5014 = vunpack.c.l.b16 %v4879
  %v5015 = vunpack.c.l.b16 %v4880
  %v5016 = vunpack.c.l.b16 %v4881
  %v5017 = vunpack.c.l.b16 %v4882
  %v5018 = vunpack.c.l.b16 %v4883
  %v5019 = vunpack.c.l.b16 %v4884
  %v5020 = vunpack.c.l.b16 %v4885
  %v5021 = vunpack.c.l.b16 %v4886
  %v5022 = vunpack.c.l.b16 %v4887
  %v5023 = vunpack.c.l.b16 %v4888
  %v5024 = vunpack.c.l.b16 %v4889
  %v5025 = vpack.c.b16 %v4962, %v4961
  %v5026 = vpack.c.b16 %v4964, %v4963
  %v5027 = vpack.c.b16 %v4966, %v4965
  %v5028 = vpack.c.b16 %v4968, %v4967
  %v5029 = vpack.c.b16 %v4970, %v4969
  %v5030 = vpack.c.b16 %v4972, %v4971
  %v5031 = vpack.c.b16 %v4974, %v4973
  %v5032 = vpack.c.b16 %v4976, %v4975
  %v5033 = vpack.c.b16 %v4978, %v4977
  %v5034 = vpack.c.b16 %v4980, %v4979
  %v5035 = vpack.c.b16 %v4982, %v4981
  %v5036 = vpack.c.b16 %v4984, %v4983
  %v5037 = vpack.c.b16 %v4986, %v4985
  %v5038 = vpack.c.b16 %v4988, %v4987
  %v5039 = vpack.c.b16 %v4990, %v4989
  %v5040 = vpack.c.b16 %v4992, %v4991
  %v5041 = vpack.c.b16 %v4994, %v4993
  %v5042 = vpack.c.b16 %v4996, %v4995
  %v5043 = vpack.c.b16 %v4998, %v4997
  %v5044 = vpack.c.b16 %v5000, %v4999
  %v5045 = vpack.c.b16 %v5002, %v5001
  %v5046 = vpack.c.b16 %v5004, %v5003
  %v5047 = vpack.c.b16 %v5006, %v5005
  %v5048 = vpack.c.b16 %v5008, %v5007
  %v5049 = vpack.c.b16 %v5010, %v5009
  %v5050 = vpack.c.b16 %v5012, %v5011
  %v5051 = vpack.c.b16 %v5014, %v5013
  %v5052 = vpack.c.b16 %v5016, %v5015
  %v5053 = vpack.c.b16 %v5018, %v5017
  %v5054 = vpack.c.b16 %v5020, %v5019
  %v5055 = vpack.c.b16 %v5022, %v5021
  %v5056 = vpack.c.b16 %v5024, %v5023
  %5089 = vmatprep.subr.bf16.mxu0 0
  %5090 = vmatpush1.bf16.msra.mxu0 %v5025
  %5091 = vmatprep.subr.bf16.mxu0 0
  %5092 = vmatpush1.bf16.msra.mxu0 %v5026
  %5093 = vmatprep.subr.bf16.mxu0 0
  %5094 = vmatpush1.bf16.msra.mxu0 %v5027
  %5095 = vmatprep.subr.bf16.mxu0 0
  %5096 = vmatpush1.bf16.msra.mxu0 %v5028
  %5097 = vmatprep.subr.bf16.mxu0 0
  %5098 = vmatpush1.bf16.msra.mxu0 %v5029
  %5099 = vmatprep.subr.bf16.mxu0 0
  %5100 = vmatpush1.bf16.msra.mxu0 %v5030
  %5101 = vmatprep.subr.bf16.mxu0 0
  %5102 = vmatpush1.bf16.msra.mxu0 %v5031
  %5103 = vmatprep.subr.bf16.mxu0 0
  %5104 = vmatpush1.bf16.msra.mxu0 %v5032
  %5105 = vmatprep.subr.bf16.mxu0 0
  %5106 = vmatpush1.bf16.msra.mxu0 %v5033
  %5107 = vmatprep.subr.bf16.mxu0 0
  %5108 = vmatpush1.bf16.msra.mxu0 %v5034
  %5109 = vmatprep.subr.bf16.mxu0 0
  %5110 = vmatpush1.bf16.msra.mxu0 %v5035
  %5111 = vmatprep.subr.bf16.mxu0 0
  %5112 = vmatpush1.bf16.msra.mxu0 %v5036
  %5113 = vmatprep.subr.bf16.mxu0 0
  %5114 = vmatpush1.bf16.msra.mxu0 %v5037
  %5115 = vmatprep.subr.bf16.mxu0 0
  %5116 = vmatpush1.bf16.msra.mxu0 %v5038
  %5117 = vmatprep.subr.bf16.mxu0 0
  %5118 = vmatpush1.bf16.msra.mxu0 %v5039
  %5119 = vmatprep.subr.bf16.mxu0 0
  %5120 = vmatpush1.bf16.msra.mxu0 %v5040
  %5121 = vmatprep.mubr.bf16.mxu0 %v4823
  %5122 = vmatmul.mubr.bf16.gmra.mrb[0].mxu0 %v4822
  %v5123 = vpop.f32.mrb[0].mxu0
  %v5124 = vadd.f32 %v4895, %v5123
  %v5125 = vpop.f32.mrb[0].mxu0
  %v5126 = vpop.f32.mrb[0].mxu0
  %v5127 = vpop.f32.mrb[0].mxu0
  %5128 = vdwg.mxu0
  %5129 = vmatprep.subr.bf16.mxu0 0
  %5130 = vmatpush1.bf16.msra.mxu0 %v5041
  %5131 = vmatprep.subr.bf16.mxu0 0
  %5132 = vmatpush1.bf16.msra.mxu0 %v5042
  %5133 = vmatprep.subr.bf16.mxu0 0
  %5134 = vmatpush1.bf16.msra.mxu0 %v5043
  %5135 = vmatprep.subr.bf16.mxu0 0
  %5136 = vmatpush1.bf16.msra.mxu0 %v5044
  %5137 = vmatprep.subr.bf16.mxu0 0
  %5138 = vmatpush1.bf16.msra.mxu0 %v5045
  %5139 = vmatprep.subr.bf16.mxu0 0
  %5140 = vmatpush1.bf16.msra.mxu0 %v5046
  %5141 = vmatprep.subr.bf16.mxu0 0
  %5142 = vmatpush1.bf16.msra.mxu0 %v5047
  %5143 = vmatprep.subr.bf16.mxu0 0
  %5144 = vmatpush1.bf16.msra.mxu0 %v5048
  %5145 = vmatprep.subr.bf16.mxu0 0
  %5146 = vmatpush1.bf16.msra.mxu0 %v5049
  %5147 = vmatprep.subr.bf16.mxu0 0
  %5148 = vmatpush1.bf16.msra.mxu0 %v5050
  %5149 = vmatprep.subr.bf16.mxu0 0
  %5150 = vmatpush1.bf16.msra.mxu0 %v5051
  %5151 = vmatprep.subr.bf16.mxu0 0
  %5152 = vmatpush1.bf16.msra.mxu0 %v5052
  %5153 = vmatprep.subr.bf16.mxu0 0
  %5154 = vmatpush1.bf16.msra.mxu0 %v5053
  %5155 = vmatprep.subr.bf16.mxu0 0
  %5156 = vmatpush1.bf16.msra.mxu0 %v5054
  %5157 = vmatprep.subr.bf16.mxu0 0
  %5158 = vmatpush1.bf16.msra.mxu0 %v5055
  %5159 = vmatprep.subr.bf16.mxu0 0
  %5160 = vmatpush1.bf16.msra.mxu0 %v5056
  %5161 = vmatprep.mubr.bf16.mxu0 %v4825
  %5162 = vmatmul.mubr.bf16.gmra.mrb[0].mxu0 %v4824
  %v5163 = vpop.f32.mrb[0].mxu0
  %v5164 = vadd.f32 %v5124, %v5163
  %v5165 = vpop.f32.mrb[0].mxu0
  %v5166 = vpop.f32.mrb[0].mxu0
  %v5167 = vpop.f32.mrb[0].mxu0
  %5168 = vdwg.mxu0
  %5169 = vst [vmem:[%s11] sm:$0xff] %v5164
  // Predicated region
  $region46: #{model_forward.1} parent=0 // pred_check
    _
  $region47: #{model_forward.1} parent=0 // pred_check_branch
    %5171 = sbr.rel (0) target = $region49
  $region48: #{model_forward.1} parent=0 // pred_region
    _
  $region49: #{model_forward.1} parent=0 // pred_fallthru
    _
  // Predicated region
  $region50: #{model_forward.1} parent=0 // pred_check
    _
  $region51: #{model_forward.1} parent=0 // pred_check_branch
    %5173 = sbr.rel (0) target = $region53
  $region52: #{model_forward.1} parent=0 // pred_region
    _
  $region53: #{model_forward.1} parent=0 // pred_fallthru
    _

</llo_original>
